<compile_context>
chip_gen: v5e
topology: v5e:2x2
jax: 0.10.0
libtpu: 0.0.40
codegen_flags: <defaults>
</compile_context>

<pallas_src>
import numpy as np
import jax
import jax.numpy as jnp
from jax import lax
from jax.experimental import pallas as pl
from jax.experimental.pallas import tpu as pltpu


C1 = 16            # conv1 output channels
C2 = 32            # conv2 output channels
NG = 16            # 4x4 shifted stride-2 conv1 grids (r, s in 0..3)
K1 = 36            # 6x6 input patch per pooled output position
HID = 64           # fc1 hidden size
NCLS = 10          # real classes
NCLSP = 128        # padded classes (lane-dense logits)
NEG = -1e30        # "minus infinity" bias for padded logits

TB = 16            # samples per kernel-1 grid step
TM = 256           # batch rows per kernel-2 grid step
_VMEM_LIMIT = 32 * 1024 * 1024


def _round_up(n, m):
    return ((n + m - 1) // m) * m


# ---------------------------------------------------------------------------
# Kernel 1: conv1 + ReLU + conv2 + ReLU + 2x2 max-pool, TB samples per step.
#   xg_ref: (TB*144, 36)   row = n*144 + ph*12 + pw ; col = p*6 + q,
#                          value = x[n, 2*ph + p, 2*pw + q]
#   w1_ref: (36, 256)      column group g = r*4+s holds conv1 taps shifted by
#                          (r, s); A[:, g*16+c] = conv1_pre[2ph+r, 2pw+s, c]
#   b1_ref: (1, 256)       conv1 bias tiled over the 16 groups
#   w2_ref: (256, 128)     column group = pooling corner (di, dj), 32 ch each
#   b2_ref: (1, 32)
#   o_ref : (TB*144, 32)   pooled activation, row = n*144 + ph*12 + pw
# ---------------------------------------------------------------------------
def _conv_pool_kernel(xg_ref, w1_ref, b1_ref, w2_ref, b2_ref, o_ref):
    a = jnp.dot(xg_ref[...], w1_ref[...], preferred_element_type=jnp.float32)
    a = jnp.maximum(a + b1_ref[...], 0.0)            # relu(conv1) on 16 shifted grids
    z = jnp.dot(a, w2_ref[...], preferred_element_type=jnp.float32)  # 4 corners x 32ch
    m = jnp.maximum(jnp.maximum(z[:, 0:C2], z[:, C2:2 * C2]),
                    jnp.maximum(z[:, 2 * C2:3 * C2], z[:, 3 * C2:4 * C2]))
    o_ref[...] = jnp.maximum(m + b2_ref[...], 0.0)   # relu/+bias commute with max


def conv_pool(xg, w1, b1, w2, b2, tb):
    rows = xg.shape[0]                   # Bp * 144
    blk = tb * 144
    return pl.pallas_call(
        _conv_pool_kernel,
        out_shape=jax.ShapeDtypeStruct((rows, C2), jnp.float32),
        grid=(rows // blk,),
        in_specs=[
            pl.BlockSpec((blk, K1), lambda i: (i, 0)),
            pl.BlockSpec((K1, NG * C1), lambda i: (0, 0)),
            pl.BlockSpec((1, NG * C1), lambda i: (0, 0)),
            pl.BlockSpec((NG * C1, 4 * C2), lambda i: (0, 0)),
            pl.BlockSpec((1, C2), lambda i: (0, 0)),
        ],
        out_specs=pl.BlockSpec((blk, C2), lambda i: (i, 0)),
        compiler_params=pltpu.CompilerParams(
            dimension_semantics=("parallel",),
            vmem_limit_bytes=_VMEM_LIMIT),
    )(xg, w1, b1, w2, b2)


# ---------------------------------------------------------------------------
# Kernel 2: fc1 + ReLU + fc2 + log_softmax, tm batch rows per step.
# ---------------------------------------------------------------------------
def _fc_kernel(x_ref, w1_ref, b1_ref, w2_ref, b2_ref, o_ref):
    h = jnp.dot(x_ref[...], w1_ref[...], preferred_element_type=jnp.float32)
    h = jnp.maximum(h + b1_ref[...], 0.0)                       # (tm, HID)
    z = jnp.dot(h, w2_ref[...], preferred_element_type=jnp.float32) + b2_ref[...]
    m = jnp.max(z, axis=-1, keepdims=True)
    lse = jnp.log(jnp.sum(jnp.exp(z - m), axis=-1, keepdims=True)) + m
    o_ref[...] = (z - lse).astype(o_ref.dtype)


def fc_head(flat, fw1, fb1, fw2, fb2, tm):
    B, K = flat.shape
    return pl.pallas_call(
        _fc_kernel,
        out_shape=jax.ShapeDtypeStruct((B, NCLSP), jnp.float32),
        grid=(B // tm,),
        in_specs=[
            pl.BlockSpec((tm, K), lambda i: (i, 0)),
            pl.BlockSpec((K, HID), lambda i: (0, 0)),
            pl.BlockSpec((1, HID), lambda i: (0, 0)),
            pl.BlockSpec((HID, NCLSP), lambda i: (0, 0)),
            pl.BlockSpec((1, NCLSP), lambda i: (0, 0)),
        ],
        out_specs=pl.BlockSpec((tm, NCLSP), lambda i: (i, 0)),
        compiler_params=pltpu.CompilerParams(
            dimension_semantics=("parallel",),
            vmem_limit_bytes=_VMEM_LIMIT),
    )(flat, fw1, fb1, fw2, fb2)


# ---------------------------------------------------------------------------
# One-time parameter preparation (all layout / shift-folding done here).
# ---------------------------------------------------------------------------
def prepare_params(params):
    w1 = np.asarray(params["cn1_w"], np.float32)      # (16, 1, 3, 3)  OIHW
    b1 = np.asarray(params["cn1_b"], np.float32)
    w2 = np.asarray(params["cn2_w"], np.float32)      # (32, 16, 3, 3) OIHW
    b2 = np.asarray(params["cn2_b"], np.float32)

    # W1big[p*6+q, (r*4+s)*16 + c] = w1[c, 0, p-r, q-s]  (zero if out of the 3x3 tap)
    W1 = np.zeros((K1, NG * C1), np.float32)
    for r in range(4):
        for s in range(4):
            g = r * 4 + s
            for eh in range(3):
                for ew in range(3):
                    W1[(r + eh) * 6 + (s + ew), g * C1:(g + 1) * C1] = w1[:, 0, eh, ew]
    B1 = np.tile(b1, NG).reshape(1, NG * C1)

    # W2corners[(r*4+s)*16 + ci, (di*2+dj)*32 + co] = w2[co, ci, r-di, s-dj]
    W2 = np.zeros((NG * C1, 4 * C2), np.float32)
    for di in range(2):
        for dj in range(2):
            cg = di * 2 + dj
            for dh in range(3):
                for dw in range(3):
                    g = (di + dh) * 4 + (dj + dw)
                    W2[g * C1:(g + 1) * C1, cg * C2:(cg + 1) * C2] = w2[:, :, dh, dw].T
    B2 = b2.reshape(1, C2)

    # fc1: torch flatten order is (c, ph, pw); kernel-1 output order is
    # (ph, pw, c).  Permute the weight rows once (no padding anymore).
    fw1 = np.asarray(params["fc1_w"], np.float32).reshape(HID, C2, 12, 12)
    fw1 = np.transpose(fw1, (2, 3, 1, 0)).reshape(12 * 12 * C2, HID)      # (4608, 64)
    fb1 = np.asarray(params["fc1_b"], np.float32).reshape(1, HID)

    fw2 = np.zeros((HID, NCLSP), np.float32)
    fw2[:, :NCLS] = np.asarray(params["fc2_w"], np.float32).T
    fb2 = np.full((1, NCLSP), NEG, np.float32)
    fb2[0, :NCLS] = np.asarray(params["fc2_b"], np.float32)

    arrs = dict(w1=W1, b1=B1, w2=W2, b2=B2, fw1=fw1, fb1=fb1, fw2=fw2, fb2=fb2)
    return {k: jnp.asarray(v) for k, v in arrs.items()}


# ---------------------------------------------------------------------------
# ConvNet forward (Pallas) and pure-JAX reference
# ---------------------------------------------------------------------------
def convnet_forward(x_nchw, prep):
    B = x_nchw.shape[0]
    x = x_nchw.reshape(B, 28, 28).astype(jnp.float32)

    tb = min(TB, _round_up(B, 8))
    bp = _round_up(B, tb)
    if bp != B:
        x = jnp.pad(x, ((0, bp - B), (0, 0), (0, 0)))

    # Lane-dense 6x6 stride-2 patch gather done once in the XLA wrapper:
    #   xg[n*144 + ph*12 + pw, p*6 + q] = x[n, 2*ph + p, 2*pw + q]
    cols = [x[:, p:p + 24:2, q:q + 24:2] for p in range(6) for q in range(6)]
    xg = jnp.stack(cols, axis=-1).reshape(bp * 144, K1)

    pooled = conv_pool(xg, prep["w1"], prep["b1"], prep["w2"], prep["b2"], tb)
    flat = pooled.reshape(bp, 144 * C2)          # free row-major reshape -> (bp, 4608)

    tm = min(TM, bp)
    bp2 = _round_up(bp, tm)
    if bp2 != bp:
        flat = jnp.pad(flat, ((0, bp2 - bp), (0, 0)))

    logp = fc_head(flat, prep["fw1"], prep["fb1"], prep["fw2"], prep["fb2"], tm)
    return logp[:B, :NCLS]


def reference_forward(x_nchw, params):
    hi = lax.Precision.HIGHEST
    x = x_nchw.astype(jnp.float32)
    y = lax.conv_general_dilated(x, params["cn1_w"], (1, 1), "VALID",
                                 dimension_numbers=("NCHW", "OIHW", "NCHW"),
                                 precision=hi)
    y = jax.nn.relu(y + params["cn1_b"].reshape(1, -1, 1, 1))
    y = lax.conv_general_dilated(y, params["cn2_w"], (1, 1), "VALID",
                                 dimension_numbers=("NCHW", "OIHW", "NCHW"),
                                 precision=hi)
    y = jax.nn.relu(y + params["cn2_b"].reshape(1, -1, 1, 1))
    y = lax.reduce_window(y, -jnp.inf, lax.max, (1, 1, 2, 2), (1, 1, 2, 2), "VALID")
    y = y.reshape(y.shape[0], -1)                                        # NCHW flatten
    y = jax.nn.relu(jnp.dot(y, params["fc1_w"].T, precision=hi) + params["fc1_b"])
    y = jnp.dot(y, params["fc2_w"].T, precision=hi) + params["fc2_b"]
    return jax.nn.log_softmax(y, axis=-1)


def init_params(key):
    ks = jax.random.split(key, 8)
    s = 0.05
    return {
        "cn1_w": jax.random.normal(ks[0], (16, 1, 3, 3), jnp.float32) * s,
        "cn1_b": jax.random.normal(ks[1], (16,), jnp.float32) * s,
        "cn2_w": jax.random.normal(ks[2], (32, 16, 3, 3), jnp.float32) * s,
        "cn2_b": jax.random.normal(ks[3], (32,), jnp.float32) * s,
        "fc1_w": jax.random.normal(ks[4], (64, 4608), jnp.float32) * (s / 8.0),
        "fc1_b": jax.random.normal(ks[5], (64,), jnp.float32) * s,
        "fc2_w": jax.random.normal(ks[6], (10, 64), jnp.float32) * s,
        "fc2_b": jax.random.normal(ks[7], (10,), jnp.float32) * s,
    }


if __name__ == "__main__":
    key = jax.random.PRNGKey(0)
    pkey, xkey = jax.random.split(key)
    params = init_params(pkey)
    prep = prepare_params(params)          # one-time weight layout prep

    # Spatial size is forced to 28x28 by fc1's 4608 = 32*12*12 input features.
    x = jax.random.normal(xkey, (2, 1, 28, 28), jnp.float32)

    fwd = jax.jit(convnet_forward)
    out = jax.block_until_ready(fwd(x, prep))

    assert out.shape == (2, NCLS), out.shape
    row_sums = jnp.exp(out).sum(axis=1)
    assert bool(jnp.all(jnp.abs(row_sums - 1.0) < 1e-4)), row_sums

    ref = reference_forward(x, params)
    err = float(jnp.max(jnp.abs(out - ref)))
    assert err < 3e-3, f"max |pallas - reference| = {err}"

    print("KERNEL_OK")
</pallas_src>

<mosaic_0001>
module attributes {stable_mosaic.version = 11 : i64} {
  func.func @_conv_pool_kernel(%arg0: i32, %arg1: memref<1152x36xf32, #tpu.memory_space<vmem>>, %arg2: memref<36x256xf32, #tpu.memory_space<vmem>>, %arg3: memref<1x256xf32, #tpu.memory_space<vmem>>, %arg4: memref<256x128xf32, #tpu.memory_space<vmem>>, %arg5: memref<1x32xf32, #tpu.memory_space<vmem>>, %arg6: memref<1152x32xf32, #tpu.memory_space<vmem>>) attributes {dimension_semantics = [#tpu.dimension_semantics<parallel>], iteration_bounds = array<i64: 1>, scalar_prefetch = 0 : i64, scratch_operands = 0 : i64, tpu.core_type = #tpu.core_type<tc>, window_params = [{transform_indices = @transform_0, window_bounds = array<i64: 1152, 36>}, {pipeline_mode = #tpu.pipeline_mode<synchronous>, transform_indices = @transform_1, window_bounds = array<i64: 36, 256>}, {pipeline_mode = #tpu.pipeline_mode<synchronous>, transform_indices = @transform_2, window_bounds = array<i64: 1, 256>}, {pipeline_mode = #tpu.pipeline_mode<synchronous>, transform_indices = @transform_3, window_bounds = array<i64: 256, 128>}, {pipeline_mode = #tpu.pipeline_mode<synchronous>, transform_indices = @transform_4, window_bounds = array<i64: 1, 32>}, {transform_indices = @transform_5, window_bounds = array<i64: 1152, 32>}]} {
    %c0 = arith.constant 0 : index
    %c0_0 = arith.constant 0 : index
    %0 = vector.load %arg1[%c0, %c0_0] : memref<1152x36xf32, #tpu.memory_space<vmem>>, vector<1152x36xf32>
    %c0_1 = arith.constant 0 : index
    %c0_2 = arith.constant 0 : index
    %1 = vector.load %arg2[%c0_1, %c0_2] : memref<36x256xf32, #tpu.memory_space<vmem>>, vector<36x256xf32>
    %cst = arith.constant dense<0.000000e+00> : vector<1152x256xf32>
    %2 = tpu.matmul %0, %1, %cst {dimension_numbers = #tpu.dot_dimension_numbers<[1], [0], [0], [1], [0, 0, 1, 1], [], []>} : vector<1152x36xf32>, vector<36x256xf32>, vector<1152x256xf32> -> vector<1152x256xf32>
    %c0_3 = arith.constant 0 : index
    %c0_4 = arith.constant 0 : index
    %3 = vector.load %arg3[%c0_3, %c0_4] : memref<1x256xf32, #tpu.memory_space<vmem>>, vector<1x256xf32>
    %4 = vector.broadcast %3 : vector<1x256xf32> to vector<1152x256xf32>
    %5 = arith.addf %2, %4 : vector<1152x256xf32>
    %cst_5 = arith.constant 0.000000e+00 : f32
    %6 = vector.broadcast %cst_5 : f32 to vector<1152x256xf32>
    %7 = arith.maximumf %5, %6 : vector<1152x256xf32>
    %c0_6 = arith.constant 0 : index
    %c0_7 = arith.constant 0 : index
    %8 = vector.load %arg4[%c0_6, %c0_7] : memref<256x128xf32, #tpu.memory_space<vmem>>, vector<256x128xf32>
    %cst_8 = arith.constant dense<0.000000e+00> : vector<1152x128xf32>
    %9 = tpu.matmul %7, %8, %cst_8 {dimension_numbers = #tpu.dot_dimension_numbers<[1], [0], [0], [1], [0, 0, 1, 1], [], []>} : vector<1152x256xf32>, vector<256x128xf32>, vector<1152x128xf32> -> vector<1152x128xf32>
    %10 = vector.extract_strided_slice %9 {offsets = [0, 0], sizes = [1152, 32], strides = [1, 1]} : vector<1152x128xf32> to vector<1152x32xf32>
    %11 = vector.extract_strided_slice %9 {offsets = [0, 32], sizes = [1152, 32], strides = [1, 1]} : vector<1152x128xf32> to vector<1152x32xf32>
    %12 = arith.maximumf %10, %11 : vector<1152x32xf32>
    %13 = vector.extract_strided_slice %9 {offsets = [0, 64], sizes = [1152, 32], strides = [1, 1]} : vector<1152x128xf32> to vector<1152x32xf32>
    %14 = vector.extract_strided_slice %9 {offsets = [0, 96], sizes = [1152, 32], strides = [1, 1]} : vector<1152x128xf32> to vector<1152x32xf32>
    %15 = arith.maximumf %13, %14 : vector<1152x32xf32>
    %16 = arith.maximumf %12, %15 : vector<1152x32xf32>
    %c0_9 = arith.constant 0 : index
    %c0_10 = arith.constant 0 : index
    %17 = vector.load %arg5[%c0_9, %c0_10] : memref<1x32xf32, #tpu.memory_space<vmem>>, vector<1x32xf32>
    %18 = vector.broadcast %17 : vector<1x32xf32> to vector<1152x32xf32>
    %19 = arith.addf %16, %18 : vector<1152x32xf32>
    %cst_11 = arith.constant 0.000000e+00 : f32
    %20 = vector.broadcast %cst_11 : f32 to vector<1152x32xf32>
    %21 = arith.maximumf %19, %20 : vector<1152x32xf32>
    %c0_12 = arith.constant 0 : index
    %c0_13 = arith.constant 0 : index
    %22 = vector.load %arg6[%c0_12, %c0_13] : memref<1152x32xf32, #tpu.memory_space<vmem>>, vector<1152x32xf32>
    tpu.vector_store %arg6[%c0_12, %c0_13], %21 {strides = array<i32>} : memref<1152x32xf32, #tpu.memory_space<vmem>>, vector<1152x32xf32>,
    return
  }
  func.func @transform_0(%arg0: i32) -> (i32, i32) {
    %c0_i32 = arith.constant 0 : i32
    %c0_i32_0 = arith.constant 0 : i32
    return %arg0, %c0_i32 : i32, i32
  }
  func.func @transform_1(%arg0: i32) -> (i32, i32) {
    %c0_i32 = arith.constant 0 : i32
    %c0_i32_0 = arith.constant 0 : i32
    %c0_i32_1 = arith.constant 0 : i32
    return %c0_i32, %c0_i32_0 : i32, i32
  }
  func.func @transform_2(%arg0: i32) -> (i32, i32) {
    %c0_i32 = arith.constant 0 : i32
    %c0_i32_0 = arith.constant 0 : i32
    %c0_i32_1 = arith.constant 0 : i32
    return %c0_i32, %c0_i32_0 : i32, i32
  }
  func.func @transform_3(%arg0: i32) -> (i32, i32) {
    %c0_i32 = arith.constant 0 : i32
    %c0_i32_0 = arith.constant 0 : i32
    %c0_i32_1 = arith.constant 0 : i32
    return %c0_i32, %c0_i32_0 : i32, i32
  }
  func.func @transform_4(%arg0: i32) -> (i32, i32) {
    %c0_i32 = arith.constant 0 : i32
    %c0_i32_0 = arith.constant 0 : i32
    %c0_i32_1 = arith.constant 0 : i32
    return %c0_i32, %c0_i32_0 : i32, i32
  }
  func.func @transform_5(%arg0: i32) -> (i32, i32) {
    %c0_i32 = arith.constant 0 : i32
    %c0_i32_0 = arith.constant 0 : i32
    return %arg0, %c0_i32 : i32, i32
  }
}

module attributes {stable_mosaic.version = 11 : i64} {
  func.func @_fc_kernel(%arg0: i32, %arg1: memref<8x4608xf32, #tpu.memory_space<vmem>>, %arg2: memref<4608x64xf32, #tpu.memory_space<vmem>>, %arg3: memref<1x64xf32, #tpu.memory_space<vmem>>, %arg4: memref<64x128xf32, #tpu.memory_space<vmem>>, %arg5: memref<1x128xf32, #tpu.memory_space<vmem>>, %arg6: memref<8x128xf32, #tpu.memory_space<vmem>>) attributes {dimension_semantics = [#tpu.dimension_semantics<parallel>], iteration_bounds = array<i64: 1>, scalar_prefetch = 0 : i64, scratch_operands = 0 : i64, tpu.core_type = #tpu.core_type<tc>, window_params = [{transform_indices = @transform_0, window_bounds = array<i64: 8, 4608>}, {pipeline_mode = #tpu.pipeline_mode<synchronous>, transform_indices = @transform_1, window_bounds = array<i64: 4608, 64>}, {pipeline_mode = #tpu.pipeline_mode<synchronous>, transform_indices = @transform_2, window_bounds = array<i64: 1, 64>}, {pipeline_mode = #tpu.pipeline_mode<synchronous>, transform_indices = @transform_3, window_bounds = array<i64: 64, 128>}, {pipeline_mode = #tpu.pipeline_mode<synchronous>, transform_indices = @transform_4, window_bounds = array<i64: 1, 128>}, {transform_indices = @transform_5, window_bounds = array<i64: 8, 128>}]} {
    %c0 = arith.constant 0 : index
    %c0_0 = arith.constant 0 : index
    %0 = vector.load %arg1[%c0, %c0_0] : memref<8x4608xf32, #tpu.memory_space<vmem>>, vector<8x4608xf32>
    %c0_1 = arith.constant 0 : index
    %c0_2 = arith.constant 0 : index
    %1 = vector.load %arg2[%c0_1, %c0_2] : memref<4608x64xf32, #tpu.memory_space<vmem>>, vector<4608x64xf32>
    %cst = arith.constant dense<0.000000e+00> : vector<8x64xf32>
    %2 = tpu.matmul %0, %1, %cst {dimension_numbers = #tpu.dot_dimension_numbers<[1], [0], [0], [1], [0, 0, 1, 1], [], []>} : vector<8x4608xf32>, vector<4608x64xf32>, vector<8x64xf32> -> vector<8x64xf32>
    %c0_3 = arith.constant 0 : index
    %c0_4 = arith.constant 0 : index
    %3 = vector.load %arg3[%c0_3, %c0_4] : memref<1x64xf32, #tpu.memory_space<vmem>>, vector<1x64xf32>
    %4 = vector.broadcast %3 : vector<1x64xf32> to vector<8x64xf32>
    %5 = arith.addf %2, %4 : vector<8x64xf32>
    %cst_5 = arith.constant 0.000000e+00 : f32
    %6 = vector.broadcast %cst_5 : f32 to vector<8x64xf32>
    %7 = arith.maximumf %5, %6 : vector<8x64xf32>
    %c0_6 = arith.constant 0 : index
    %c0_7 = arith.constant 0 : index
    %8 = vector.load %arg4[%c0_6, %c0_7] : memref<64x128xf32, #tpu.memory_space<vmem>>, vector<64x128xf32>
    %cst_8 = arith.constant dense<0.000000e+00> : vector<8x128xf32>
    %9 = tpu.matmul %7, %8, %cst_8 {dimension_numbers = #tpu.dot_dimension_numbers<[1], [0], [0], [1], [0, 0, 1, 1], [], []>} : vector<8x64xf32>, vector<64x128xf32>, vector<8x128xf32> -> vector<8x128xf32>
    %c0_9 = arith.constant 0 : index
    %c0_10 = arith.constant 0 : index
    %10 = vector.load %arg5[%c0_9, %c0_10] : memref<1x128xf32, #tpu.memory_space<vmem>>, vector<1x128xf32>
    %11 = vector.broadcast %10 : vector<1x128xf32> to vector<8x128xf32>
    %12 = arith.addf %9, %11 : vector<8x128xf32>
    %cst_11 = arith.constant dense<0xFF800000> : vector<8xf32>
    %13 = vector.multi_reduction <maximumf>, %12, %cst_11 [1] : vector<8x128xf32> to vector<8xf32>
    %14 = vector.shape_cast %13 : vector<8xf32> to vector<8x1xf32>
    %15 = vector.broadcast %14 : vector<8x1xf32> to vector<8x128xf32>
    %16 = arith.subf %12, %15 : vector<8x128xf32>
    %17 = math.exp %16 : vector<8x128xf32>
    %cst_12 = arith.constant dense<0.000000e+00> : vector<8xf32>
    %18 = vector.multi_reduction <add>, %17, %cst_12 [1] : vector<8x128xf32> to vector<8xf32>
    %19 = vector.shape_cast %18 : vector<8xf32> to vector<8x1xf32>
    %20 = math.log %19 : vector<8x1xf32>
    %21 = arith.addf %20, %14 : vector<8x1xf32>
    %22 = vector.broadcast %21 : vector<8x1xf32> to vector<8x128xf32>
    %23 = arith.subf %12, %22 : vector<8x128xf32>
    %c0_13 = arith.constant 0 : index
    %c0_14 = arith.constant 0 : index
    %24 = vector.load %arg6[%c0_13, %c0_14] : memref<8x128xf32, #tpu.memory_space<vmem>>, vector<8x128xf32>
    tpu.vector_store %arg6[%c0_13, %c0_14], %23 {strides = array<i32>} : memref<8x128xf32, #tpu.memory_space<vmem>>, vector<8x128xf32>,
    return
  }
  func.func @transform_0(%arg0: i32) -> (i32, i32) {
    %c0_i32 = arith.constant 0 : i32
    %c0_i32_0 = arith.constant 0 : i32
    return %arg0, %c0_i32 : i32, i32
  }
  func.func @transform_1(%arg0: i32) -> (i32, i32) {
    %c0_i32 = arith.constant 0 : i32
    %c0_i32_0 = arith.constant 0 : i32
    %c0_i32_1 = arith.constant 0 : i32
    return %c0_i32, %c0_i32_0 : i32, i32
  }
  func.func @transform_2(%arg0: i32) -> (i32, i32) {
    %c0_i32 = arith.constant 0 : i32
    %c0_i32_0 = arith.constant 0 : i32
    %c0_i32_1 = arith.constant 0 : i32
    return %c0_i32, %c0_i32_0 : i32, i32
  }
  func.func @transform_3(%arg0: i32) -> (i32, i32) {
    %c0_i32 = arith.constant 0 : i32
    %c0_i32_0 = arith.constant 0 : i32
    %c0_i32_1 = arith.constant 0 : i32
    return %c0_i32, %c0_i32_0 : i32, i32
  }
  func.func @transform_4(%arg0: i32) -> (i32, i32) {
    %c0_i32 = arith.constant 0 : i32
    %c0_i32_0 = arith.constant 0 : i32
    %c0_i32_1 = arith.constant 0 : i32
    return %c0_i32, %c0_i32_0 : i32, i32
  }
  func.func @transform_5(%arg0: i32) -> (i32, i32) {
    %c0_i32 = arith.constant 0 : i32
    %c0_i32_0 = arith.constant 0 : i32
    return %arg0, %c0_i32 : i32, i32
  }
}

</mosaic_0001>

<llo_original>
// kernel: convnet_forward.3
$region0: #{convnet_forward.3}
  #allocation0 [shape = 'u32[]', space=smem, size = 0x4, offset = 0x4, fixed_abs, tag = 'smem constant byte address 0x4 - core index']
  #allocation1 [shape = 'u32[72,128]{1,0:T(1,128)}', space=vmem, size = 0x9000, scoped, tag = 'internal scratch']
  %s0 = inlined_call_operand.vmem [shape: f32[8,4608], index: 0, kind: input, shape index: {}]
  %s1 = inlined_call_operand.vmem [shape: f32[4608,64], index: 1, kind: input, shape index: {}]
  %s2 = inlined_call_operand.vmem [shape: f32[1,64], index: 2, kind: input, shape index: {}]
  %s3 = inlined_call_operand.vmem [shape: f32[64,128], index: 3, kind: input, shape index: {}]
  %s4 = inlined_call_operand.vmem [shape: f32[1,128], index: 4, kind: input, shape index: {}]
  %s5 = inlined_call_operand.vmem [shape: f32[8,128], index: 5, kind: output, shape index: {}]
  %s6 = sld [smem:[#allocation0]]
  $region30: #{convnet_forward.3} parent=0
    _
  %s8 = ssub.s32 1, %s6
  %s9 = scalar_select 0, %s8, %s6
  // Predicated region
  $region2: #{convnet_forward.3} parent=0 // pred_check
    _
  $region3: #{convnet_forward.3} parent=0 // pred_check_branch
    %11 = sbr.rel (0) target = $region5
  $region4: #{convnet_forward.3} parent=0 // pred_region
    _
  $region5: #{convnet_forward.3} parent=0 // pred_fallthru
    _
  // Predicated region
  $region6: #{convnet_forward.3} parent=0 // pred_check
    _
  $region7: #{convnet_forward.3} parent=0 // pred_check_branch
    %13 = sbr.rel (0) target = $region9
  $region8: #{convnet_forward.3} parent=0 // pred_region
    _
  $region9: #{convnet_forward.3} parent=0 // pred_fallthru
    _
  // Predicated region
  $region10: #{convnet_forward.3} parent=0 // pred_check
    _
  $region11: #{convnet_forward.3} parent=0 // pred_check_branch
    %15 = sbr.rel (0) target = $region13
  $region12: #{convnet_forward.3} parent=0 // pred_region
    _
  $region13: #{convnet_forward.3} parent=0 // pred_fallthru
    _
  // Predicated region
  $region14: #{convnet_forward.3} parent=0 // pred_check
    _
  $region15: #{convnet_forward.3} parent=0 // pred_check_branch
    %17 = sbr.rel (0) target = $region17
  $region16: #{convnet_forward.3} parent=0 // pred_region
    _
  $region17: #{convnet_forward.3} parent=0 // pred_fallthru
    _
  // Predicated region
  $region18: #{convnet_forward.3} parent=0 // pred_check
    _
  $region19: #{convnet_forward.3} parent=0 // pred_check_branch
    %19 = sbr.rel (0) target = $region21
  $region20: #{convnet_forward.3} parent=0 // pred_region
    _
  $region21: #{convnet_forward.3} parent=0 // pred_fallthru
    _
  %v20 = vld [vmem:[%s0] sm:$0xff]
  %v21 = vld [vmem:[%s0 + $0x8] sm:$0xff]
  %v22 = vld [vmem:[%s0 + $0x10] sm:$0xff]
  %v23 = vld [vmem:[%s0 + $0x18] sm:$0xff]
  %v24 = vld [vmem:[%s0 + $0x20] sm:$0xff]
  %v25 = vld [vmem:[%s0 + $0x28] sm:$0xff]
  %v26 = vld [vmem:[%s0 + $0x30] sm:$0xff]
  %v27 = vld [vmem:[%s0 + $0x38] sm:$0xff]
  %v28 = vld [vmem:[%s0 + $0x40] sm:$0xff]
  %v29 = vld [vmem:[%s0 + $0x48] sm:$0xff]
  %v30 = vld [vmem:[%s0 + $0x50] sm:$0xff]
  %v31 = vld [vmem:[%s0 + $0x58] sm:$0xff]
  %v32 = vld [vmem:[%s0 + $0x60] sm:$0xff]
  %v33 = vld [vmem:[%s0 + $0x68] sm:$0xff]
  %v34 = vld [vmem:[%s0 + $0x70] sm:$0xff]
  %v35 = vld [vmem:[%s0 + $0x78] sm:$0xff]
  %v36 = vld [vmem:[%s0 + $0x80] sm:$0xff]
  %v37 = vld [vmem:[%s0 + $0x88] sm:$0xff]
  %v38 = vld [vmem:[%s0 + $0x90] sm:$0xff]
  %v39 = vld [vmem:[%s0 + $0x98] sm:$0xff]
  %v40 = vld [vmem:[%s0 + $0xa0] sm:$0xff]
  %v41 = vld [vmem:[%s0 + $0xa8] sm:$0xff]
  %v42 = vld [vmem:[%s0 + $0xb0] sm:$0xff]
  %v43 = vld [vmem:[%s0 + $0xb8] sm:$0xff]
  %v44 = vld [vmem:[%s0 + $0xc0] sm:$0xff]
  %v45 = vld [vmem:[%s0 + $0xc8] sm:$0xff]
  %v46 = vld [vmem:[%s0 + $0xd0] sm:$0xff]
  %v47 = vld [vmem:[%s0 + $0xd8] sm:$0xff]
  %v48 = vld [vmem:[%s0 + $0xe0] sm:$0xff]
  %v49 = vld [vmem:[%s0 + $0xe8] sm:$0xff]
  %v50 = vld [vmem:[%s0 + $0xf0] sm:$0xff]
  %v51 = vld [vmem:[%s0 + $0xf8] sm:$0xff]
  %v52 = vld [vmem:[%s0 + $0x100] sm:$0xff]
  %v53 = vld [vmem:[%s0 + $0x108] sm:$0xff]
  %v54 = vld [vmem:[%s0 + $0x110] sm:$0xff]
  %v55 = vld [vmem:[%s0 + $0x118] sm:$0xff]
  %v56 = vld [vmem:[%s1] sm:$0xff]
  %v57 = vld [vmem:[%s1 + $0x8] sm:$0xff]
  %v58 = vld [vmem:[%s1 + $0x10] sm:$0xff]
  %v59 = vld [vmem:[%s1 + $0x18] sm:$0xff]
  %v60 = vld [vmem:[%s1 + $0x20] sm:$0xff]
  %v61 = vld [vmem:[%s1 + $0x28] sm:$0xff]
  %v62 = vld [vmem:[%s1 + $0x30] sm:$0xff]
  %v63 = vld [vmem:[%s1 + $0x38] sm:$0xff]
  %v64 = vld [vmem:[%s1 + $0x40] sm:$0xff]
  %v65 = vld [vmem:[%s1 + $0x48] sm:$0xff]
  %v66 = vld [vmem:[%s1 + $0x50] sm:$0xff]
  %v67 = vld [vmem:[%s1 + $0x58] sm:$0xff]
  %v68 = vld [vmem:[%s1 + $0x60] sm:$0xff]
  %v69 = vld [vmem:[%s1 + $0x68] sm:$0xff]
  %v70 = vld [vmem:[%s1 + $0x70] sm:$0xff]
  %v71 = vld [vmem:[%s1 + $0x78] sm:$0xff]
  %v72 = vld [vmem:[%s1 + $0x80] sm:$0xff]
  %v73 = vld [vmem:[%s1 + $0x88] sm:$0xff]
  %v74 = vld [vmem:[%s1 + $0x90] sm:$0xff]
  %v75 = vld [vmem:[%s1 + $0x98] sm:$0xff]
  %v76 = vld [vmem:[%s1 + $0xa0] sm:$0xff]
  %v77 = vld [vmem:[%s1 + $0xa8] sm:$0xff]
  %v78 = vld [vmem:[%s1 + $0xb0] sm:$0xff]
  %v79 = vld [vmem:[%s1 + $0xb8] sm:$0xff]
  %v80 = vld [vmem:[%s1 + $0xc0] sm:$0xff]
  %v81 = vld [vmem:[%s1 + $0xc8] sm:$0xff]
  %v82 = vld [vmem:[%s1 + $0xd0] sm:$0xff]
  %v83 = vld [vmem:[%s1 + $0xd8] sm:$0xff]
  %v84 = vld [vmem:[%s1 + $0xe0] sm:$0xff]
  %v85 = vld [vmem:[%s1 + $0xe8] sm:$0xff]
  %v86 = vld [vmem:[%s1 + $0xf0] sm:$0xff]
  %v87 = vld [vmem:[%s1 + $0xf8] sm:$0xff]
  %v88 = vld [vmem:[%s1 + $0x100] sm:$0xff]
  %v89 = vld [vmem:[%s1 + $0x108] sm:$0xff]
  %v90 = vld [vmem:[%s1 + $0x110] sm:$0xff]
  %v91 = vld [vmem:[%s1 + $0x118] sm:$0xff]
  %v92 = vld [vmem:[%s1 + $0x120] sm:$0xff]
  %v93 = vld [vmem:[%s1 + $0x128] sm:$0xff]
  %v94 = vld [vmem:[%s1 + $0x130] sm:$0xff]
  %v95 = vld [vmem:[%s1 + $0x138] sm:$0xff]
  %v96 = vld [vmem:[%s1 + $0x140] sm:$0xff]
  %v97 = vld [vmem:[%s1 + $0x148] sm:$0xff]
  %v98 = vld [vmem:[%s1 + $0x150] sm:$0xff]
  %v99 = vld [vmem:[%s1 + $0x158] sm:$0xff]
  %v100 = vld [vmem:[%s1 + $0x160] sm:$0xff]
  %v101 = vld [vmem:[%s1 + $0x168] sm:$0xff]
  %v102 = vld [vmem:[%s1 + $0x170] sm:$0xff]
  %v103 = vld [vmem:[%s1 + $0x178] sm:$0xff]
  %v104 = vld [vmem:[%s1 + $0x180] sm:$0xff]
  %v105 = vld [vmem:[%s1 + $0x188] sm:$0xff]
  %v106 = vld [vmem:[%s1 + $0x190] sm:$0xff]
  %v107 = vld [vmem:[%s1 + $0x198] sm:$0xff]
  %v108 = vld [vmem:[%s1 + $0x1a0] sm:$0xff]
  %v109 = vld [vmem:[%s1 + $0x1a8] sm:$0xff]
  %v110 = vld [vmem:[%s1 + $0x1b0] sm:$0xff]
  %v111 = vld [vmem:[%s1 + $0x1b8] sm:$0xff]
  %v112 = vld [vmem:[%s1 + $0x1c0] sm:$0xff]
  %v113 = vld [vmem:[%s1 + $0x1c8] sm:$0xff]
  %v114 = vld [vmem:[%s1 + $0x1d0] sm:$0xff]
  %v115 = vld [vmem:[%s1 + $0x1d8] sm:$0xff]
  %v116 = vld [vmem:[%s1 + $0x1e0] sm:$0xff]
  %v117 = vld [vmem:[%s1 + $0x1e8] sm:$0xff]
  %v118 = vld [vmem:[%s1 + $0x1f0] sm:$0xff]
  %v119 = vld [vmem:[%s1 + $0x1f8] sm:$0xff]
  %v120 = vld [vmem:[%s1 + $0x200] sm:$0xff]
  %v121 = vld [vmem:[%s1 + $0x208] sm:$0xff]
  %v122 = vld [vmem:[%s1 + $0x210] sm:$0xff]
  %v123 = vld [vmem:[%s1 + $0x218] sm:$0xff]
  %v124 = vld [vmem:[%s1 + $0x220] sm:$0xff]
  %v125 = vld [vmem:[%s1 + $0x228] sm:$0xff]
  %v126 = vld [vmem:[%s1 + $0x230] sm:$0xff]
  %v127 = vld [vmem:[%s1 + $0x238] sm:$0xff]
  %v128 = vld [vmem:[%s1 + $0x240] sm:$0xff]
  %v129 = vld [vmem:[%s1 + $0x248] sm:$0xff]
  %v130 = vld [vmem:[%s1 + $0x250] sm:$0xff]
  %v131 = vld [vmem:[%s1 + $0x258] sm:$0xff]
  %v132 = vld [vmem:[%s1 + $0x260] sm:$0xff]
  %v133 = vld [vmem:[%s1 + $0x268] sm:$0xff]
  %v134 = vld [vmem:[%s1 + $0x270] sm:$0xff]
  %v135 = vld [vmem:[%s1 + $0x278] sm:$0xff]
  %v136 = vld [vmem:[%s1 + $0x280] sm:$0xff]
  %v137 = vld [vmem:[%s1 + $0x288] sm:$0xff]
  %v138 = vld [vmem:[%s1 + $0x290] sm:$0xff]
  %v139 = vld [vmem:[%s1 + $0x298] sm:$0xff]
  %v140 = vld [vmem:[%s1 + $0x2a0] sm:$0xff]
  %v141 = vld [vmem:[%s1 + $0x2a8] sm:$0xff]
  %v142 = vld [vmem:[%s1 + $0x2b0] sm:$0xff]
  %v143 = vld [vmem:[%s1 + $0x2b8] sm:$0xff]
  %v144 = vld [vmem:[%s1 + $0x2c0] sm:$0xff]
  %v145 = vld [vmem:[%s1 + $0x2c8] sm:$0xff]
  %v146 = vld [vmem:[%s1 + $0x2d0] sm:$0xff]
  %v147 = vld [vmem:[%s1 + $0x2d8] sm:$0xff]
  %v148 = vld [vmem:[%s1 + $0x2e0] sm:$0xff]
  %v149 = vld [vmem:[%s1 + $0x2e8] sm:$0xff]
  %v150 = vld [vmem:[%s1 + $0x2f0] sm:$0xff]
  %v151 = vld [vmem:[%s1 + $0x2f8] sm:$0xff]
  %v152 = vld [vmem:[%s1 + $0x300] sm:$0xff]
  %v153 = vld [vmem:[%s1 + $0x308] sm:$0xff]
  %v154 = vld [vmem:[%s1 + $0x310] sm:$0xff]
  %v155 = vld [vmem:[%s1 + $0x318] sm:$0xff]
  %v156 = vld [vmem:[%s1 + $0x320] sm:$0xff]
  %v157 = vld [vmem:[%s1 + $0x328] sm:$0xff]
  %v158 = vld [vmem:[%s1 + $0x330] sm:$0xff]
  %v159 = vld [vmem:[%s1 + $0x338] sm:$0xff]
  %v160 = vld [vmem:[%s1 + $0x340] sm:$0xff]
  %v161 = vld [vmem:[%s1 + $0x348] sm:$0xff]
  %v162 = vld [vmem:[%s1 + $0x350] sm:$0xff]
  %v163 = vld [vmem:[%s1 + $0x358] sm:$0xff]
  %v164 = vld [vmem:[%s1 + $0x360] sm:$0xff]
  %v165 = vld [vmem:[%s1 + $0x368] sm:$0xff]
  %v166 = vld [vmem:[%s1 + $0x370] sm:$0xff]
  %v167 = vld [vmem:[%s1 + $0x378] sm:$0xff]
  %v168 = vld [vmem:[%s1 + $0x380] sm:$0xff]
  %v169 = vld [vmem:[%s1 + $0x388] sm:$0xff]
  %v170 = vld [vmem:[%s1 + $0x390] sm:$0xff]
  %v171 = vld [vmem:[%s1 + $0x398] sm:$0xff]
  %v172 = vld [vmem:[%s1 + $0x3a0] sm:$0xff]
  %v173 = vld [vmem:[%s1 + $0x3a8] sm:$0xff]
  %v174 = vld [vmem:[%s1 + $0x3b0] sm:$0xff]
  %v175 = vld [vmem:[%s1 + $0x3b8] sm:$0xff]
  %v176 = vld [vmem:[%s1 + $0x3c0] sm:$0xff]
  %v177 = vld [vmem:[%s1 + $0x3c8] sm:$0xff]
  %v178 = vld [vmem:[%s1 + $0x3d0] sm:$0xff]
  %v179 = vld [vmem:[%s1 + $0x3d8] sm:$0xff]
  %v180 = vld [vmem:[%s1 + $0x3e0] sm:$0xff]
  %v181 = vld [vmem:[%s1 + $0x3e8] sm:$0xff]
  %v182 = vld [vmem:[%s1 + $0x3f0] sm:$0xff]
  %v183 = vld [vmem:[%s1 + $0x3f8] sm:$0xff]
  %v184 = vld [vmem:[%s1 + $0x400] sm:$0xff]
  %v185 = vld [vmem:[%s1 + $0x408] sm:$0xff]
  %v186 = vld [vmem:[%s1 + $0x410] sm:$0xff]
  %v187 = vld [vmem:[%s1 + $0x418] sm:$0xff]
  %v188 = vld [vmem:[%s1 + $0x420] sm:$0xff]
  %v189 = vld [vmem:[%s1 + $0x428] sm:$0xff]
  %v190 = vld [vmem:[%s1 + $0x430] sm:$0xff]
  %v191 = vld [vmem:[%s1 + $0x438] sm:$0xff]
  %v192 = vld [vmem:[%s1 + $0x440] sm:$0xff]
  %v193 = vld [vmem:[%s1 + $0x448] sm:$0xff]
  %v194 = vld [vmem:[%s1 + $0x450] sm:$0xff]
  %v195 = vld [vmem:[%s1 + $0x458] sm:$0xff]
  %v196 = vld [vmem:[%s1 + $0x460] sm:$0xff]
  %v197 = vld [vmem:[%s1 + $0x468] sm:$0xff]
  %v198 = vld [vmem:[%s1 + $0x470] sm:$0xff]
  %v199 = vld [vmem:[%s1 + $0x478] sm:$0xff]
  %v200 = vld [vmem:[%s1 + $0x480] sm:$0xff]
  %v201 = vld [vmem:[%s1 + $0x488] sm:$0xff]
  %v202 = vld [vmem:[%s1 + $0x490] sm:$0xff]
  %v203 = vld [vmem:[%s1 + $0x498] sm:$0xff]
  %v204 = vld [vmem:[%s1 + $0x4a0] sm:$0xff]
  %v205 = vld [vmem:[%s1 + $0x4a8] sm:$0xff]
  %v206 = vld [vmem:[%s1 + $0x4b0] sm:$0xff]
  %v207 = vld [vmem:[%s1 + $0x4b8] sm:$0xff]
  %v208 = vld [vmem:[%s1 + $0x4c0] sm:$0xff]
  %v209 = vld [vmem:[%s1 + $0x4c8] sm:$0xff]
  %v210 = vld [vmem:[%s1 + $0x4d0] sm:$0xff]
  %v211 = vld [vmem:[%s1 + $0x4d8] sm:$0xff]
  %v212 = vld [vmem:[%s1 + $0x4e0] sm:$0xff]
  %v213 = vld [vmem:[%s1 + $0x4e8] sm:$0xff]
  %v214 = vld [vmem:[%s1 + $0x4f0] sm:$0xff]
  %v215 = vld [vmem:[%s1 + $0x4f8] sm:$0xff]
  %v216 = vld [vmem:[%s1 + $0x500] sm:$0xff]
  %v217 = vld [vmem:[%s1 + $0x508] sm:$0xff]
  %v218 = vld [vmem:[%s1 + $0x510] sm:$0xff]
  %v219 = vld [vmem:[%s1 + $0x518] sm:$0xff]
  %v220 = vld [vmem:[%s1 + $0x520] sm:$0xff]
  %v221 = vld [vmem:[%s1 + $0x528] sm:$0xff]
  %v222 = vld [vmem:[%s1 + $0x530] sm:$0xff]
  %v223 = vld [vmem:[%s1 + $0x538] sm:$0xff]
  %v224 = vld [vmem:[%s1 + $0x540] sm:$0xff]
  %v225 = vld [vmem:[%s1 + $0x548] sm:$0xff]
  %v226 = vld [vmem:[%s1 + $0x550] sm:$0xff]
  %v227 = vld [vmem:[%s1 + $0x558] sm:$0xff]
  %v228 = vld [vmem:[%s1 + $0x560] sm:$0xff]
  %v229 = vld [vmem:[%s1 + $0x568] sm:$0xff]
  %v230 = vld [vmem:[%s1 + $0x570] sm:$0xff]
  %v231 = vld [vmem:[%s1 + $0x578] sm:$0xff]
  %v232 = vld [vmem:[%s1 + $0x580] sm:$0xff]
  %v233 = vld [vmem:[%s1 + $0x588] sm:$0xff]
  %v234 = vld [vmem:[%s1 + $0x590] sm:$0xff]
  %v235 = vld [vmem:[%s1 + $0x598] sm:$0xff]
  %v236 = vld [vmem:[%s1 + $0x5a0] sm:$0xff]
  %v237 = vld [vmem:[%s1 + $0x5a8] sm:$0xff]
  %v238 = vld [vmem:[%s1 + $0x5b0] sm:$0xff]
  %v239 = vld [vmem:[%s1 + $0x5b8] sm:$0xff]
  %v240 = vld [vmem:[%s1 + $0x5c0] sm:$0xff]
  %v241 = vld [vmem:[%s1 + $0x5c8] sm:$0xff]
  %v242 = vld [vmem:[%s1 + $0x5d0] sm:$0xff]
  %v243 = vld [vmem:[%s1 + $0x5d8] sm:$0xff]
  %v244 = vld [vmem:[%s1 + $0x5e0] sm:$0xff]
  %v245 = vld [vmem:[%s1 + $0x5e8] sm:$0xff]
  %v246 = vld [vmem:[%s1 + $0x5f0] sm:$0xff]
  %v247 = vld [vmem:[%s1 + $0x5f8] sm:$0xff]
  %v248 = vld [vmem:[%s1 + $0x600] sm:$0xff]
  %v249 = vld [vmem:[%s1 + $0x608] sm:$0xff]
  %v250 = vld [vmem:[%s1 + $0x610] sm:$0xff]
  %v251 = vld [vmem:[%s1 + $0x618] sm:$0xff]
  %v252 = vld [vmem:[%s1 + $0x620] sm:$0xff]
  %v253 = vld [vmem:[%s1 + $0x628] sm:$0xff]
  %v254 = vld [vmem:[%s1 + $0x630] sm:$0xff]
  %v255 = vld [vmem:[%s1 + $0x638] sm:$0xff]
  %v256 = vld [vmem:[%s1 + $0x640] sm:$0xff]
  %v257 = vld [vmem:[%s1 + $0x648] sm:$0xff]
  %v258 = vld [vmem:[%s1 + $0x650] sm:$0xff]
  %v259 = vld [vmem:[%s1 + $0x658] sm:$0xff]
  %v260 = vld [vmem:[%s1 + $0x660] sm:$0xff]
  %v261 = vld [vmem:[%s1 + $0x668] sm:$0xff]
  %v262 = vld [vmem:[%s1 + $0x670] sm:$0xff]
  %v263 = vld [vmem:[%s1 + $0x678] sm:$0xff]
  %v264 = vld [vmem:[%s1 + $0x680] sm:$0xff]
  %v265 = vld [vmem:[%s1 + $0x688] sm:$0xff]
  %v266 = vld [vmem:[%s1 + $0x690] sm:$0xff]
  %v267 = vld [vmem:[%s1 + $0x698] sm:$0xff]
  %v268 = vld [vmem:[%s1 + $0x6a0] sm:$0xff]
  %v269 = vld [vmem:[%s1 + $0x6a8] sm:$0xff]
  %v270 = vld [vmem:[%s1 + $0x6b0] sm:$0xff]
  %v271 = vld [vmem:[%s1 + $0x6b8] sm:$0xff]
  %v272 = vld [vmem:[%s1 + $0x6c0] sm:$0xff]
  %v273 = vld [vmem:[%s1 + $0x6c8] sm:$0xff]
  %v274 = vld [vmem:[%s1 + $0x6d0] sm:$0xff]
  %v275 = vld [vmem:[%s1 + $0x6d8] sm:$0xff]
  %v276 = vld [vmem:[%s1 + $0x6e0] sm:$0xff]
  %v277 = vld [vmem:[%s1 + $0x6e8] sm:$0xff]
  %v278 = vld [vmem:[%s1 + $0x6f0] sm:$0xff]
  %v279 = vld [vmem:[%s1 + $0x6f8] sm:$0xff]
  %v280 = vld [vmem:[%s1 + $0x700] sm:$0xff]
  %v281 = vld [vmem:[%s1 + $0x708] sm:$0xff]
  %v282 = vld [vmem:[%s1 + $0x710] sm:$0xff]
  %v283 = vld [vmem:[%s1 + $0x718] sm:$0xff]
  %v284 = vld [vmem:[%s1 + $0x720] sm:$0xff]
  %v285 = vld [vmem:[%s1 + $0x728] sm:$0xff]
  %v286 = vld [vmem:[%s1 + $0x730] sm:$0xff]
  %v287 = vld [vmem:[%s1 + $0x738] sm:$0xff]
  %v288 = vld [vmem:[%s1 + $0x740] sm:$0xff]
  %v289 = vld [vmem:[%s1 + $0x748] sm:$0xff]
  %v290 = vld [vmem:[%s1 + $0x750] sm:$0xff]
  %v291 = vld [vmem:[%s1 + $0x758] sm:$0xff]
  %v292 = vld [vmem:[%s1 + $0x760] sm:$0xff]
  %v293 = vld [vmem:[%s1 + $0x768] sm:$0xff]
  %v294 = vld [vmem:[%s1 + $0x770] sm:$0xff]
  %v295 = vld [vmem:[%s1 + $0x778] sm:$0xff]
  %v296 = vld [vmem:[%s1 + $0x780] sm:$0xff]
  %v297 = vld [vmem:[%s1 + $0x788] sm:$0xff]
  %v298 = vld [vmem:[%s1 + $0x790] sm:$0xff]
  %v299 = vld [vmem:[%s1 + $0x798] sm:$0xff]
  %v300 = vld [vmem:[%s1 + $0x7a0] sm:$0xff]
  %v301 = vld [vmem:[%s1 + $0x7a8] sm:$0xff]
  %v302 = vld [vmem:[%s1 + $0x7b0] sm:$0xff]
  %v303 = vld [vmem:[%s1 + $0x7b8] sm:$0xff]
  %v304 = vld [vmem:[%s1 + $0x7c0] sm:$0xff]
  %v305 = vld [vmem:[%s1 + $0x7c8] sm:$0xff]
  %v306 = vld [vmem:[%s1 + $0x7d0] sm:$0xff]
  %v307 = vld [vmem:[%s1 + $0x7d8] sm:$0xff]
  %v308 = vld [vmem:[%s1 + $0x7e0] sm:$0xff]
  %v309 = vld [vmem:[%s1 + $0x7e8] sm:$0xff]
  %v310 = vld [vmem:[%s1 + $0x7f0] sm:$0xff]
  %v311 = vld [vmem:[%s1 + $0x7f8] sm:$0xff]
  %v312 = vld [vmem:[%s1 + $0x800] sm:$0xff]
  %v313 = vld [vmem:[%s1 + $0x808] sm:$0xff]
  %v314 = vld [vmem:[%s1 + $0x810] sm:$0xff]
  %v315 = vld [vmem:[%s1 + $0x818] sm:$0xff]
  %v316 = vld [vmem:[%s1 + $0x820] sm:$0xff]
  %v317 = vld [vmem:[%s1 + $0x828] sm:$0xff]
  %v318 = vld [vmem:[%s1 + $0x830] sm:$0xff]
  %v319 = vld [vmem:[%s1 + $0x838] sm:$0xff]
  %v320 = vld [vmem:[%s1 + $0x840] sm:$0xff]
  %v321 = vld [vmem:[%s1 + $0x848] sm:$0xff]
  %v322 = vld [vmem:[%s1 + $0x850] sm:$0xff]
  %v323 = vld [vmem:[%s1 + $0x858] sm:$0xff]
  %v324 = vld [vmem:[%s1 + $0x860] sm:$0xff]
  %v325 = vld [vmem:[%s1 + $0x868] sm:$0xff]
  %v326 = vld [vmem:[%s1 + $0x870] sm:$0xff]
  %v327 = vld [vmem:[%s1 + $0x878] sm:$0xff]
  %v328 = vld [vmem:[%s1 + $0x880] sm:$0xff]
  %v329 = vld [vmem:[%s1 + $0x888] sm:$0xff]
  %v330 = vld [vmem:[%s1 + $0x890] sm:$0xff]
  %v331 = vld [vmem:[%s1 + $0x898] sm:$0xff]
  %v332 = vld [vmem:[%s1 + $0x8a0] sm:$0xff]
  %v333 = vld [vmem:[%s1 + $0x8a8] sm:$0xff]
  %v334 = vld [vmem:[%s1 + $0x8b0] sm:$0xff]
  %v335 = vld [vmem:[%s1 + $0x8b8] sm:$0xff]
  %v336 = vld [vmem:[%s1 + $0x8c0] sm:$0xff]
  %v337 = vld [vmem:[%s1 + $0x8c8] sm:$0xff]
  %v338 = vld [vmem:[%s1 + $0x8d0] sm:$0xff]
  %v339 = vld [vmem:[%s1 + $0x8d8] sm:$0xff]
  %v340 = vld [vmem:[%s1 + $0x8e0] sm:$0xff]
  %v341 = vld [vmem:[%s1 + $0x8e8] sm:$0xff]
  %v342 = vld [vmem:[%s1 + $0x8f0] sm:$0xff]
  %v343 = vld [vmem:[%s1 + $0x8f8] sm:$0xff]
  %v344 = vld [vmem:[%s1 + $0x900] sm:$0xff]
  %v345 = vld [vmem:[%s1 + $0x908] sm:$0xff]
  %v346 = vld [vmem:[%s1 + $0x910] sm:$0xff]
  %v347 = vld [vmem:[%s1 + $0x918] sm:$0xff]
  %v348 = vld [vmem:[%s1 + $0x920] sm:$0xff]
  %v349 = vld [vmem:[%s1 + $0x928] sm:$0xff]
  %v350 = vld [vmem:[%s1 + $0x930] sm:$0xff]
  %v351 = vld [vmem:[%s1 + $0x938] sm:$0xff]
  %v352 = vld [vmem:[%s1 + $0x940] sm:$0xff]
  %v353 = vld [vmem:[%s1 + $0x948] sm:$0xff]
  %v354 = vld [vmem:[%s1 + $0x950] sm:$0xff]
  %v355 = vld [vmem:[%s1 + $0x958] sm:$0xff]
  %v356 = vld [vmem:[%s1 + $0x960] sm:$0xff]
  %v357 = vld [vmem:[%s1 + $0x968] sm:$0xff]
  %v358 = vld [vmem:[%s1 + $0x970] sm:$0xff]
  %v359 = vld [vmem:[%s1 + $0x978] sm:$0xff]
  %v360 = vld [vmem:[%s1 + $0x980] sm:$0xff]
  %v361 = vld [vmem:[%s1 + $0x988] sm:$0xff]
  %v362 = vld [vmem:[%s1 + $0x990] sm:$0xff]
  %v363 = vld [vmem:[%s1 + $0x998] sm:$0xff]
  %v364 = vld [vmem:[%s1 + $0x9a0] sm:$0xff]
  %v365 = vld [vmem:[%s1 + $0x9a8] sm:$0xff]
  %v366 = vld [vmem:[%s1 + $0x9b0] sm:$0xff]
  %v367 = vld [vmem:[%s1 + $0x9b8] sm:$0xff]
  %v368 = vld [vmem:[%s1 + $0x9c0] sm:$0xff]
  %v369 = vld [vmem:[%s1 + $0x9c8] sm:$0xff]
  %v370 = vld [vmem:[%s1 + $0x9d0] sm:$0xff]
  %v371 = vld [vmem:[%s1 + $0x9d8] sm:$0xff]
  %v372 = vld [vmem:[%s1 + $0x9e0] sm:$0xff]
  %v373 = vld [vmem:[%s1 + $0x9e8] sm:$0xff]
  %v374 = vld [vmem:[%s1 + $0x9f0] sm:$0xff]
  %v375 = vld [vmem:[%s1 + $0x9f8] sm:$0xff]
  %v376 = vld [vmem:[%s1 + $0xa00] sm:$0xff]
  %v377 = vld [vmem:[%s1 + $0xa08] sm:$0xff]
  %v378 = vld [vmem:[%s1 + $0xa10] sm:$0xff]
  %v379 = vld [vmem:[%s1 + $0xa18] sm:$0xff]
  %v380 = vld [vmem:[%s1 + $0xa20] sm:$0xff]
  %v381 = vld [vmem:[%s1 + $0xa28] sm:$0xff]
  %v382 = vld [vmem:[%s1 + $0xa30] sm:$0xff]
  %v383 = vld [vmem:[%s1 + $0xa38] sm:$0xff]
  %v384 = vld [vmem:[%s1 + $0xa40] sm:$0xff]
  %v385 = vld [vmem:[%s1 + $0xa48] sm:$0xff]
  %v386 = vld [vmem:[%s1 + $0xa50] sm:$0xff]
  %v387 = vld [vmem:[%s1 + $0xa58] sm:$0xff]
  %v388 = vld [vmem:[%s1 + $0xa60] sm:$0xff]
  %v389 = vld [vmem:[%s1 + $0xa68] sm:$0xff]
  %v390 = vld [vmem:[%s1 + $0xa70] sm:$0xff]
  %v391 = vld [vmem:[%s1 + $0xa78] sm:$0xff]
  %v392 = vld [vmem:[%s1 + $0xa80] sm:$0xff]
  %v393 = vld [vmem:[%s1 + $0xa88] sm:$0xff]
  %v394 = vld [vmem:[%s1 + $0xa90] sm:$0xff]
  %v395 = vld [vmem:[%s1 + $0xa98] sm:$0xff]
  %v396 = vld [vmem:[%s1 + $0xaa0] sm:$0xff]
  %v397 = vld [vmem:[%s1 + $0xaa8] sm:$0xff]
  %v398 = vld [vmem:[%s1 + $0xab0] sm:$0xff]
  %v399 = vld [vmem:[%s1 + $0xab8] sm:$0xff]
  %v400 = vld [vmem:[%s1 + $0xac0] sm:$0xff]
  %v401 = vld [vmem:[%s1 + $0xac8] sm:$0xff]
  %v402 = vld [vmem:[%s1 + $0xad0] sm:$0xff]
  %v403 = vld [vmem:[%s1 + $0xad8] sm:$0xff]
  %v404 = vld [vmem:[%s1 + $0xae0] sm:$0xff]
  %v405 = vld [vmem:[%s1 + $0xae8] sm:$0xff]
  %v406 = vld [vmem:[%s1 + $0xaf0] sm:$0xff]
  %v407 = vld [vmem:[%s1 + $0xaf8] sm:$0xff]
  %v408 = vld [vmem:[%s1 + $0xb00] sm:$0xff]
  %v409 = vld [vmem:[%s1 + $0xb08] sm:$0xff]
  %v410 = vld [vmem:[%s1 + $0xb10] sm:$0xff]
  %v411 = vld [vmem:[%s1 + $0xb18] sm:$0xff]
  %v412 = vld [vmem:[%s1 + $0xb20] sm:$0xff]
  %v413 = vld [vmem:[%s1 + $0xb28] sm:$0xff]
  %v414 = vld [vmem:[%s1 + $0xb30] sm:$0xff]
  %v415 = vld [vmem:[%s1 + $0xb38] sm:$0xff]
  %v416 = vld [vmem:[%s1 + $0xb40] sm:$0xff]
  %v417 = vld [vmem:[%s1 + $0xb48] sm:$0xff]
  %v418 = vld [vmem:[%s1 + $0xb50] sm:$0xff]
  %v419 = vld [vmem:[%s1 + $0xb58] sm:$0xff]
  %v420 = vld [vmem:[%s1 + $0xb60] sm:$0xff]
  %v421 = vld [vmem:[%s1 + $0xb68] sm:$0xff]
  %v422 = vld [vmem:[%s1 + $0xb70] sm:$0xff]
  %v423 = vld [vmem:[%s1 + $0xb78] sm:$0xff]
  %v424 = vld [vmem:[%s1 + $0xb80] sm:$0xff]
  %v425 = vld [vmem:[%s1 + $0xb88] sm:$0xff]
  %v426 = vld [vmem:[%s1 + $0xb90] sm:$0xff]
  %v427 = vld [vmem:[%s1 + $0xb98] sm:$0xff]
  %v428 = vld [vmem:[%s1 + $0xba0] sm:$0xff]
  %v429 = vld [vmem:[%s1 + $0xba8] sm:$0xff]
  %v430 = vld [vmem:[%s1 + $0xbb0] sm:$0xff]
  %v431 = vld [vmem:[%s1 + $0xbb8] sm:$0xff]
  %v432 = vld [vmem:[%s1 + $0xbc0] sm:$0xff]
  %v433 = vld [vmem:[%s1 + $0xbc8] sm:$0xff]
  %v434 = vld [vmem:[%s1 + $0xbd0] sm:$0xff]
  %v435 = vld [vmem:[%s1 + $0xbd8] sm:$0xff]
  %v436 = vld [vmem:[%s1 + $0xbe0] sm:$0xff]
  %v437 = vld [vmem:[%s1 + $0xbe8] sm:$0xff]
  %v438 = vld [vmem:[%s1 + $0xbf0] sm:$0xff]
  %v439 = vld [vmem:[%s1 + $0xbf8] sm:$0xff]
  %v440 = vld [vmem:[%s1 + $0xc00] sm:$0xff]
  %v441 = vld [vmem:[%s1 + $0xc08] sm:$0xff]
  %v442 = vld [vmem:[%s1 + $0xc10] sm:$0xff]
  %v443 = vld [vmem:[%s1 + $0xc18] sm:$0xff]
  %v444 = vld [vmem:[%s1 + $0xc20] sm:$0xff]
  %v445 = vld [vmem:[%s1 + $0xc28] sm:$0xff]
  %v446 = vld [vmem:[%s1 + $0xc30] sm:$0xff]
  %v447 = vld [vmem:[%s1 + $0xc38] sm:$0xff]
  %v448 = vld [vmem:[%s1 + $0xc40] sm:$0xff]
  %v449 = vld [vmem:[%s1 + $0xc48] sm:$0xff]
  %v450 = vld [vmem:[%s1 + $0xc50] sm:$0xff]
  %v451 = vld [vmem:[%s1 + $0xc58] sm:$0xff]
  %v452 = vld [vmem:[%s1 + $0xc60] sm:$0xff]
  %v453 = vld [vmem:[%s1 + $0xc68] sm:$0xff]
  %v454 = vld [vmem:[%s1 + $0xc70] sm:$0xff]
  %v455 = vld [vmem:[%s1 + $0xc78] sm:$0xff]
  %v456 = vld [vmem:[%s1 + $0xc80] sm:$0xff]
  %v457 = vld [vmem:[%s1 + $0xc88] sm:$0xff]
  %v458 = vld [vmem:[%s1 + $0xc90] sm:$0xff]
  %v459 = vld [vmem:[%s1 + $0xc98] sm:$0xff]
  %v460 = vld [vmem:[%s1 + $0xca0] sm:$0xff]
  %v461 = vld [vmem:[%s1 + $0xca8] sm:$0xff]
  %v462 = vld [vmem:[%s1 + $0xcb0] sm:$0xff]
  %v463 = vld [vmem:[%s1 + $0xcb8] sm:$0xff]
  %v464 = vld [vmem:[%s1 + $0xcc0] sm:$0xff]
  %v465 = vld [vmem:[%s1 + $0xcc8] sm:$0xff]
  %v466 = vld [vmem:[%s1 + $0xcd0] sm:$0xff]
  %v467 = vld [vmem:[%s1 + $0xcd8] sm:$0xff]
  %v468 = vld [vmem:[%s1 + $0xce0] sm:$0xff]
  %v469 = vld [vmem:[%s1 + $0xce8] sm:$0xff]
  %v470 = vld [vmem:[%s1 + $0xcf0] sm:$0xff]
  %v471 = vld [vmem:[%s1 + $0xcf8] sm:$0xff]
  %v472 = vld [vmem:[%s1 + $0xd00] sm:$0xff]
  %v473 = vld [vmem:[%s1 + $0xd08] sm:$0xff]
  %v474 = vld [vmem:[%s1 + $0xd10] sm:$0xff]
  %v475 = vld [vmem:[%s1 + $0xd18] sm:$0xff]
  %v476 = vld [vmem:[%s1 + $0xd20] sm:$0xff]
  %v477 = vld [vmem:[%s1 + $0xd28] sm:$0xff]
  %v478 = vld [vmem:[%s1 + $0xd30] sm:$0xff]
  %v479 = vld [vmem:[%s1 + $0xd38] sm:$0xff]
  %v480 = vld [vmem:[%s1 + $0xd40] sm:$0xff]
  %v481 = vld [vmem:[%s1 + $0xd48] sm:$0xff]
  %v482 = vld [vmem:[%s1 + $0xd50] sm:$0xff]
  %v483 = vld [vmem:[%s1 + $0xd58] sm:$0xff]
  %v484 = vld [vmem:[%s1 + $0xd60] sm:$0xff]
  %v485 = vld [vmem:[%s1 + $0xd68] sm:$0xff]
  %v486 = vld [vmem:[%s1 + $0xd70] sm:$0xff]
  %v487 = vld [vmem:[%s1 + $0xd78] sm:$0xff]
  %v488 = vld [vmem:[%s1 + $0xd80] sm:$0xff]
  %v489 = vld [vmem:[%s1 + $0xd88] sm:$0xff]
  %v490 = vld [vmem:[%s1 + $0xd90] sm:$0xff]
  %v491 = vld [vmem:[%s1 + $0xd98] sm:$0xff]
  %v492 = vld [vmem:[%s1 + $0xda0] sm:$0xff]
  %v493 = vld [vmem:[%s1 + $0xda8] sm:$0xff]
  %v494 = vld [vmem:[%s1 + $0xdb0] sm:$0xff]
  %v495 = vld [vmem:[%s1 + $0xdb8] sm:$0xff]
  %v496 = vld [vmem:[%s1 + $0xdc0] sm:$0xff]
  %v497 = vld [vmem:[%s1 + $0xdc8] sm:$0xff]
  %v498 = vld [vmem:[%s1 + $0xdd0] sm:$0xff]
  %v499 = vld [vmem:[%s1 + $0xdd8] sm:$0xff]
  %v500 = vld [vmem:[%s1 + $0xde0] sm:$0xff]
  %v501 = vld [vmem:[%s1 + $0xde8] sm:$0xff]
  %v502 = vld [vmem:[%s1 + $0xdf0] sm:$0xff]
  %v503 = vld [vmem:[%s1 + $0xdf8] sm:$0xff]
  %v504 = vld [vmem:[%s1 + $0xe00] sm:$0xff]
  %v505 = vld [vmem:[%s1 + $0xe08] sm:$0xff]
  %v506 = vld [vmem:[%s1 + $0xe10] sm:$0xff]
  %v507 = vld [vmem:[%s1 + $0xe18] sm:$0xff]
  %v508 = vld [vmem:[%s1 + $0xe20] sm:$0xff]
  %v509 = vld [vmem:[%s1 + $0xe28] sm:$0xff]
  %v510 = vld [vmem:[%s1 + $0xe30] sm:$0xff]
  %v511 = vld [vmem:[%s1 + $0xe38] sm:$0xff]
  %v512 = vld [vmem:[%s1 + $0xe40] sm:$0xff]
  %v513 = vld [vmem:[%s1 + $0xe48] sm:$0xff]
  %v514 = vld [vmem:[%s1 + $0xe50] sm:$0xff]
  %v515 = vld [vmem:[%s1 + $0xe58] sm:$0xff]
  %v516 = vld [vmem:[%s1 + $0xe60] sm:$0xff]
  %v517 = vld [vmem:[%s1 + $0xe68] sm:$0xff]
  %v518 = vld [vmem:[%s1 + $0xe70] sm:$0xff]
  %v519 = vld [vmem:[%s1 + $0xe78] sm:$0xff]
  %v520 = vld [vmem:[%s1 + $0xe80] sm:$0xff]
  %v521 = vld [vmem:[%s1 + $0xe88] sm:$0xff]
  %v522 = vld [vmem:[%s1 + $0xe90] sm:$0xff]
  %v523 = vld [vmem:[%s1 + $0xe98] sm:$0xff]
  %v524 = vld [vmem:[%s1 + $0xea0] sm:$0xff]
  %v525 = vld [vmem:[%s1 + $0xea8] sm:$0xff]
  %v526 = vld [vmem:[%s1 + $0xeb0] sm:$0xff]
  %v527 = vld [vmem:[%s1 + $0xeb8] sm:$0xff]
  %v528 = vld [vmem:[%s1 + $0xec0] sm:$0xff]
  %v529 = vld [vmem:[%s1 + $0xec8] sm:$0xff]
  %v530 = vld [vmem:[%s1 + $0xed0] sm:$0xff]
  %v531 = vld [vmem:[%s1 + $0xed8] sm:$0xff]
  %v532 = vld [vmem:[%s1 + $0xee0] sm:$0xff]
  %v533 = vld [vmem:[%s1 + $0xee8] sm:$0xff]
  %v534 = vld [vmem:[%s1 + $0xef0] sm:$0xff]
  %v535 = vld [vmem:[%s1 + $0xef8] sm:$0xff]
  %v536 = vld [vmem:[%s1 + $0xf00] sm:$0xff]
  %v537 = vld [vmem:[%s1 + $0xf08] sm:$0xff]
  %v538 = vld [vmem:[%s1 + $0xf10] sm:$0xff]
  %v539 = vld [vmem:[%s1 + $0xf18] sm:$0xff]
  %v540 = vld [vmem:[%s1 + $0xf20] sm:$0xff]
  %v541 = vld [vmem:[%s1 + $0xf28] sm:$0xff]
  %v542 = vld [vmem:[%s1 + $0xf30] sm:$0xff]
  %v543 = vld [vmem:[%s1 + $0xf38] sm:$0xff]
  %v544 = vld [vmem:[%s1 + $0xf40] sm:$0xff]
  %v545 = vld [vmem:[%s1 + $0xf48] sm:$0xff]
  %v546 = vld [vmem:[%s1 + $0xf50] sm:$0xff]
  %v547 = vld [vmem:[%s1 + $0xf58] sm:$0xff]
  %v548 = vld [vmem:[%s1 + $0xf60] sm:$0xff]
  %v549 = vld [vmem:[%s1 + $0xf68] sm:$0xff]
  %v550 = vld [vmem:[%s1 + $0xf70] sm:$0xff]
  %v551 = vld [vmem:[%s1 + $0xf78] sm:$0xff]
  %v552 = vld [vmem:[%s1 + $0xf80] sm:$0xff]
  %v553 = vld [vmem:[%s1 + $0xf88] sm:$0xff]
  %v554 = vld [vmem:[%s1 + $0xf90] sm:$0xff]
  %v555 = vld [vmem:[%s1 + $0xf98] sm:$0xff]
  %v556 = vld [vmem:[%s1 + $0xfa0] sm:$0xff]
  %v557 = vld [vmem:[%s1 + $0xfa8] sm:$0xff]
  %v558 = vld [vmem:[%s1 + $0xfb0] sm:$0xff]
  %v559 = vld [vmem:[%s1 + $0xfb8] sm:$0xff]
  %v560 = vld [vmem:[%s1 + $0xfc0] sm:$0xff]
  %v561 = vld [vmem:[%s1 + $0xfc8] sm:$0xff]
  %v562 = vld [vmem:[%s1 + $0xfd0] sm:$0xff]
  %v563 = vld [vmem:[%s1 + $0xfd8] sm:$0xff]
  %v564 = vld [vmem:[%s1 + $0xfe0] sm:$0xff]
  %v565 = vld [vmem:[%s1 + $0xfe8] sm:$0xff]
  %v566 = vld [vmem:[%s1 + $0xff0] sm:$0xff]
  %v567 = vld [vmem:[%s1 + $0xff8] sm:$0xff]
  %v568 = vld [vmem:[%s1 + $0x1000] sm:$0xff]
  %v569 = vld [vmem:[%s1 + $0x1008] sm:$0xff]
  %v570 = vld [vmem:[%s1 + $0x1010] sm:$0xff]
  %v571 = vld [vmem:[%s1 + $0x1018] sm:$0xff]
  %v572 = vld [vmem:[%s1 + $0x1020] sm:$0xff]
  %v573 = vld [vmem:[%s1 + $0x1028] sm:$0xff]
  %v574 = vld [vmem:[%s1 + $0x1030] sm:$0xff]
  %v575 = vld [vmem:[%s1 + $0x1038] sm:$0xff]
  %v576 = vld [vmem:[%s1 + $0x1040] sm:$0xff]
  %v577 = vld [vmem:[%s1 + $0x1048] sm:$0xff]
  %v578 = vld [vmem:[%s1 + $0x1050] sm:$0xff]
  %v579 = vld [vmem:[%s1 + $0x1058] sm:$0xff]
  %v580 = vld [vmem:[%s1 + $0x1060] sm:$0xff]
  %v581 = vld [vmem:[%s1 + $0x1068] sm:$0xff]
  %v582 = vld [vmem:[%s1 + $0x1070] sm:$0xff]
  %v583 = vld [vmem:[%s1 + $0x1078] sm:$0xff]
  %v584 = vld [vmem:[%s1 + $0x1080] sm:$0xff]
  %v585 = vld [vmem:[%s1 + $0x1088] sm:$0xff]
  %v586 = vld [vmem:[%s1 + $0x1090] sm:$0xff]
  %v587 = vld [vmem:[%s1 + $0x1098] sm:$0xff]
  %v588 = vld [vmem:[%s1 + $0x10a0] sm:$0xff]
  %v589 = vld [vmem:[%s1 + $0x10a8] sm:$0xff]
  %v590 = vld [vmem:[%s1 + $0x10b0] sm:$0xff]
  %v591 = vld [vmem:[%s1 + $0x10b8] sm:$0xff]
  %v592 = vld [vmem:[%s1 + $0x10c0] sm:$0xff]
  %v593 = vld [vmem:[%s1 + $0x10c8] sm:$0xff]
  %v594 = vld [vmem:[%s1 + $0x10d0] sm:$0xff]
  %v595 = vld [vmem:[%s1 + $0x10d8] sm:$0xff]
  %v596 = vld [vmem:[%s1 + $0x10e0] sm:$0xff]
  %v597 = vld [vmem:[%s1 + $0x10e8] sm:$0xff]
  %v598 = vld [vmem:[%s1 + $0x10f0] sm:$0xff]
  %v599 = vld [vmem:[%s1 + $0x10f8] sm:$0xff]
  %v600 = vld [vmem:[%s1 + $0x1100] sm:$0xff]
  %v601 = vld [vmem:[%s1 + $0x1108] sm:$0xff]
  %v602 = vld [vmem:[%s1 + $0x1110] sm:$0xff]
  %v603 = vld [vmem:[%s1 + $0x1118] sm:$0xff]
  %v604 = vld [vmem:[%s1 + $0x1120] sm:$0xff]
  %v605 = vld [vmem:[%s1 + $0x1128] sm:$0xff]
  %v606 = vld [vmem:[%s1 + $0x1130] sm:$0xff]
  %v607 = vld [vmem:[%s1 + $0x1138] sm:$0xff]
  %v608 = vld [vmem:[%s1 + $0x1140] sm:$0xff]
  %v609 = vld [vmem:[%s1 + $0x1148] sm:$0xff]
  %v610 = vld [vmem:[%s1 + $0x1150] sm:$0xff]
  %v611 = vld [vmem:[%s1 + $0x1158] sm:$0xff]
  %v612 = vld [vmem:[%s1 + $0x1160] sm:$0xff]
  %v613 = vld [vmem:[%s1 + $0x1168] sm:$0xff]
  %v614 = vld [vmem:[%s1 + $0x1170] sm:$0xff]
  %v615 = vld [vmem:[%s1 + $0x1178] sm:$0xff]
  %v616 = vld [vmem:[%s1 + $0x1180] sm:$0xff]
  %v617 = vld [vmem:[%s1 + $0x1188] sm:$0xff]
  %v618 = vld [vmem:[%s1 + $0x1190] sm:$0xff]
  %v619 = vld [vmem:[%s1 + $0x1198] sm:$0xff]
  %v620 = vld [vmem:[%s1 + $0x11a0] sm:$0xff]
  %v621 = vld [vmem:[%s1 + $0x11a8] sm:$0xff]
  %v622 = vld [vmem:[%s1 + $0x11b0] sm:$0xff]
  %v623 = vld [vmem:[%s1 + $0x11b8] sm:$0xff]
  %v624 = vld [vmem:[%s1 + $0x11c0] sm:$0xff]
  %v625 = vld [vmem:[%s1 + $0x11c8] sm:$0xff]
  %v626 = vld [vmem:[%s1 + $0x11d0] sm:$0xff]
  %v627 = vld [vmem:[%s1 + $0x11d8] sm:$0xff]
  %v628 = vld [vmem:[%s1 + $0x11e0] sm:$0xff]
  %v629 = vld [vmem:[%s1 + $0x11e8] sm:$0xff]
  %v630 = vld [vmem:[%s1 + $0x11f0] sm:$0xff]
  %v631 = vld [vmem:[%s1 + $0x11f8] sm:$0xff]
  %v632 = vld [vmem:[%s2] sm:$0x1]
  %v634 = vperm.slane %v632, 0
  %636 = vmatpush.msra.mxu0 %v71
  %637 = vmatpush.msra.mxu0 %v70
  %638 = vmatpush.msra.mxu0 %v69
  %639 = vmatpush.msra.mxu0 %v68
  %640 = vmatpush.msra.mxu0 %v67
  %641 = vmatpush.msra.mxu0 %v66
  %642 = vmatpush.msra.mxu0 %v65
  %643 = vmatpush.msra.mxu0 %v64
  %644 = vmatpush.msra.mxu0 %v63
  %645 = vmatpush.msra.mxu0 %v62
  %646 = vmatpush.msra.mxu0 %v61
  %647 = vmatpush.msra.mxu0 %v60
  %648 = vmatpush.msra.mxu0 %v59
  %649 = vmatpush.msra.mxu0 %v58
  %650 = vmatpush.msra.mxu0 %v57
  %651 = vmatpush.msra.mxu0 %v56
  %652 = vmatmul.f32.gmra.mxu0 %v20
  %v653 = vpop.f32.mrf.mxu0
  %v654 = vadd.f32 %v634, %v653
  %655 = vdwg.mxu0
  %656 = vmatpush.msra.mxu0 %v87
  %657 = vmatpush.msra.mxu0 %v86
  %658 = vmatpush.msra.mxu0 %v85
  %659 = vmatpush.msra.mxu0 %v84
  %660 = vmatpush.msra.mxu0 %v83
  %661 = vmatpush.msra.mxu0 %v82
  %662 = vmatpush.msra.mxu0 %v81
  %663 = vmatpush.msra.mxu0 %v80
  %664 = vmatpush.msra.mxu0 %v79
  %665 = vmatpush.msra.mxu0 %v78
  %666 = vmatpush.msra.mxu0 %v77
  %667 = vmatpush.msra.mxu0 %v76
  %668 = vmatpush.msra.mxu0 %v75
  %669 = vmatpush.msra.mxu0 %v74
  %670 = vmatpush.msra.mxu0 %v73
  %671 = vmatpush.msra.mxu0 %v72
  %672 = vmatmul.f32.gmra.mxu0 %v21
  %v673 = vpop.f32.mrf.mxu0
  %v674 = vadd.f32 %v654, %v673
  %675 = vdwg.mxu0
  %676 = vmatpush.msra.mxu0 %v103
  %677 = vmatpush.msra.mxu0 %v102
  %678 = vmatpush.msra.mxu0 %v101
  %679 = vmatpush.msra.mxu0 %v100
  %680 = vmatpush.msra.mxu0 %v99
  %681 = vmatpush.msra.mxu0 %v98
  %682 = vmatpush.msra.mxu0 %v97
  %683 = vmatpush.msra.mxu0 %v96
  %684 = vmatpush.msra.mxu0 %v95
  %685 = vmatpush.msra.mxu0 %v94
  %686 = vmatpush.msra.mxu0 %v93
  %687 = vmatpush.msra.mxu0 %v92
  %688 = vmatpush.msra.mxu0 %v91
  %689 = vmatpush.msra.mxu0 %v90
  %690 = vmatpush.msra.mxu0 %v89
  %691 = vmatpush.msra.mxu0 %v88
  %692 = vmatmul.f32.gmra.mxu0 %v22
  %v693 = vpop.f32.mrf.mxu0
  %v694 = vadd.f32 %v674, %v693
  %695 = vdwg.mxu0
  %696 = vmatpush.msra.mxu0 %v119
  %697 = vmatpush.msra.mxu0 %v118
  %698 = vmatpush.msra.mxu0 %v117
  %699 = vmatpush.msra.mxu0 %v116
  %700 = vmatpush.msra.mxu0 %v115
  %701 = vmatpush.msra.mxu0 %v114
  %702 = vmatpush.msra.mxu0 %v113
  %703 = vmatpush.msra.mxu0 %v112
  %704 = vmatpush.msra.mxu0 %v111
  %705 = vmatpush.msra.mxu0 %v110
  %706 = vmatpush.msra.mxu0 %v109
  %707 = vmatpush.msra.mxu0 %v108
  %708 = vmatpush.msra.mxu0 %v107
  %709 = vmatpush.msra.mxu0 %v106
  %710 = vmatpush.msra.mxu0 %v105
  %711 = vmatpush.msra.mxu0 %v104
  %712 = vmatmul.f32.gmra.mxu0 %v23
  %v713 = vpop.f32.mrf.mxu0
  %v714 = vadd.f32 %v694, %v713
  %715 = vdwg.mxu0
  %716 = vmatpush.msra.mxu0 %v135
  %717 = vmatpush.msra.mxu0 %v134
  %718 = vmatpush.msra.mxu0 %v133
  %719 = vmatpush.msra.mxu0 %v132
  %720 = vmatpush.msra.mxu0 %v131
  %721 = vmatpush.msra.mxu0 %v130
  %722 = vmatpush.msra.mxu0 %v129
  %723 = vmatpush.msra.mxu0 %v128
  %724 = vmatpush.msra.mxu0 %v127
  %725 = vmatpush.msra.mxu0 %v126
  %726 = vmatpush.msra.mxu0 %v125
  %727 = vmatpush.msra.mxu0 %v124
  %728 = vmatpush.msra.mxu0 %v123
  %729 = vmatpush.msra.mxu0 %v122
  %730 = vmatpush.msra.mxu0 %v121
  %731 = vmatpush.msra.mxu0 %v120
  %732 = vmatmul.f32.gmra.mxu0 %v24
  %v733 = vpop.f32.mrf.mxu0
  %v734 = vadd.f32 %v714, %v733
  %735 = vdwg.mxu0
  %736 = vmatpush.msra.mxu0 %v151
  %737 = vmatpush.msra.mxu0 %v150
  %738 = vmatpush.msra.mxu0 %v149
  %739 = vmatpush.msra.mxu0 %v148
  %740 = vmatpush.msra.mxu0 %v147
  %741 = vmatpush.msra.mxu0 %v146
  %742 = vmatpush.msra.mxu0 %v145
  %743 = vmatpush.msra.mxu0 %v144
  %744 = vmatpush.msra.mxu0 %v143
  %745 = vmatpush.msra.mxu0 %v142
  %746 = vmatpush.msra.mxu0 %v141
  %747 = vmatpush.msra.mxu0 %v140
  %748 = vmatpush.msra.mxu0 %v139
  %749 = vmatpush.msra.mxu0 %v138
  %750 = vmatpush.msra.mxu0 %v137
  %751 = vmatpush.msra.mxu0 %v136
  %752 = vmatmul.f32.gmra.mxu0 %v25
  %v753 = vpop.f32.mrf.mxu0
  %v754 = vadd.f32 %v734, %v753
  %755 = vdwg.mxu0
  %756 = vmatpush.msra.mxu0 %v167
  %757 = vmatpush.msra.mxu0 %v166
  %758 = vmatpush.msra.mxu0 %v165
  %759 = vmatpush.msra.mxu0 %v164
  %760 = vmatpush.msra.mxu0 %v163
  %761 = vmatpush.msra.mxu0 %v162
  %762 = vmatpush.msra.mxu0 %v161
  %763 = vmatpush.msra.mxu0 %v160
  %764 = vmatpush.msra.mxu0 %v159
  %765 = vmatpush.msra.mxu0 %v158
  %766 = vmatpush.msra.mxu0 %v157
  %767 = vmatpush.msra.mxu0 %v156
  %768 = vmatpush.msra.mxu0 %v155
  %769 = vmatpush.msra.mxu0 %v154
  %770 = vmatpush.msra.mxu0 %v153
  %771 = vmatpush.msra.mxu0 %v152
  %772 = vmatmul.f32.gmra.mxu0 %v26
  %v773 = vpop.f32.mrf.mxu0
  %v774 = vadd.f32 %v754, %v773
  %775 = vdwg.mxu0
  %776 = vmatpush.msra.mxu0 %v183
  %777 = vmatpush.msra.mxu0 %v182
  %778 = vmatpush.msra.mxu0 %v181
  %779 = vmatpush.msra.mxu0 %v180
  %780 = vmatpush.msra.mxu0 %v179
  %781 = vmatpush.msra.mxu0 %v178
  %782 = vmatpush.msra.mxu0 %v177
  %783 = vmatpush.msra.mxu0 %v176
  %784 = vmatpush.msra.mxu0 %v175
  %785 = vmatpush.msra.mxu0 %v174
  %786 = vmatpush.msra.mxu0 %v173
  %787 = vmatpush.msra.mxu0 %v172
  %788 = vmatpush.msra.mxu0 %v171
  %789 = vmatpush.msra.mxu0 %v170
  %790 = vmatpush.msra.mxu0 %v169
  %791 = vmatpush.msra.mxu0 %v168
  %792 = vmatmul.f32.gmra.mxu0 %v27
  %v793 = vpop.f32.mrf.mxu0
  %v794 = vadd.f32 %v774, %v793
  %795 = vdwg.mxu0
  %796 = vmatpush.msra.mxu0 %v199
  %797 = vmatpush.msra.mxu0 %v198
  %798 = vmatpush.msra.mxu0 %v197
  %799 = vmatpush.msra.mxu0 %v196
  %800 = vmatpush.msra.mxu0 %v195
  %801 = vmatpush.msra.mxu0 %v194
  %802 = vmatpush.msra.mxu0 %v193
  %803 = vmatpush.msra.mxu0 %v192
  %804 = vmatpush.msra.mxu0 %v191
  %805 = vmatpush.msra.mxu0 %v190
  %806 = vmatpush.msra.mxu0 %v189
  %807 = vmatpush.msra.mxu0 %v188
  %808 = vmatpush.msra.mxu0 %v187
  %809 = vmatpush.msra.mxu0 %v186
  %810 = vmatpush.msra.mxu0 %v185
  %811 = vmatpush.msra.mxu0 %v184
  %812 = vmatmul.f32.gmra.mxu0 %v28
  %v813 = vpop.f32.mrf.mxu0
  %v814 = vadd.f32 %v794, %v813
  %815 = vdwg.mxu0
  %816 = vmatpush.msra.mxu0 %v215
  %817 = vmatpush.msra.mxu0 %v214
  %818 = vmatpush.msra.mxu0 %v213
  %819 = vmatpush.msra.mxu0 %v212
  %820 = vmatpush.msra.mxu0 %v211
  %821 = vmatpush.msra.mxu0 %v210
  %822 = vmatpush.msra.mxu0 %v209
  %823 = vmatpush.msra.mxu0 %v208
  %824 = vmatpush.msra.mxu0 %v207
  %825 = vmatpush.msra.mxu0 %v206
  %826 = vmatpush.msra.mxu0 %v205
  %827 = vmatpush.msra.mxu0 %v204
  %828 = vmatpush.msra.mxu0 %v203
  %829 = vmatpush.msra.mxu0 %v202
  %830 = vmatpush.msra.mxu0 %v201
  %831 = vmatpush.msra.mxu0 %v200
  %832 = vmatmul.f32.gmra.mxu0 %v29
  %v833 = vpop.f32.mrf.mxu0
  %v834 = vadd.f32 %v814, %v833
  %835 = vdwg.mxu0
  %836 = vmatpush.msra.mxu0 %v231
  %837 = vmatpush.msra.mxu0 %v230
  %838 = vmatpush.msra.mxu0 %v229
  %839 = vmatpush.msra.mxu0 %v228
  %840 = vmatpush.msra.mxu0 %v227
  %841 = vmatpush.msra.mxu0 %v226
  %842 = vmatpush.msra.mxu0 %v225
  %843 = vmatpush.msra.mxu0 %v224
  %844 = vmatpush.msra.mxu0 %v223
  %845 = vmatpush.msra.mxu0 %v222
  %846 = vmatpush.msra.mxu0 %v221
  %847 = vmatpush.msra.mxu0 %v220
  %848 = vmatpush.msra.mxu0 %v219
  %849 = vmatpush.msra.mxu0 %v218
  %850 = vmatpush.msra.mxu0 %v217
  %851 = vmatpush.msra.mxu0 %v216
  %852 = vmatmul.f32.gmra.mxu0 %v30
  %v853 = vpop.f32.mrf.mxu0
  %v854 = vadd.f32 %v834, %v853
  %855 = vdwg.mxu0
  %856 = vmatpush.msra.mxu0 %v247
  %857 = vmatpush.msra.mxu0 %v246
  %858 = vmatpush.msra.mxu0 %v245
  %859 = vmatpush.msra.mxu0 %v244
  %860 = vmatpush.msra.mxu0 %v243
  %861 = vmatpush.msra.mxu0 %v242
  %862 = vmatpush.msra.mxu0 %v241
  %863 = vmatpush.msra.mxu0 %v240
  %864 = vmatpush.msra.mxu0 %v239
  %865 = vmatpush.msra.mxu0 %v238
  %866 = vmatpush.msra.mxu0 %v237
  %867 = vmatpush.msra.mxu0 %v236
  %868 = vmatpush.msra.mxu0 %v235
  %869 = vmatpush.msra.mxu0 %v234
  %870 = vmatpush.msra.mxu0 %v233
  %871 = vmatpush.msra.mxu0 %v232
  %872 = vmatmul.f32.gmra.mxu0 %v31
  %v873 = vpop.f32.mrf.mxu0
  %v874 = vadd.f32 %v854, %v873
  %875 = vdwg.mxu0
  %876 = vmatpush.msra.mxu0 %v263
  %877 = vmatpush.msra.mxu0 %v262
  %878 = vmatpush.msra.mxu0 %v261
  %879 = vmatpush.msra.mxu0 %v260
  %880 = vmatpush.msra.mxu0 %v259
  %881 = vmatpush.msra.mxu0 %v258
  %882 = vmatpush.msra.mxu0 %v257
  %883 = vmatpush.msra.mxu0 %v256
  %884 = vmatpush.msra.mxu0 %v255
  %885 = vmatpush.msra.mxu0 %v254
  %886 = vmatpush.msra.mxu0 %v253
  %887 = vmatpush.msra.mxu0 %v252
  %888 = vmatpush.msra.mxu0 %v251
  %889 = vmatpush.msra.mxu0 %v250
  %890 = vmatpush.msra.mxu0 %v249
  %891 = vmatpush.msra.mxu0 %v248
  %892 = vmatmul.f32.gmra.mxu0 %v32
  %v893 = vpop.f32.mrf.mxu0
  %v894 = vadd.f32 %v874, %v893
  %895 = vdwg.mxu0
  %896 = vmatpush.msra.mxu0 %v279
  %897 = vmatpush.msra.mxu0 %v278
  %898 = vmatpush.msra.mxu0 %v277
  %899 = vmatpush.msra.mxu0 %v276
  %900 = vmatpush.msra.mxu0 %v275
  %901 = vmatpush.msra.mxu0 %v274
  %902 = vmatpush.msra.mxu0 %v273
  %903 = vmatpush.msra.mxu0 %v272
  %904 = vmatpush.msra.mxu0 %v271
  %905 = vmatpush.msra.mxu0 %v270
  %906 = vmatpush.msra.mxu0 %v269
  %907 = vmatpush.msra.mxu0 %v268
  %908 = vmatpush.msra.mxu0 %v267
  %909 = vmatpush.msra.mxu0 %v266
  %910 = vmatpush.msra.mxu0 %v265
  %911 = vmatpush.msra.mxu0 %v264
  %912 = vmatmul.f32.gmra.mxu0 %v33
  %v913 = vpop.f32.mrf.mxu0
  %v914 = vadd.f32 %v894, %v913
  %915 = vdwg.mxu0
  %916 = vmatpush.msra.mxu0 %v295
  %917 = vmatpush.msra.mxu0 %v294
  %918 = vmatpush.msra.mxu0 %v293
  %919 = vmatpush.msra.mxu0 %v292
  %920 = vmatpush.msra.mxu0 %v291
  %921 = vmatpush.msra.mxu0 %v290
  %922 = vmatpush.msra.mxu0 %v289
  %923 = vmatpush.msra.mxu0 %v288
  %924 = vmatpush.msra.mxu0 %v287
  %925 = vmatpush.msra.mxu0 %v286
  %926 = vmatpush.msra.mxu0 %v285
  %927 = vmatpush.msra.mxu0 %v284
  %928 = vmatpush.msra.mxu0 %v283
  %929 = vmatpush.msra.mxu0 %v282
  %930 = vmatpush.msra.mxu0 %v281
  %931 = vmatpush.msra.mxu0 %v280
  %932 = vmatmul.f32.gmra.mxu0 %v34
  %v933 = vpop.f32.mrf.mxu0
  %v934 = vadd.f32 %v914, %v933
  %935 = vdwg.mxu0
  %936 = vmatpush.msra.mxu0 %v311
  %937 = vmatpush.msra.mxu0 %v310
  %938 = vmatpush.msra.mxu0 %v309
  %939 = vmatpush.msra.mxu0 %v308
  %940 = vmatpush.msra.mxu0 %v307
  %941 = vmatpush.msra.mxu0 %v306
  %942 = vmatpush.msra.mxu0 %v305
  %943 = vmatpush.msra.mxu0 %v304
  %944 = vmatpush.msra.mxu0 %v303
  %945 = vmatpush.msra.mxu0 %v302
  %946 = vmatpush.msra.mxu0 %v301
  %947 = vmatpush.msra.mxu0 %v300
  %948 = vmatpush.msra.mxu0 %v299
  %949 = vmatpush.msra.mxu0 %v298
  %950 = vmatpush.msra.mxu0 %v297
  %951 = vmatpush.msra.mxu0 %v296
  %952 = vmatmul.f32.gmra.mxu0 %v35
  %v953 = vpop.f32.mrf.mxu0
  %v954 = vadd.f32 %v934, %v953
  %955 = vdwg.mxu0
  %956 = vmatpush.msra.mxu0 %v327
  %957 = vmatpush.msra.mxu0 %v326
  %958 = vmatpush.msra.mxu0 %v325
  %959 = vmatpush.msra.mxu0 %v324
  %960 = vmatpush.msra.mxu0 %v323
  %961 = vmatpush.msra.mxu0 %v322
  %962 = vmatpush.msra.mxu0 %v321
  %963 = vmatpush.msra.mxu0 %v320
  %964 = vmatpush.msra.mxu0 %v319
  %965 = vmatpush.msra.mxu0 %v318
  %966 = vmatpush.msra.mxu0 %v317
  %967 = vmatpush.msra.mxu0 %v316
  %968 = vmatpush.msra.mxu0 %v315
  %969 = vmatpush.msra.mxu0 %v314
  %970 = vmatpush.msra.mxu0 %v313
  %971 = vmatpush.msra.mxu0 %v312
  %972 = vmatmul.f32.gmra.mxu0 %v36
  %v973 = vpop.f32.mrf.mxu0
  %v974 = vadd.f32 %v954, %v973
  %975 = vdwg.mxu0
  %976 = vmatpush.msra.mxu0 %v343
  %977 = vmatpush.msra.mxu0 %v342
  %978 = vmatpush.msra.mxu0 %v341
  %979 = vmatpush.msra.mxu0 %v340
  %980 = vmatpush.msra.mxu0 %v339
  %981 = vmatpush.msra.mxu0 %v338
  %982 = vmatpush.msra.mxu0 %v337
  %983 = vmatpush.msra.mxu0 %v336
  %984 = vmatpush.msra.mxu0 %v335
  %985 = vmatpush.msra.mxu0 %v334
  %986 = vmatpush.msra.mxu0 %v333
  %987 = vmatpush.msra.mxu0 %v332
  %988 = vmatpush.msra.mxu0 %v331
  %989 = vmatpush.msra.mxu0 %v330
  %990 = vmatpush.msra.mxu0 %v329
  %991 = vmatpush.msra.mxu0 %v328
  %992 = vmatmul.f32.gmra.mxu0 %v37
  %v993 = vpop.f32.mrf.mxu0
  %v994 = vadd.f32 %v974, %v993
  %995 = vdwg.mxu0
  %996 = vmatpush.msra.mxu0 %v359
  %997 = vmatpush.msra.mxu0 %v358
  %998 = vmatpush.msra.mxu0 %v357
  %999 = vmatpush.msra.mxu0 %v356
  %1000 = vmatpush.msra.mxu0 %v355
  %1001 = vmatpush.msra.mxu0 %v354
  %1002 = vmatpush.msra.mxu0 %v353
  %1003 = vmatpush.msra.mxu0 %v352
  %1004 = vmatpush.msra.mxu0 %v351
  %1005 = vmatpush.msra.mxu0 %v350
  %1006 = vmatpush.msra.mxu0 %v349
  %1007 = vmatpush.msra.mxu0 %v348
  %1008 = vmatpush.msra.mxu0 %v347
  %1009 = vmatpush.msra.mxu0 %v346
  %1010 = vmatpush.msra.mxu0 %v345
  %1011 = vmatpush.msra.mxu0 %v344
  %1012 = vmatmul.f32.gmra.mxu0 %v38
  %v1013 = vpop.f32.mrf.mxu0
  %v1014 = vadd.f32 %v994, %v1013
  %1015 = vdwg.mxu0
  %1016 = vmatpush.msra.mxu0 %v375
  %1017 = vmatpush.msra.mxu0 %v374
  %1018 = vmatpush.msra.mxu0 %v373
  %1019 = vmatpush.msra.mxu0 %v372
  %1020 = vmatpush.msra.mxu0 %v371
  %1021 = vmatpush.msra.mxu0 %v370
  %1022 = vmatpush.msra.mxu0 %v369
  %1023 = vmatpush.msra.mxu0 %v368
  %1024 = vmatpush.msra.mxu0 %v367
  %1025 = vmatpush.msra.mxu0 %v366
  %1026 = vmatpush.msra.mxu0 %v365
  %1027 = vmatpush.msra.mxu0 %v364
  %1028 = vmatpush.msra.mxu0 %v363
  %1029 = vmatpush.msra.mxu0 %v362
  %1030 = vmatpush.msra.mxu0 %v361
  %1031 = vmatpush.msra.mxu0 %v360
  %1032 = vmatmul.f32.gmra.mxu0 %v39
  %v1033 = vpop.f32.mrf.mxu0
  %v1034 = vadd.f32 %v1014, %v1033
  %1035 = vdwg.mxu0
  %1036 = vmatpush.msra.mxu0 %v391
  %1037 = vmatpush.msra.mxu0 %v390
  %1038 = vmatpush.msra.mxu0 %v389
  %1039 = vmatpush.msra.mxu0 %v388
  %1040 = vmatpush.msra.mxu0 %v387
  %1041 = vmatpush.msra.mxu0 %v386
  %1042 = vmatpush.msra.mxu0 %v385
  %1043 = vmatpush.msra.mxu0 %v384
  %1044 = vmatpush.msra.mxu0 %v383
  %1045 = vmatpush.msra.mxu0 %v382
  %1046 = vmatpush.msra.mxu0 %v381
  %1047 = vmatpush.msra.mxu0 %v380
  %1048 = vmatpush.msra.mxu0 %v379
  %1049 = vmatpush.msra.mxu0 %v378
  %1050 = vmatpush.msra.mxu0 %v377
  %1051 = vmatpush.msra.mxu0 %v376
  %1052 = vmatmul.f32.gmra.mxu0 %v40
  %v1053 = vpop.f32.mrf.mxu0
  %v1054 = vadd.f32 %v1034, %v1053
  %1055 = vdwg.mxu0
  %1056 = vmatpush.msra.mxu0 %v407
  %1057 = vmatpush.msra.mxu0 %v406
  %1058 = vmatpush.msra.mxu0 %v405
  %1059 = vmatpush.msra.mxu0 %v404
  %1060 = vmatpush.msra.mxu0 %v403
  %1061 = vmatpush.msra.mxu0 %v402
  %1062 = vmatpush.msra.mxu0 %v401
  %1063 = vmatpush.msra.mxu0 %v400
  %1064 = vmatpush.msra.mxu0 %v399
  %1065 = vmatpush.msra.mxu0 %v398
  %1066 = vmatpush.msra.mxu0 %v397
  %1067 = vmatpush.msra.mxu0 %v396
  %1068 = vmatpush.msra.mxu0 %v395
  %1069 = vmatpush.msra.mxu0 %v394
  %1070 = vmatpush.msra.mxu0 %v393
  %1071 = vmatpush.msra.mxu0 %v392
  %1072 = vmatmul.f32.gmra.mxu0 %v41
  %v1073 = vpop.f32.mrf.mxu0
  %v1074 = vadd.f32 %v1054, %v1073
  %1075 = vdwg.mxu0
  %1076 = vmatpush.msra.mxu0 %v423
  %1077 = vmatpush.msra.mxu0 %v422
  %1078 = vmatpush.msra.mxu0 %v421
  %1079 = vmatpush.msra.mxu0 %v420
  %1080 = vmatpush.msra.mxu0 %v419
  %1081 = vmatpush.msra.mxu0 %v418
  %1082 = vmatpush.msra.mxu0 %v417
  %1083 = vmatpush.msra.mxu0 %v416
  %1084 = vmatpush.msra.mxu0 %v415
  %1085 = vmatpush.msra.mxu0 %v414
  %1086 = vmatpush.msra.mxu0 %v413
  %1087 = vmatpush.msra.mxu0 %v412
  %1088 = vmatpush.msra.mxu0 %v411
  %1089 = vmatpush.msra.mxu0 %v410
  %1090 = vmatpush.msra.mxu0 %v409
  %1091 = vmatpush.msra.mxu0 %v408
  %1092 = vmatmul.f32.gmra.mxu0 %v42
  %v1093 = vpop.f32.mrf.mxu0
  %v1094 = vadd.f32 %v1074, %v1093
  %1095 = vdwg.mxu0
  %1096 = vmatpush.msra.mxu0 %v439
  %1097 = vmatpush.msra.mxu0 %v438
  %1098 = vmatpush.msra.mxu0 %v437
  %1099 = vmatpush.msra.mxu0 %v436
  %1100 = vmatpush.msra.mxu0 %v435
  %1101 = vmatpush.msra.mxu0 %v434
  %1102 = vmatpush.msra.mxu0 %v433
  %1103 = vmatpush.msra.mxu0 %v432
  %1104 = vmatpush.msra.mxu0 %v431
  %1105 = vmatpush.msra.mxu0 %v430
  %1106 = vmatpush.msra.mxu0 %v429
  %1107 = vmatpush.msra.mxu0 %v428
  %1108 = vmatpush.msra.mxu0 %v427
  %1109 = vmatpush.msra.mxu0 %v426
  %1110 = vmatpush.msra.mxu0 %v425
  %1111 = vmatpush.msra.mxu0 %v424
  %1112 = vmatmul.f32.gmra.mxu0 %v43
  %v1113 = vpop.f32.mrf.mxu0
  %v1114 = vadd.f32 %v1094, %v1113
  %1115 = vdwg.mxu0
  %1116 = vmatpush.msra.mxu0 %v455
  %1117 = vmatpush.msra.mxu0 %v454
  %1118 = vmatpush.msra.mxu0 %v453
  %1119 = vmatpush.msra.mxu0 %v452
  %1120 = vmatpush.msra.mxu0 %v451
  %1121 = vmatpush.msra.mxu0 %v450
  %1122 = vmatpush.msra.mxu0 %v449
  %1123 = vmatpush.msra.mxu0 %v448
  %1124 = vmatpush.msra.mxu0 %v447
  %1125 = vmatpush.msra.mxu0 %v446
  %1126 = vmatpush.msra.mxu0 %v445
  %1127 = vmatpush.msra.mxu0 %v444
  %1128 = vmatpush.msra.mxu0 %v443
  %1129 = vmatpush.msra.mxu0 %v442
  %1130 = vmatpush.msra.mxu0 %v441
  %1131 = vmatpush.msra.mxu0 %v440
  %1132 = vmatmul.f32.gmra.mxu0 %v44
  %v1133 = vpop.f32.mrf.mxu0
  %v1134 = vadd.f32 %v1114, %v1133
  %1135 = vdwg.mxu0
  %1136 = vmatpush.msra.mxu0 %v471
  %1137 = vmatpush.msra.mxu0 %v470
  %1138 = vmatpush.msra.mxu0 %v469
  %1139 = vmatpush.msra.mxu0 %v468
  %1140 = vmatpush.msra.mxu0 %v467
  %1141 = vmatpush.msra.mxu0 %v466
  %1142 = vmatpush.msra.mxu0 %v465
  %1143 = vmatpush.msra.mxu0 %v464
  %1144 = vmatpush.msra.mxu0 %v463
  %1145 = vmatpush.msra.mxu0 %v462
  %1146 = vmatpush.msra.mxu0 %v461
  %1147 = vmatpush.msra.mxu0 %v460
  %1148 = vmatpush.msra.mxu0 %v459
  %1149 = vmatpush.msra.mxu0 %v458
  %1150 = vmatpush.msra.mxu0 %v457
  %1151 = vmatpush.msra.mxu0 %v456
  %1152 = vmatmul.f32.gmra.mxu0 %v45
  %v1153 = vpop.f32.mrf.mxu0
  %v1154 = vadd.f32 %v1134, %v1153
  %1155 = vdwg.mxu0
  %1156 = vmatpush.msra.mxu0 %v487
  %1157 = vmatpush.msra.mxu0 %v486
  %1158 = vmatpush.msra.mxu0 %v485
  %1159 = vmatpush.msra.mxu0 %v484
  %1160 = vmatpush.msra.mxu0 %v483
  %1161 = vmatpush.msra.mxu0 %v482
  %1162 = vmatpush.msra.mxu0 %v481
  %1163 = vmatpush.msra.mxu0 %v480
  %1164 = vmatpush.msra.mxu0 %v479
  %1165 = vmatpush.msra.mxu0 %v478
  %1166 = vmatpush.msra.mxu0 %v477
  %1167 = vmatpush.msra.mxu0 %v476
  %1168 = vmatpush.msra.mxu0 %v475
  %1169 = vmatpush.msra.mxu0 %v474
  %1170 = vmatpush.msra.mxu0 %v473
  %1171 = vmatpush.msra.mxu0 %v472
  %1172 = vmatmul.f32.gmra.mxu0 %v46
  %v1173 = vpop.f32.mrf.mxu0
  %v1174 = vadd.f32 %v1154, %v1173
  %1175 = vdwg.mxu0
  %1176 = vmatpush.msra.mxu0 %v503
  %1177 = vmatpush.msra.mxu0 %v502
  %1178 = vmatpush.msra.mxu0 %v501
  %1179 = vmatpush.msra.mxu0 %v500
  %1180 = vmatpush.msra.mxu0 %v499
  %1181 = vmatpush.msra.mxu0 %v498
  %1182 = vmatpush.msra.mxu0 %v497
  %1183 = vmatpush.msra.mxu0 %v496
  %1184 = vmatpush.msra.mxu0 %v495
  %1185 = vmatpush.msra.mxu0 %v494
  %1186 = vmatpush.msra.mxu0 %v493
  %1187 = vmatpush.msra.mxu0 %v492
  %1188 = vmatpush.msra.mxu0 %v491
  %1189 = vmatpush.msra.mxu0 %v490
  %1190 = vmatpush.msra.mxu0 %v489
  %1191 = vmatpush.msra.mxu0 %v488
  %1192 = vmatmul.f32.gmra.mxu0 %v47
  %v1193 = vpop.f32.mrf.mxu0
  %v1194 = vadd.f32 %v1174, %v1193
  %1195 = vdwg.mxu0
  %1196 = vmatpush.msra.mxu0 %v519
  %1197 = vmatpush.msra.mxu0 %v518
  %1198 = vmatpush.msra.mxu0 %v517
  %1199 = vmatpush.msra.mxu0 %v516
  %1200 = vmatpush.msra.mxu0 %v515
  %1201 = vmatpush.msra.mxu0 %v514
  %1202 = vmatpush.msra.mxu0 %v513
  %1203 = vmatpush.msra.mxu0 %v512
  %1204 = vmatpush.msra.mxu0 %v511
  %1205 = vmatpush.msra.mxu0 %v510
  %1206 = vmatpush.msra.mxu0 %v509
  %1207 = vmatpush.msra.mxu0 %v508
  %1208 = vmatpush.msra.mxu0 %v507
  %1209 = vmatpush.msra.mxu0 %v506
  %1210 = vmatpush.msra.mxu0 %v505
  %1211 = vmatpush.msra.mxu0 %v504
  %1212 = vmatmul.f32.gmra.mxu0 %v48
  %v1213 = vpop.f32.mrf.mxu0
  %v1214 = vadd.f32 %v1194, %v1213
  %1215 = vdwg.mxu0
  %1216 = vmatpush.msra.mxu0 %v535
  %1217 = vmatpush.msra.mxu0 %v534
  %1218 = vmatpush.msra.mxu0 %v533
  %1219 = vmatpush.msra.mxu0 %v532
  %1220 = vmatpush.msra.mxu0 %v531
  %1221 = vmatpush.msra.mxu0 %v530
  %1222 = vmatpush.msra.mxu0 %v529
  %1223 = vmatpush.msra.mxu0 %v528
  %1224 = vmatpush.msra.mxu0 %v527
  %1225 = vmatpush.msra.mxu0 %v526
  %1226 = vmatpush.msra.mxu0 %v525
  %1227 = vmatpush.msra.mxu0 %v524
  %1228 = vmatpush.msra.mxu0 %v523
  %1229 = vmatpush.msra.mxu0 %v522
  %1230 = vmatpush.msra.mxu0 %v521
  %1231 = vmatpush.msra.mxu0 %v520
  %1232 = vmatmul.f32.gmra.mxu0 %v49
  %v1233 = vpop.f32.mrf.mxu0
  %v1234 = vadd.f32 %v1214, %v1233
  %1235 = vdwg.mxu0
  %1236 = vmatpush.msra.mxu0 %v551
  %1237 = vmatpush.msra.mxu0 %v550
  %1238 = vmatpush.msra.mxu0 %v549
  %1239 = vmatpush.msra.mxu0 %v548
  %1240 = vmatpush.msra.mxu0 %v547
  %1241 = vmatpush.msra.mxu0 %v546
  %1242 = vmatpush.msra.mxu0 %v545
  %1243 = vmatpush.msra.mxu0 %v544
  %1244 = vmatpush.msra.mxu0 %v543
  %1245 = vmatpush.msra.mxu0 %v542
  %1246 = vmatpush.msra.mxu0 %v541
  %1247 = vmatpush.msra.mxu0 %v540
  %1248 = vmatpush.msra.mxu0 %v539
  %1249 = vmatpush.msra.mxu0 %v538
  %1250 = vmatpush.msra.mxu0 %v537
  %1251 = vmatpush.msra.mxu0 %v536
  %1252 = vmatmul.f32.gmra.mxu0 %v50
  %v1253 = vpop.f32.mrf.mxu0
  %v1254 = vadd.f32 %v1234, %v1253
  %1255 = vdwg.mxu0
  %1256 = vmatpush.msra.mxu0 %v567
  %1257 = vmatpush.msra.mxu0 %v566
  %1258 = vmatpush.msra.mxu0 %v565
  %1259 = vmatpush.msra.mxu0 %v564
  %1260 = vmatpush.msra.mxu0 %v563
  %1261 = vmatpush.msra.mxu0 %v562
  %1262 = vmatpush.msra.mxu0 %v561
  %1263 = vmatpush.msra.mxu0 %v560
  %1264 = vmatpush.msra.mxu0 %v559
  %1265 = vmatpush.msra.mxu0 %v558
  %1266 = vmatpush.msra.mxu0 %v557
  %1267 = vmatpush.msra.mxu0 %v556
  %1268 = vmatpush.msra.mxu0 %v555
  %1269 = vmatpush.msra.mxu0 %v554
  %1270 = vmatpush.msra.mxu0 %v553
  %1271 = vmatpush.msra.mxu0 %v552
  %1272 = vmatmul.f32.gmra.mxu0 %v51
  %v1273 = vpop.f32.mrf.mxu0
  %v1274 = vadd.f32 %v1254, %v1273
  %1275 = vdwg.mxu0
  %1276 = vmatpush.msra.mxu0 %v583
  %1277 = vmatpush.msra.mxu0 %v582
  %1278 = vmatpush.msra.mxu0 %v581
  %1279 = vmatpush.msra.mxu0 %v580
  %1280 = vmatpush.msra.mxu0 %v579
  %1281 = vmatpush.msra.mxu0 %v578
  %1282 = vmatpush.msra.mxu0 %v577
  %1283 = vmatpush.msra.mxu0 %v576
  %1284 = vmatpush.msra.mxu0 %v575
  %1285 = vmatpush.msra.mxu0 %v574
  %1286 = vmatpush.msra.mxu0 %v573
  %1287 = vmatpush.msra.mxu0 %v572
  %1288 = vmatpush.msra.mxu0 %v571
  %1289 = vmatpush.msra.mxu0 %v570
  %1290 = vmatpush.msra.mxu0 %v569
  %1291 = vmatpush.msra.mxu0 %v568
  %1292 = vmatmul.f32.gmra.mxu0 %v52
  %v1293 = vpop.f32.mrf.mxu0
  %v1294 = vadd.f32 %v1274, %v1293
  %1295 = vdwg.mxu0
  %1296 = vmatpush.msra.mxu0 %v599
  %1297 = vmatpush.msra.mxu0 %v598
  %1298 = vmatpush.msra.mxu0 %v597
  %1299 = vmatpush.msra.mxu0 %v596
  %1300 = vmatpush.msra.mxu0 %v595
  %1301 = vmatpush.msra.mxu0 %v594
  %1302 = vmatpush.msra.mxu0 %v593
  %1303 = vmatpush.msra.mxu0 %v592
  %1304 = vmatpush.msra.mxu0 %v591
  %1305 = vmatpush.msra.mxu0 %v590
  %1306 = vmatpush.msra.mxu0 %v589
  %1307 = vmatpush.msra.mxu0 %v588
  %1308 = vmatpush.msra.mxu0 %v587
  %1309 = vmatpush.msra.mxu0 %v586
  %1310 = vmatpush.msra.mxu0 %v585
  %1311 = vmatpush.msra.mxu0 %v584
  %1312 = vmatmul.f32.gmra.mxu0 %v53
  %v1313 = vpop.f32.mrf.mxu0
  %v1314 = vadd.f32 %v1294, %v1313
  %1315 = vdwg.mxu0
  %1316 = vmatpush.msra.mxu0 %v615
  %1317 = vmatpush.msra.mxu0 %v614
  %1318 = vmatpush.msra.mxu0 %v613
  %1319 = vmatpush.msra.mxu0 %v612
  %1320 = vmatpush.msra.mxu0 %v611
  %1321 = vmatpush.msra.mxu0 %v610
  %1322 = vmatpush.msra.mxu0 %v609
  %1323 = vmatpush.msra.mxu0 %v608
  %1324 = vmatpush.msra.mxu0 %v607
  %1325 = vmatpush.msra.mxu0 %v606
  %1326 = vmatpush.msra.mxu0 %v605
  %1327 = vmatpush.msra.mxu0 %v604
  %1328 = vmatpush.msra.mxu0 %v603
  %1329 = vmatpush.msra.mxu0 %v602
  %1330 = vmatpush.msra.mxu0 %v601
  %1331 = vmatpush.msra.mxu0 %v600
  %1332 = vmatmul.f32.gmra.mxu0 %v54
  %v1333 = vpop.f32.mrf.mxu0
  %v1334 = vadd.f32 %v1314, %v1333
  %1335 = vdwg.mxu0
  %1336 = vmatpush.msra.mxu0 %v631
  %1337 = vmatpush.msra.mxu0 %v630
  %1338 = vmatpush.msra.mxu0 %v629
  %1339 = vmatpush.msra.mxu0 %v628
  %1340 = vmatpush.msra.mxu0 %v627
  %1341 = vmatpush.msra.mxu0 %v626
  %1342 = vmatpush.msra.mxu0 %v625
  %1343 = vmatpush.msra.mxu0 %v624
  %1344 = vmatpush.msra.mxu0 %v623
  %1345 = vmatpush.msra.mxu0 %v622
  %1346 = vmatpush.msra.mxu0 %v621
  %1347 = vmatpush.msra.mxu0 %v620
  %1348 = vmatpush.msra.mxu0 %v619
  %1349 = vmatpush.msra.mxu0 %v618
  %1350 = vmatpush.msra.mxu0 %v617
  %1351 = vmatpush.msra.mxu0 %v616
  %1352 = vmatmul.f32.gmra.mxu0 %v55
  %v1353 = vpop.f32.mrf.mxu0
  %v1354 = vadd.f32 %v1334, %v1353
  %1355 = vdwg.mxu0
  %v1356 = vmax.f32 %v1354, 0.0
  %v1357 = vld [vmem:[%s3] sm:$0xff]
  %v1358 = vld [vmem:[%s3 + $0x8] sm:$0xff]
  %v1359 = vld [vmem:[%s3 + $0x10] sm:$0xff]
  %v1360 = vld [vmem:[%s3 + $0x18] sm:$0xff]
  %v1361 = vld [vmem:[%s3 + $0x20] sm:$0xff]
  %v1362 = vld [vmem:[%s3 + $0x28] sm:$0xff]
  %v1363 = vld [vmem:[%s3 + $0x30] sm:$0xff]
  %v1364 = vld [vmem:[%s3 + $0x38] sm:$0xff]
  %v1365 = vld [vmem:[%s4] sm:$0x1]
  %v1367 = vperm.slane %v1365, 0
  %vm1369 = vcmask 523264
  %v1371 = vsel %vm1369, %v1356, 0
  %1373 = vmatpush.msra.mxu0 0.0
  %1374 = vmatpush.msra.mxu0 0.0
  %1375 = vmatpush.msra.mxu0 0.0
  %1376 = vmatpush.msra.mxu0 0.0
  %1377 = vmatpush.msra.mxu0 0.0
  %1378 = vmatpush.msra.mxu0 0.0
  %1379 = vmatpush.msra.mxu0 0.0
  %1380 = vmatpush.msra.mxu0 0.0
  %1381 = vmatpush.msra.mxu0 %v1364
  %1382 = vmatpush.msra.mxu0 %v1363
  %1383 = vmatpush.msra.mxu0 %v1362
  %1384 = vmatpush.msra.mxu0 %v1361
  %1385 = vmatpush.msra.mxu0 %v1360
  %1386 = vmatpush.msra.mxu0 %v1359
  %1387 = vmatpush.msra.mxu0 %v1358
  %1388 = vmatpush.msra.mxu0 %v1357
  %1389 = vmatmul.f32.gmra.mxu0 %v1371
  %v1390 = vpop.f32.mrf.mxu0
  %v1391 = vadd.f32 %v1367, %v1390
  %1392 = vdwg.mxu0
  %1393 = vmax.xlane.f32.xlu0 %v1391
  %v1394 = vpop.xlane.xlu0 %1393
  %v1395 = vsub.f32 %v1391, %v1394
  %v1396 = vmul.f32 %v1395, 1.442695
  %v1397 = vpow.pop %v1396
  %1398 = vadd.xlane.f32.xlu0 %v1397
  %v1399 = vpop.xlane.xlu0 %1398
  %v1400 = vlog2.pop %v1399
  %v1401 = vmul.f32 %v1400, 0.6931472
  %v1402 = vadd.f32 %v1401, %v1394
  %v1403 = vsub.f32 %v1391, %v1402
  %1404 = vst [vmem:[%s5] sm:$0xff] %v1403
  // Predicated region
  $region22: #{convnet_forward.3} parent=0 // pred_check
    _
  $region23: #{convnet_forward.3} parent=0 // pred_check_branch
    %1406 = sbr.rel (0) target = $region25
  $region24: #{convnet_forward.3} parent=0 // pred_region
    _
  $region25: #{convnet_forward.3} parent=0 // pred_fallthru
    _
  // Predicated region
  $region26: #{convnet_forward.3} parent=0 // pred_check
    _
  $region27: #{convnet_forward.3} parent=0 // pred_check_branch
    %1408 = sbr.rel (0) target = $region29
  $region28: #{convnet_forward.3} parent=0 // pred_region
    _
  $region29: #{convnet_forward.3} parent=0 // pred_fallthru
    _

// kernel: convnet_forward.2
$region0: #{convnet_forward.2}
  #allocation0 [shape = 'u32[]', space=smem, size = 0x4, offset = 0x4, fixed_abs, tag = 'smem constant byte address 0x4 - core index']
  #allocation1 [shape = 'u32[72,128]{1,0:T(1,128)}', space=vmem, size = 0x9000, scoped, tag = 'internal scratch']
  %s0 = inlined_call_operand.vmem [shape: f32[1152,36], index: 0, kind: input, shape index: {}]
  %s1 = inlined_call_operand.vmem [shape: f32[36,256], index: 1, kind: input, shape index: {}]
  %s2 = inlined_call_operand.vmem [shape: f32[1,256], index: 2, kind: input, shape index: {}]
  %s3 = inlined_call_operand.vmem [shape: f32[256,128], index: 3, kind: input, shape index: {}]
  %s4 = inlined_call_operand.vmem [shape: f32[1,32], index: 4, kind: input, shape index: {}]
  %s5 = inlined_call_operand.vmem [shape: f32[1152,32], index: 5, kind: output, shape index: {}]
  %s6 = sld [smem:[#allocation0]]
  $region30: #{convnet_forward.2} parent=0
    _
  %s8 = ssub.s32 1, %s6
  %s9 = scalar_select 0, %s8, %s6
  // Predicated region
  $region2: #{convnet_forward.2} parent=0 // pred_check
    _
  $region3: #{convnet_forward.2} parent=0 // pred_check_branch
    %11 = sbr.rel (0) target = $region5
  $region4: #{convnet_forward.2} parent=0 // pred_region
    _
  $region5: #{convnet_forward.2} parent=0 // pred_fallthru
    _
  // Predicated region
  $region6: #{convnet_forward.2} parent=0 // pred_check
    _
  $region7: #{convnet_forward.2} parent=0 // pred_check_branch
    %13 = sbr.rel (0) target = $region9
  $region8: #{convnet_forward.2} parent=0 // pred_region
    _
  $region9: #{convnet_forward.2} parent=0 // pred_fallthru
    _
  // Predicated region
  $region10: #{convnet_forward.2} parent=0 // pred_check
    _
  $region11: #{convnet_forward.2} parent=0 // pred_check_branch
    %15 = sbr.rel (0) target = $region13
  $region12: #{convnet_forward.2} parent=0 // pred_region
    _
  $region13: #{convnet_forward.2} parent=0 // pred_fallthru
    _
  // Predicated region
  $region14: #{convnet_forward.2} parent=0 // pred_check
    _
  $region15: #{convnet_forward.2} parent=0 // pred_check_branch
    %17 = sbr.rel (0) target = $region17
  $region16: #{convnet_forward.2} parent=0 // pred_region
    _
  $region17: #{convnet_forward.2} parent=0 // pred_fallthru
    _
  // Predicated region
  $region18: #{convnet_forward.2} parent=0 // pred_check
    _
  $region19: #{convnet_forward.2} parent=0 // pred_check_branch
    %19 = sbr.rel (0) target = $region21
  $region20: #{convnet_forward.2} parent=0 // pred_region
    _
  $region21: #{convnet_forward.2} parent=0 // pred_fallthru
    _
  %v20 = vld [vmem:[%s0] sm:$0xff]
  %v21 = vld [vmem:[%s0 + $0x8] sm:$0xff]
  %v22 = vld [vmem:[%s0 + $0x10] sm:$0xff]
  %v23 = vld [vmem:[%s0 + $0x18] sm:$0xff]
  %v24 = vld [vmem:[%s0 + $0x20] sm:$0xff]
  %v25 = vld [vmem:[%s0 + $0x28] sm:$0xff]
  %v26 = vld [vmem:[%s0 + $0x30] sm:$0xff]
  %v27 = vld [vmem:[%s0 + $0x38] sm:$0xff]
  %v28 = vld [vmem:[%s0 + $0x40] sm:$0xff]
  %v29 = vld [vmem:[%s0 + $0x48] sm:$0xff]
  %v30 = vld [vmem:[%s0 + $0x50] sm:$0xff]
  %v31 = vld [vmem:[%s0 + $0x58] sm:$0xff]
  %v32 = vld [vmem:[%s0 + $0x60] sm:$0xff]
  %v33 = vld [vmem:[%s0 + $0x68] sm:$0xff]
  %v34 = vld [vmem:[%s0 + $0x70] sm:$0xff]
  %v35 = vld [vmem:[%s0 + $0x78] sm:$0xff]
  %v36 = vld [vmem:[%s0 + $0x80] sm:$0xff]
  %v37 = vld [vmem:[%s0 + $0x88] sm:$0xff]
  %v38 = vld [vmem:[%s0 + $0x90] sm:$0xff]
  %v39 = vld [vmem:[%s0 + $0x98] sm:$0xff]
  %v40 = vld [vmem:[%s0 + $0xa0] sm:$0xff]
  %v41 = vld [vmem:[%s0 + $0xa8] sm:$0xff]
  %v42 = vld [vmem:[%s0 + $0xb0] sm:$0xff]
  %v43 = vld [vmem:[%s0 + $0xb8] sm:$0xff]
  %v44 = vld [vmem:[%s0 + $0xc0] sm:$0xff]
  %v45 = vld [vmem:[%s0 + $0xc8] sm:$0xff]
  %v46 = vld [vmem:[%s0 + $0xd0] sm:$0xff]
  %v47 = vld [vmem:[%s0 + $0xd8] sm:$0xff]
  %v48 = vld [vmem:[%s0 + $0xe0] sm:$0xff]
  %v49 = vld [vmem:[%s0 + $0xe8] sm:$0xff]
  %v50 = vld [vmem:[%s0 + $0xf0] sm:$0xff]
  %v51 = vld [vmem:[%s0 + $0xf8] sm:$0xff]
  %v52 = vld [vmem:[%s0 + $0x100] sm:$0xff]
  %v53 = vld [vmem:[%s0 + $0x108] sm:$0xff]
  %v54 = vld [vmem:[%s0 + $0x110] sm:$0xff]
  %v55 = vld [vmem:[%s0 + $0x118] sm:$0xff]
  %v56 = vld [vmem:[%s0 + $0x120] sm:$0xff]
  %v57 = vld [vmem:[%s0 + $0x128] sm:$0xff]
  %v58 = vld [vmem:[%s0 + $0x130] sm:$0xff]
  %v59 = vld [vmem:[%s0 + $0x138] sm:$0xff]
  %v60 = vld [vmem:[%s0 + $0x140] sm:$0xff]
  %v61 = vld [vmem:[%s0 + $0x148] sm:$0xff]
  %v62 = vld [vmem:[%s0 + $0x150] sm:$0xff]
  %v63 = vld [vmem:[%s0 + $0x158] sm:$0xff]
  %v64 = vld [vmem:[%s0 + $0x160] sm:$0xff]
  %v65 = vld [vmem:[%s0 + $0x168] sm:$0xff]
  %v66 = vld [vmem:[%s0 + $0x170] sm:$0xff]
  %v67 = vld [vmem:[%s0 + $0x178] sm:$0xff]
  %v68 = vld [vmem:[%s0 + $0x180] sm:$0xff]
  %v69 = vld [vmem:[%s0 + $0x188] sm:$0xff]
  %v70 = vld [vmem:[%s0 + $0x190] sm:$0xff]
  %v71 = vld [vmem:[%s0 + $0x198] sm:$0xff]
  %v72 = vld [vmem:[%s0 + $0x1a0] sm:$0xff]
  %v73 = vld [vmem:[%s0 + $0x1a8] sm:$0xff]
  %v74 = vld [vmem:[%s0 + $0x1b0] sm:$0xff]
  %v75 = vld [vmem:[%s0 + $0x1b8] sm:$0xff]
  %v76 = vld [vmem:[%s0 + $0x1c0] sm:$0xff]
  %v77 = vld [vmem:[%s0 + $0x1c8] sm:$0xff]
  %v78 = vld [vmem:[%s0 + $0x1d0] sm:$0xff]
  %v79 = vld [vmem:[%s0 + $0x1d8] sm:$0xff]
  %v80 = vld [vmem:[%s0 + $0x1e0] sm:$0xff]
  %v81 = vld [vmem:[%s0 + $0x1e8] sm:$0xff]
  %v82 = vld [vmem:[%s0 + $0x1f0] sm:$0xff]
  %v83 = vld [vmem:[%s0 + $0x1f8] sm:$0xff]
  %v84 = vld [vmem:[%s0 + $0x200] sm:$0xff]
  %v85 = vld [vmem:[%s0 + $0x208] sm:$0xff]
  %v86 = vld [vmem:[%s0 + $0x210] sm:$0xff]
  %v87 = vld [vmem:[%s0 + $0x218] sm:$0xff]
  %v88 = vld [vmem:[%s0 + $0x220] sm:$0xff]
  %v89 = vld [vmem:[%s0 + $0x228] sm:$0xff]
  %v90 = vld [vmem:[%s0 + $0x230] sm:$0xff]
  %v91 = vld [vmem:[%s0 + $0x238] sm:$0xff]
  %v92 = vld [vmem:[%s0 + $0x240] sm:$0xff]
  %v93 = vld [vmem:[%s0 + $0x248] sm:$0xff]
  %v94 = vld [vmem:[%s0 + $0x250] sm:$0xff]
  %v95 = vld [vmem:[%s0 + $0x258] sm:$0xff]
  %v96 = vld [vmem:[%s0 + $0x260] sm:$0xff]
  %v97 = vld [vmem:[%s0 + $0x268] sm:$0xff]
  %v98 = vld [vmem:[%s0 + $0x270] sm:$0xff]
  %v99 = vld [vmem:[%s0 + $0x278] sm:$0xff]
  %v100 = vld [vmem:[%s0 + $0x280] sm:$0xff]
  %v101 = vld [vmem:[%s0 + $0x288] sm:$0xff]
  %v102 = vld [vmem:[%s0 + $0x290] sm:$0xff]
  %v103 = vld [vmem:[%s0 + $0x298] sm:$0xff]
  %v104 = vld [vmem:[%s0 + $0x2a0] sm:$0xff]
  %v105 = vld [vmem:[%s0 + $0x2a8] sm:$0xff]
  %v106 = vld [vmem:[%s0 + $0x2b0] sm:$0xff]
  %v107 = vld [vmem:[%s0 + $0x2b8] sm:$0xff]
  %v108 = vld [vmem:[%s0 + $0x2c0] sm:$0xff]
  %v109 = vld [vmem:[%s0 + $0x2c8] sm:$0xff]
  %v110 = vld [vmem:[%s0 + $0x2d0] sm:$0xff]
  %v111 = vld [vmem:[%s0 + $0x2d8] sm:$0xff]
  %v112 = vld [vmem:[%s0 + $0x2e0] sm:$0xff]
  %v113 = vld [vmem:[%s0 + $0x2e8] sm:$0xff]
  %v114 = vld [vmem:[%s0 + $0x2f0] sm:$0xff]
  %v115 = vld [vmem:[%s0 + $0x2f8] sm:$0xff]
  %v116 = vld [vmem:[%s0 + $0x300] sm:$0xff]
  %v117 = vld [vmem:[%s0 + $0x308] sm:$0xff]
  %v118 = vld [vmem:[%s0 + $0x310] sm:$0xff]
  %v119 = vld [vmem:[%s0 + $0x318] sm:$0xff]
  %v120 = vld [vmem:[%s0 + $0x320] sm:$0xff]
  %v121 = vld [vmem:[%s0 + $0x328] sm:$0xff]
  %v122 = vld [vmem:[%s0 + $0x330] sm:$0xff]
  %v123 = vld [vmem:[%s0 + $0x338] sm:$0xff]
  %v124 = vld [vmem:[%s0 + $0x340] sm:$0xff]
  %v125 = vld [vmem:[%s0 + $0x348] sm:$0xff]
  %v126 = vld [vmem:[%s0 + $0x350] sm:$0xff]
  %v127 = vld [vmem:[%s0 + $0x358] sm:$0xff]
  %v128 = vld [vmem:[%s0 + $0x360] sm:$0xff]
  %v129 = vld [vmem:[%s0 + $0x368] sm:$0xff]
  %v130 = vld [vmem:[%s0 + $0x370] sm:$0xff]
  %v131 = vld [vmem:[%s0 + $0x378] sm:$0xff]
  %v132 = vld [vmem:[%s0 + $0x380] sm:$0xff]
  %v133 = vld [vmem:[%s0 + $0x388] sm:$0xff]
  %v134 = vld [vmem:[%s0 + $0x390] sm:$0xff]
  %v135 = vld [vmem:[%s0 + $0x398] sm:$0xff]
  %v136 = vld [vmem:[%s0 + $0x3a0] sm:$0xff]
  %v137 = vld [vmem:[%s0 + $0x3a8] sm:$0xff]
  %v138 = vld [vmem:[%s0 + $0x3b0] sm:$0xff]
  %v139 = vld [vmem:[%s0 + $0x3b8] sm:$0xff]
  %v140 = vld [vmem:[%s0 + $0x3c0] sm:$0xff]
  %v141 = vld [vmem:[%s0 + $0x3c8] sm:$0xff]
  %v142 = vld [vmem:[%s0 + $0x3d0] sm:$0xff]
  %v143 = vld [vmem:[%s0 + $0x3d8] sm:$0xff]
  %v144 = vld [vmem:[%s0 + $0x3e0] sm:$0xff]
  %v145 = vld [vmem:[%s0 + $0x3e8] sm:$0xff]
  %v146 = vld [vmem:[%s0 + $0x3f0] sm:$0xff]
  %v147 = vld [vmem:[%s0 + $0x3f8] sm:$0xff]
  %v148 = vld [vmem:[%s0 + $0x400] sm:$0xff]
  %v149 = vld [vmem:[%s0 + $0x408] sm:$0xff]
  %v150 = vld [vmem:[%s0 + $0x410] sm:$0xff]
  %v151 = vld [vmem:[%s0 + $0x418] sm:$0xff]
  %v152 = vld [vmem:[%s0 + $0x420] sm:$0xff]
  %v153 = vld [vmem:[%s0 + $0x428] sm:$0xff]
  %v154 = vld [vmem:[%s0 + $0x430] sm:$0xff]
  %v155 = vld [vmem:[%s0 + $0x438] sm:$0xff]
  %v156 = vld [vmem:[%s0 + $0x440] sm:$0xff]
  %v157 = vld [vmem:[%s0 + $0x448] sm:$0xff]
  %v158 = vld [vmem:[%s0 + $0x450] sm:$0xff]
  %v159 = vld [vmem:[%s0 + $0x458] sm:$0xff]
  %v160 = vld [vmem:[%s0 + $0x460] sm:$0xff]
  %v161 = vld [vmem:[%s0 + $0x468] sm:$0xff]
  %v162 = vld [vmem:[%s0 + $0x470] sm:$0xff]
  %v163 = vld [vmem:[%s0 + $0x478] sm:$0xff]
  %v164 = vld [vmem:[%s1] sm:$0xff]
  %v165 = vld [vmem:[%s1 + $0x8] sm:$0xff]
  %v166 = vld [vmem:[%s1 + $0x10] sm:$0xff]
  %v167 = vld [vmem:[%s1 + $0x18] sm:$0xff]
  %v168 = vld [vmem:[%s1 + $0x20] sm:$0xff]
  %v169 = vld [vmem:[%s1 + $0x28] sm:$0xff]
  %v170 = vld [vmem:[%s1 + $0x30] sm:$0xff]
  %v171 = vld [vmem:[%s1 + $0x38] sm:$0xff]
  %v172 = vld [vmem:[%s1 + $0x40] sm:$0xf]
  %v173 = vld [vmem:[%s1 + $0x48] sm:$0xf]
  %v174 = vld [vmem:[%s2] sm:$0x3]
  %v176 = vperm.slane %v174, 0
  %v177 = vperm.slane %v174, 1
  %vm180 = vcmask 293888
  %v182 = vsel %vm180, %v20, 0
  %v185 = vsel %vm180, %v21, 0
  %v188 = vsel %vm180, %v22, 0
  %v191 = vsel %vm180, %v23, 0
  %v194 = vsel %vm180, %v24, 0
  %v197 = vsel %vm180, %v25, 0
  %v200 = vsel %vm180, %v26, 0
  %v203 = vsel %vm180, %v27, 0
  %v206 = vsel %vm180, %v28, 0
  %v209 = vsel %vm180, %v29, 0
  %v212 = vsel %vm180, %v30, 0
  %v215 = vsel %vm180, %v31, 0
  %v218 = vsel %vm180, %v32, 0
  %v221 = vsel %vm180, %v33, 0
  %v224 = vsel %vm180, %v34, 0
  %v227 = vsel %vm180, %v35, 0
  %v230 = vsel %vm180, %v36, 0
  %v233 = vsel %vm180, %v37, 0
  %v236 = vsel %vm180, %v38, 0
  %v239 = vsel %vm180, %v39, 0
  %v242 = vsel %vm180, %v40, 0
  %v245 = vsel %vm180, %v41, 0
  %v248 = vsel %vm180, %v42, 0
  %v251 = vsel %vm180, %v43, 0
  %v254 = vsel %vm180, %v44, 0
  %v257 = vsel %vm180, %v45, 0
  %v260 = vsel %vm180, %v46, 0
  %v263 = vsel %vm180, %v47, 0
  %v266 = vsel %vm180, %v48, 0
  %v269 = vsel %vm180, %v49, 0
  %v272 = vsel %vm180, %v50, 0
  %v275 = vsel %vm180, %v51, 0
  %v278 = vsel %vm180, %v52, 0
  %v281 = vsel %vm180, %v53, 0
  %v284 = vsel %vm180, %v54, 0
  %v287 = vsel %vm180, %v55, 0
  %v290 = vsel %vm180, %v56, 0
  %v293 = vsel %vm180, %v57, 0
  %v296 = vsel %vm180, %v58, 0
  %v299 = vsel %vm180, %v59, 0
  %v302 = vsel %vm180, %v60, 0
  %v305 = vsel %vm180, %v61, 0
  %v308 = vsel %vm180, %v62, 0
  %v311 = vsel %vm180, %v63, 0
  %v314 = vsel %vm180, %v64, 0
  %v317 = vsel %vm180, %v65, 0
  %v320 = vsel %vm180, %v66, 0
  %v323 = vsel %vm180, %v67, 0
  %v326 = vsel %vm180, %v68, 0
  %v329 = vsel %vm180, %v69, 0
  %v332 = vsel %vm180, %v70, 0
  %v335 = vsel %vm180, %v71, 0
  %v338 = vsel %vm180, %v72, 0
  %v341 = vsel %vm180, %v73, 0
  %v344 = vsel %vm180, %v74, 0
  %v347 = vsel %vm180, %v75, 0
  %v350 = vsel %vm180, %v76, 0
  %v353 = vsel %vm180, %v77, 0
  %v356 = vsel %vm180, %v78, 0
  %v359 = vsel %vm180, %v79, 0
  %v362 = vsel %vm180, %v80, 0
  %v365 = vsel %vm180, %v81, 0
  %v368 = vsel %vm180, %v82, 0
  %v371 = vsel %vm180, %v83, 0
  %v374 = vsel %vm180, %v84, 0
  %v377 = vsel %vm180, %v85, 0
  %v380 = vsel %vm180, %v86, 0
  %v383 = vsel %vm180, %v87, 0
  %v386 = vsel %vm180, %v88, 0
  %v389 = vsel %vm180, %v89, 0
  %v392 = vsel %vm180, %v90, 0
  %v395 = vsel %vm180, %v91, 0
  %v398 = vsel %vm180, %v92, 0
  %v401 = vsel %vm180, %v93, 0
  %v404 = vsel %vm180, %v94, 0
  %v407 = vsel %vm180, %v95, 0
  %v410 = vsel %vm180, %v96, 0
  %v413 = vsel %vm180, %v97, 0
  %v416 = vsel %vm180, %v98, 0
  %v419 = vsel %vm180, %v99, 0
  %v422 = vsel %vm180, %v100, 0
  %v425 = vsel %vm180, %v101, 0
  %v428 = vsel %vm180, %v102, 0
  %v431 = vsel %vm180, %v103, 0
  %v434 = vsel %vm180, %v104, 0
  %v437 = vsel %vm180, %v105, 0
  %v440 = vsel %vm180, %v106, 0
  %v443 = vsel %vm180, %v107, 0
  %v446 = vsel %vm180, %v108, 0
  %v449 = vsel %vm180, %v109, 0
  %v452 = vsel %vm180, %v110, 0
  %v455 = vsel %vm180, %v111, 0
  %v458 = vsel %vm180, %v112, 0
  %v461 = vsel %vm180, %v113, 0
  %v464 = vsel %vm180, %v114, 0
  %v467 = vsel %vm180, %v115, 0
  %v470 = vsel %vm180, %v116, 0
  %v473 = vsel %vm180, %v117, 0
  %v476 = vsel %vm180, %v118, 0
  %v479 = vsel %vm180, %v119, 0
  %v482 = vsel %vm180, %v120, 0
  %v485 = vsel %vm180, %v121, 0
  %v488 = vsel %vm180, %v122, 0
  %v491 = vsel %vm180, %v123, 0
  %v494 = vsel %vm180, %v124, 0
  %v497 = vsel %vm180, %v125, 0
  %v500 = vsel %vm180, %v126, 0
  %v503 = vsel %vm180, %v127, 0
  %v506 = vsel %vm180, %v128, 0
  %v509 = vsel %vm180, %v129, 0
  %v512 = vsel %vm180, %v130, 0
  %v515 = vsel %vm180, %v131, 0
  %v518 = vsel %vm180, %v132, 0
  %v521 = vsel %vm180, %v133, 0
  %v524 = vsel %vm180, %v134, 0
  %v527 = vsel %vm180, %v135, 0
  %v530 = vsel %vm180, %v136, 0
  %v533 = vsel %vm180, %v137, 0
  %v536 = vsel %vm180, %v138, 0
  %v539 = vsel %vm180, %v139, 0
  %v542 = vsel %vm180, %v140, 0
  %v545 = vsel %vm180, %v141, 0
  %v548 = vsel %vm180, %v142, 0
  %v551 = vsel %vm180, %v143, 0
  %v554 = vsel %vm180, %v144, 0
  %v557 = vsel %vm180, %v145, 0
  %v560 = vsel %vm180, %v146, 0
  %v563 = vsel %vm180, %v147, 0
  %v566 = vsel %vm180, %v148, 0
  %v569 = vsel %vm180, %v149, 0
  %v572 = vsel %vm180, %v150, 0
  %v575 = vsel %vm180, %v151, 0
  %v578 = vsel %vm180, %v152, 0
  %v581 = vsel %vm180, %v153, 0
  %v584 = vsel %vm180, %v154, 0
  %v587 = vsel %vm180, %v155, 0
  %v590 = vsel %vm180, %v156, 0
  %v593 = vsel %vm180, %v157, 0
  %v596 = vsel %vm180, %v158, 0
  %v599 = vsel %vm180, %v159, 0
  %v602 = vsel %vm180, %v160, 0
  %v605 = vsel %vm180, %v161, 0
  %v608 = vsel %vm180, %v162, 0
  %v611 = vsel %vm180, %v163, 0
  %vm613 = vcmask 1043456
  %v615 = vsel %vm613, %v172, 0
  %v618 = vsel %vm613, %v173, 0
  %620 = vmatpush.msra.mxu0 0.0
  %621 = vmatpush.msra.mxu0 0.0
  %622 = vmatpush.msra.mxu0 0.0
  %623 = vmatpush.msra.mxu0 0.0
  %624 = vmatpush.msra.mxu0 0.0
  %625 = vmatpush.msra.mxu0 0.0
  %626 = vmatpush.msra.mxu0 0.0
  %627 = vmatpush.msra.mxu0 0.0
  %628 = vmatpush.msra.mxu0 0.0
  %629 = vmatpush.msra.mxu0 0.0
  %630 = vmatpush.msra.mxu0 0.0
  %631 = vmatpush.msra.mxu0 %v615
  %632 = vmatpush.msra.mxu0 %v170
  %633 = vmatpush.msra.mxu0 %v168
  %634 = vmatpush.msra.mxu0 %v166
  %635 = vmatpush.msra.mxu0 %v164
  %636 = vmatmul.f32.gmra.mxu0 %v182
  %v637 = vpop.f32.mrf.mxu0
  %v638 = vadd.f32 %v176, %v637
  %639 = vmatmul.f32.gmra.mxu0 %v185
  %v640 = vpop.f32.mrf.mxu0
  %v641 = vadd.f32 %v176, %v640
  %642 = vmatmul.f32.gmra.mxu0 %v188
  %v643 = vpop.f32.mrf.mxu0
  %v644 = vadd.f32 %v176, %v643
  %645 = vmatmul.f32.gmra.mxu0 %v191
  %v646 = vpop.f32.mrf.mxu0
  %v647 = vadd.f32 %v176, %v646
  %648 = vmatmul.f32.gmra.mxu0 %v194
  %v649 = vpop.f32.mrf.mxu0
  %v650 = vadd.f32 %v176, %v649
  %651 = vmatmul.f32.gmra.mxu0 %v197
  %v652 = vpop.f32.mrf.mxu0
  %v653 = vadd.f32 %v176, %v652
  %654 = vmatmul.f32.gmra.mxu0 %v200
  %v655 = vpop.f32.mrf.mxu0
  %v656 = vadd.f32 %v176, %v655
  %657 = vmatmul.f32.gmra.mxu0 %v203
  %v658 = vpop.f32.mrf.mxu0
  %v659 = vadd.f32 %v176, %v658
  %660 = vmatmul.f32.gmra.mxu0 %v206
  %v661 = vpop.f32.mrf.mxu0
  %v662 = vadd.f32 %v176, %v661
  %663 = vmatmul.f32.gmra.mxu0 %v209
  %v664 = vpop.f32.mrf.mxu0
  %v665 = vadd.f32 %v176, %v664
  %666 = vmatmul.f32.gmra.mxu0 %v212
  %v667 = vpop.f32.mrf.mxu0
  %v668 = vadd.f32 %v176, %v667
  %669 = vmatmul.f32.gmra.mxu0 %v215
  %v670 = vpop.f32.mrf.mxu0
  %v671 = vadd.f32 %v176, %v670
  %672 = vmatmul.f32.gmra.mxu0 %v218
  %v673 = vpop.f32.mrf.mxu0
  %v674 = vadd.f32 %v176, %v673
  %675 = vmatmul.f32.gmra.mxu0 %v221
  %v676 = vpop.f32.mrf.mxu0
  %v677 = vadd.f32 %v176, %v676
  %678 = vmatmul.f32.gmra.mxu0 %v224
  %v679 = vpop.f32.mrf.mxu0
  %v680 = vadd.f32 %v176, %v679
  %681 = vmatmul.f32.gmra.mxu0 %v227
  %v682 = vpop.f32.mrf.mxu0
  %v683 = vadd.f32 %v176, %v682
  %684 = vmatmul.f32.gmra.mxu0 %v230
  %v685 = vpop.f32.mrf.mxu0
  %v686 = vadd.f32 %v176, %v685
  %687 = vmatmul.f32.gmra.mxu0 %v233
  %v688 = vpop.f32.mrf.mxu0
  %v689 = vadd.f32 %v176, %v688
  %690 = vmatmul.f32.gmra.mxu0 %v236
  %v691 = vpop.f32.mrf.mxu0
  %v692 = vadd.f32 %v176, %v691
  %693 = vmatmul.f32.gmra.mxu0 %v239
  %v694 = vpop.f32.mrf.mxu0
  %v695 = vadd.f32 %v176, %v694
  %696 = vmatmul.f32.gmra.mxu0 %v242
  %v697 = vpop.f32.mrf.mxu0
  %v698 = vadd.f32 %v176, %v697
  %699 = vmatmul.f32.gmra.mxu0 %v245
  %v700 = vpop.f32.mrf.mxu0
  %v701 = vadd.f32 %v176, %v700
  %702 = vmatmul.f32.gmra.mxu0 %v248
  %v703 = vpop.f32.mrf.mxu0
  %v704 = vadd.f32 %v176, %v703
  %705 = vmatmul.f32.gmra.mxu0 %v251
  %v706 = vpop.f32.mrf.mxu0
  %v707 = vadd.f32 %v176, %v706
  %708 = vmatmul.f32.gmra.mxu0 %v254
  %v709 = vpop.f32.mrf.mxu0
  %v710 = vadd.f32 %v176, %v709
  %711 = vmatmul.f32.gmra.mxu0 %v257
  %v712 = vpop.f32.mrf.mxu0
  %v713 = vadd.f32 %v176, %v712
  %714 = vmatmul.f32.gmra.mxu0 %v260
  %v715 = vpop.f32.mrf.mxu0
  %v716 = vadd.f32 %v176, %v715
  %717 = vmatmul.f32.gmra.mxu0 %v263
  %v718 = vpop.f32.mrf.mxu0
  %v719 = vadd.f32 %v176, %v718
  %720 = vmatmul.f32.gmra.mxu0 %v266
  %v721 = vpop.f32.mrf.mxu0
  %v722 = vadd.f32 %v176, %v721
  %723 = vmatmul.f32.gmra.mxu0 %v269
  %v724 = vpop.f32.mrf.mxu0
  %v725 = vadd.f32 %v176, %v724
  %726 = vmatmul.f32.gmra.mxu0 %v272
  %v727 = vpop.f32.mrf.mxu0
  %v728 = vadd.f32 %v176, %v727
  %729 = vmatmul.f32.gmra.mxu0 %v275
  %v730 = vpop.f32.mrf.mxu0
  %v731 = vadd.f32 %v176, %v730
  %732 = vmatmul.f32.gmra.mxu0 %v278
  %v733 = vpop.f32.mrf.mxu0
  %v734 = vadd.f32 %v176, %v733
  %735 = vmatmul.f32.gmra.mxu0 %v281
  %v736 = vpop.f32.mrf.mxu0
  %v737 = vadd.f32 %v176, %v736
  %738 = vmatmul.f32.gmra.mxu0 %v284
  %v739 = vpop.f32.mrf.mxu0
  %v740 = vadd.f32 %v176, %v739
  %741 = vmatmul.f32.gmra.mxu0 %v287
  %v742 = vpop.f32.mrf.mxu0
  %v743 = vadd.f32 %v176, %v742
  %744 = vmatmul.f32.gmra.mxu0 %v290
  %v745 = vpop.f32.mrf.mxu0
  %v746 = vadd.f32 %v176, %v745
  %747 = vmatmul.f32.gmra.mxu0 %v293
  %v748 = vpop.f32.mrf.mxu0
  %v749 = vadd.f32 %v176, %v748
  %750 = vmatmul.f32.gmra.mxu0 %v296
  %v751 = vpop.f32.mrf.mxu0
  %v752 = vadd.f32 %v176, %v751
  %753 = vmatmul.f32.gmra.mxu0 %v299
  %v754 = vpop.f32.mrf.mxu0
  %v755 = vadd.f32 %v176, %v754
  %756 = vmatmul.f32.gmra.mxu0 %v302
  %v757 = vpop.f32.mrf.mxu0
  %v758 = vadd.f32 %v176, %v757
  %759 = vmatmul.f32.gmra.mxu0 %v305
  %v760 = vpop.f32.mrf.mxu0
  %v761 = vadd.f32 %v176, %v760
  %762 = vmatmul.f32.gmra.mxu0 %v308
  %v763 = vpop.f32.mrf.mxu0
  %v764 = vadd.f32 %v176, %v763
  %765 = vmatmul.f32.gmra.mxu0 %v311
  %v766 = vpop.f32.mrf.mxu0
  %v767 = vadd.f32 %v176, %v766
  %768 = vmatmul.f32.gmra.mxu0 %v314
  %v769 = vpop.f32.mrf.mxu0
  %v770 = vadd.f32 %v176, %v769
  %771 = vmatmul.f32.gmra.mxu0 %v317
  %v772 = vpop.f32.mrf.mxu0
  %v773 = vadd.f32 %v176, %v772
  %774 = vmatmul.f32.gmra.mxu0 %v320
  %v775 = vpop.f32.mrf.mxu0
  %v776 = vadd.f32 %v176, %v775
  %777 = vmatmul.f32.gmra.mxu0 %v323
  %v778 = vpop.f32.mrf.mxu0
  %v779 = vadd.f32 %v176, %v778
  %780 = vmatmul.f32.gmra.mxu0 %v326
  %v781 = vpop.f32.mrf.mxu0
  %v782 = vadd.f32 %v176, %v781
  %783 = vmatmul.f32.gmra.mxu0 %v329
  %v784 = vpop.f32.mrf.mxu0
  %v785 = vadd.f32 %v176, %v784
  %786 = vmatmul.f32.gmra.mxu0 %v332
  %v787 = vpop.f32.mrf.mxu0
  %v788 = vadd.f32 %v176, %v787
  %789 = vmatmul.f32.gmra.mxu0 %v335
  %v790 = vpop.f32.mrf.mxu0
  %v791 = vadd.f32 %v176, %v790
  %792 = vmatmul.f32.gmra.mxu0 %v338
  %v793 = vpop.f32.mrf.mxu0
  %v794 = vadd.f32 %v176, %v793
  %795 = vmatmul.f32.gmra.mxu0 %v341
  %v796 = vpop.f32.mrf.mxu0
  %v797 = vadd.f32 %v176, %v796
  %798 = vmatmul.f32.gmra.mxu0 %v344
  %v799 = vpop.f32.mrf.mxu0
  %v800 = vadd.f32 %v176, %v799
  %801 = vmatmul.f32.gmra.mxu0 %v347
  %v802 = vpop.f32.mrf.mxu0
  %v803 = vadd.f32 %v176, %v802
  %804 = vmatmul.f32.gmra.mxu0 %v350
  %v805 = vpop.f32.mrf.mxu0
  %v806 = vadd.f32 %v176, %v805
  %807 = vmatmul.f32.gmra.mxu0 %v353
  %v808 = vpop.f32.mrf.mxu0
  %v809 = vadd.f32 %v176, %v808
  %810 = vmatmul.f32.gmra.mxu0 %v356
  %v811 = vpop.f32.mrf.mxu0
  %v812 = vadd.f32 %v176, %v811
  %813 = vmatmul.f32.gmra.mxu0 %v359
  %v814 = vpop.f32.mrf.mxu0
  %v815 = vadd.f32 %v176, %v814
  %816 = vmatmul.f32.gmra.mxu0 %v362
  %v817 = vpop.f32.mrf.mxu0
  %v818 = vadd.f32 %v176, %v817
  %819 = vmatmul.f32.gmra.mxu0 %v365
  %v820 = vpop.f32.mrf.mxu0
  %v821 = vadd.f32 %v176, %v820
  %822 = vmatmul.f32.gmra.mxu0 %v368
  %v823 = vpop.f32.mrf.mxu0
  %v824 = vadd.f32 %v176, %v823
  %825 = vmatmul.f32.gmra.mxu0 %v371
  %v826 = vpop.f32.mrf.mxu0
  %v827 = vadd.f32 %v176, %v826
  %828 = vmatmul.f32.gmra.mxu0 %v374
  %v829 = vpop.f32.mrf.mxu0
  %v830 = vadd.f32 %v176, %v829
  %831 = vmatmul.f32.gmra.mxu0 %v377
  %v832 = vpop.f32.mrf.mxu0
  %v833 = vadd.f32 %v176, %v832
  %834 = vmatmul.f32.gmra.mxu0 %v380
  %v835 = vpop.f32.mrf.mxu0
  %v836 = vadd.f32 %v176, %v835
  %837 = vmatmul.f32.gmra.mxu0 %v383
  %v838 = vpop.f32.mrf.mxu0
  %v839 = vadd.f32 %v176, %v838
  %840 = vmatmul.f32.gmra.mxu0 %v386
  %v841 = vpop.f32.mrf.mxu0
  %v842 = vadd.f32 %v176, %v841
  %843 = vmatmul.f32.gmra.mxu0 %v389
  %v844 = vpop.f32.mrf.mxu0
  %v845 = vadd.f32 %v176, %v844
  %846 = vmatmul.f32.gmra.mxu0 %v392
  %v847 = vpop.f32.mrf.mxu0
  %v848 = vadd.f32 %v176, %v847
  %849 = vmatmul.f32.gmra.mxu0 %v395
  %v850 = vpop.f32.mrf.mxu0
  %v851 = vadd.f32 %v176, %v850
  %852 = vmatmul.f32.gmra.mxu0 %v398
  %v853 = vpop.f32.mrf.mxu0
  %v854 = vadd.f32 %v176, %v853
  %855 = vmatmul.f32.gmra.mxu0 %v401
  %v856 = vpop.f32.mrf.mxu0
  %v857 = vadd.f32 %v176, %v856
  %858 = vmatmul.f32.gmra.mxu0 %v404
  %v859 = vpop.f32.mrf.mxu0
  %v860 = vadd.f32 %v176, %v859
  %861 = vmatmul.f32.gmra.mxu0 %v407
  %v862 = vpop.f32.mrf.mxu0
  %v863 = vadd.f32 %v176, %v862
  %864 = vmatmul.f32.gmra.mxu0 %v410
  %v865 = vpop.f32.mrf.mxu0
  %v866 = vadd.f32 %v176, %v865
  %867 = vmatmul.f32.gmra.mxu0 %v413
  %v868 = vpop.f32.mrf.mxu0
  %v869 = vadd.f32 %v176, %v868
  %870 = vmatmul.f32.gmra.mxu0 %v416
  %v871 = vpop.f32.mrf.mxu0
  %v872 = vadd.f32 %v176, %v871
  %873 = vmatmul.f32.gmra.mxu0 %v419
  %v874 = vpop.f32.mrf.mxu0
  %v875 = vadd.f32 %v176, %v874
  %876 = vmatmul.f32.gmra.mxu0 %v422
  %v877 = vpop.f32.mrf.mxu0
  %v878 = vadd.f32 %v176, %v877
  %879 = vmatmul.f32.gmra.mxu0 %v425
  %v880 = vpop.f32.mrf.mxu0
  %v881 = vadd.f32 %v176, %v880
  %882 = vmatmul.f32.gmra.mxu0 %v428
  %v883 = vpop.f32.mrf.mxu0
  %v884 = vadd.f32 %v176, %v883
  %885 = vmatmul.f32.gmra.mxu0 %v431
  %v886 = vpop.f32.mrf.mxu0
  %v887 = vadd.f32 %v176, %v886
  %888 = vmatmul.f32.gmra.mxu0 %v434
  %v889 = vpop.f32.mrf.mxu0
  %v890 = vadd.f32 %v176, %v889
  %891 = vmatmul.f32.gmra.mxu0 %v437
  %v892 = vpop.f32.mrf.mxu0
  %v893 = vadd.f32 %v176, %v892
  %894 = vmatmul.f32.gmra.mxu0 %v440
  %v895 = vpop.f32.mrf.mxu0
  %v896 = vadd.f32 %v176, %v895
  %897 = vmatmul.f32.gmra.mxu0 %v443
  %v898 = vpop.f32.mrf.mxu0
  %v899 = vadd.f32 %v176, %v898
  %900 = vmatmul.f32.gmra.mxu0 %v446
  %v901 = vpop.f32.mrf.mxu0
  %v902 = vadd.f32 %v176, %v901
  %903 = vmatmul.f32.gmra.mxu0 %v449
  %v904 = vpop.f32.mrf.mxu0
  %v905 = vadd.f32 %v176, %v904
  %906 = vmatmul.f32.gmra.mxu0 %v452
  %v907 = vpop.f32.mrf.mxu0
  %v908 = vadd.f32 %v176, %v907
  %909 = vmatmul.f32.gmra.mxu0 %v455
  %v910 = vpop.f32.mrf.mxu0
  %v911 = vadd.f32 %v176, %v910
  %912 = vmatmul.f32.gmra.mxu0 %v458
  %v913 = vpop.f32.mrf.mxu0
  %v914 = vadd.f32 %v176, %v913
  %915 = vmatmul.f32.gmra.mxu0 %v461
  %v916 = vpop.f32.mrf.mxu0
  %v917 = vadd.f32 %v176, %v916
  %918 = vmatmul.f32.gmra.mxu0 %v464
  %v919 = vpop.f32.mrf.mxu0
  %v920 = vadd.f32 %v176, %v919
  %921 = vmatmul.f32.gmra.mxu0 %v467
  %v922 = vpop.f32.mrf.mxu0
  %v923 = vadd.f32 %v176, %v922
  %924 = vmatmul.f32.gmra.mxu0 %v470
  %v925 = vpop.f32.mrf.mxu0
  %v926 = vadd.f32 %v176, %v925
  %927 = vmatmul.f32.gmra.mxu0 %v473
  %v928 = vpop.f32.mrf.mxu0
  %v929 = vadd.f32 %v176, %v928
  %930 = vmatmul.f32.gmra.mxu0 %v476
  %v931 = vpop.f32.mrf.mxu0
  %v932 = vadd.f32 %v176, %v931
  %933 = vmatmul.f32.gmra.mxu0 %v479
  %v934 = vpop.f32.mrf.mxu0
  %v935 = vadd.f32 %v176, %v934
  %936 = vmatmul.f32.gmra.mxu0 %v482
  %v937 = vpop.f32.mrf.mxu0
  %v938 = vadd.f32 %v176, %v937
  %939 = vmatmul.f32.gmra.mxu0 %v485
  %v940 = vpop.f32.mrf.mxu0
  %v941 = vadd.f32 %v176, %v940
  %942 = vmatmul.f32.gmra.mxu0 %v488
  %v943 = vpop.f32.mrf.mxu0
  %v944 = vadd.f32 %v176, %v943
  %945 = vmatmul.f32.gmra.mxu0 %v491
  %v946 = vpop.f32.mrf.mxu0
  %v947 = vadd.f32 %v176, %v946
  %948 = vmatmul.f32.gmra.mxu0 %v494
  %v949 = vpop.f32.mrf.mxu0
  %v950 = vadd.f32 %v176, %v949
  %951 = vmatmul.f32.gmra.mxu0 %v497
  %v952 = vpop.f32.mrf.mxu0
  %v953 = vadd.f32 %v176, %v952
  %954 = vmatmul.f32.gmra.mxu0 %v500
  %v955 = vpop.f32.mrf.mxu0
  %v956 = vadd.f32 %v176, %v955
  %957 = vmatmul.f32.gmra.mxu0 %v503
  %v958 = vpop.f32.mrf.mxu0
  %v959 = vadd.f32 %v176, %v958
  %960 = vmatmul.f32.gmra.mxu0 %v506
  %v961 = vpop.f32.mrf.mxu0
  %v962 = vadd.f32 %v176, %v961
  %963 = vmatmul.f32.gmra.mxu0 %v509
  %v964 = vpop.f32.mrf.mxu0
  %v965 = vadd.f32 %v176, %v964
  %966 = vmatmul.f32.gmra.mxu0 %v512
  %v967 = vpop.f32.mrf.mxu0
  %v968 = vadd.f32 %v176, %v967
  %969 = vmatmul.f32.gmra.mxu0 %v515
  %v970 = vpop.f32.mrf.mxu0
  %v971 = vadd.f32 %v176, %v970
  %972 = vmatmul.f32.gmra.mxu0 %v518
  %v973 = vpop.f32.mrf.mxu0
  %v974 = vadd.f32 %v176, %v973
  %975 = vmatmul.f32.gmra.mxu0 %v521
  %v976 = vpop.f32.mrf.mxu0
  %v977 = vadd.f32 %v176, %v976
  %978 = vmatmul.f32.gmra.mxu0 %v524
  %v979 = vpop.f32.mrf.mxu0
  %v980 = vadd.f32 %v176, %v979
  %981 = vmatmul.f32.gmra.mxu0 %v527
  %v982 = vpop.f32.mrf.mxu0
  %v983 = vadd.f32 %v176, %v982
  %984 = vmatmul.f32.gmra.mxu0 %v530
  %v985 = vpop.f32.mrf.mxu0
  %v986 = vadd.f32 %v176, %v985
  %987 = vmatmul.f32.gmra.mxu0 %v533
  %v988 = vpop.f32.mrf.mxu0
  %v989 = vadd.f32 %v176, %v988
  %990 = vmatmul.f32.gmra.mxu0 %v536
  %v991 = vpop.f32.mrf.mxu0
  %v992 = vadd.f32 %v176, %v991
  %993 = vmatmul.f32.gmra.mxu0 %v539
  %v994 = vpop.f32.mrf.mxu0
  %v995 = vadd.f32 %v176, %v994
  %996 = vmatmul.f32.gmra.mxu0 %v542
  %v997 = vpop.f32.mrf.mxu0
  %v998 = vadd.f32 %v176, %v997
  %999 = vmatmul.f32.gmra.mxu0 %v545
  %v1000 = vpop.f32.mrf.mxu0
  %v1001 = vadd.f32 %v176, %v1000
  %1002 = vmatmul.f32.gmra.mxu0 %v548
  %v1003 = vpop.f32.mrf.mxu0
  %v1004 = vadd.f32 %v176, %v1003
  %1005 = vmatmul.f32.gmra.mxu0 %v551
  %v1006 = vpop.f32.mrf.mxu0
  %v1007 = vadd.f32 %v176, %v1006
  %1008 = vmatmul.f32.gmra.mxu0 %v554
  %v1009 = vpop.f32.mrf.mxu0
  %v1010 = vadd.f32 %v176, %v1009
  %1011 = vmatmul.f32.gmra.mxu0 %v557
  %v1012 = vpop.f32.mrf.mxu0
  %v1013 = vadd.f32 %v176, %v1012
  %1014 = vmatmul.f32.gmra.mxu0 %v560
  %v1015 = vpop.f32.mrf.mxu0
  %v1016 = vadd.f32 %v176, %v1015
  %1017 = vmatmul.f32.gmra.mxu0 %v563
  %v1018 = vpop.f32.mrf.mxu0
  %v1019 = vadd.f32 %v176, %v1018
  %1020 = vmatmul.f32.gmra.mxu0 %v566
  %v1021 = vpop.f32.mrf.mxu0
  %v1022 = vadd.f32 %v176, %v1021
  %1023 = vmatmul.f32.gmra.mxu0 %v569
  %v1024 = vpop.f32.mrf.mxu0
  %v1025 = vadd.f32 %v176, %v1024
  %1026 = vmatmul.f32.gmra.mxu0 %v572
  %v1027 = vpop.f32.mrf.mxu0
  %v1028 = vadd.f32 %v176, %v1027
  %1029 = vmatmul.f32.gmra.mxu0 %v575
  %v1030 = vpop.f32.mrf.mxu0
  %v1031 = vadd.f32 %v176, %v1030
  %1032 = vmatmul.f32.gmra.mxu0 %v578
  %v1033 = vpop.f32.mrf.mxu0
  %v1034 = vadd.f32 %v176, %v1033
  %1035 = vmatmul.f32.gmra.mxu0 %v581
  %v1036 = vpop.f32.mrf.mxu0
  %v1037 = vadd.f32 %v176, %v1036
  %1038 = vmatmul.f32.gmra.mxu0 %v584
  %v1039 = vpop.f32.mrf.mxu0
  %v1040 = vadd.f32 %v176, %v1039
  %1041 = vmatmul.f32.gmra.mxu0 %v587
  %v1042 = vpop.f32.mrf.mxu0
  %v1043 = vadd.f32 %v176, %v1042
  %1044 = vmatmul.f32.gmra.mxu0 %v590
  %v1045 = vpop.f32.mrf.mxu0
  %v1046 = vadd.f32 %v176, %v1045
  %1047 = vmatmul.f32.gmra.mxu0 %v593
  %v1048 = vpop.f32.mrf.mxu0
  %v1049 = vadd.f32 %v176, %v1048
  %1050 = vmatmul.f32.gmra.mxu0 %v596
  %v1051 = vpop.f32.mrf.mxu0
  %v1052 = vadd.f32 %v176, %v1051
  %1053 = vmatmul.f32.gmra.mxu0 %v599
  %v1054 = vpop.f32.mrf.mxu0
  %v1055 = vadd.f32 %v176, %v1054
  %1056 = vmatmul.f32.gmra.mxu0 %v602
  %v1057 = vpop.f32.mrf.mxu0
  %v1058 = vadd.f32 %v176, %v1057
  %1059 = vmatmul.f32.gmra.mxu0 %v605
  %v1060 = vpop.f32.mrf.mxu0
  %v1061 = vadd.f32 %v176, %v1060
  %1062 = vmatmul.f32.gmra.mxu0 %v608
  %v1063 = vpop.f32.mrf.mxu0
  %v1064 = vadd.f32 %v176, %v1063
  %1065 = vmatmul.f32.gmra.mxu0 %v611
  %v1066 = vpop.f32.mrf.mxu0
  %v1067 = vadd.f32 %v176, %v1066
  %1068 = vdwg.mxu0
  %1069 = vmatpush.msra.mxu0 0.0
  %1070 = vmatpush.msra.mxu0 0.0
  %1071 = vmatpush.msra.mxu0 0.0
  %1072 = vmatpush.msra.mxu0 0.0
  %1073 = vmatpush.msra.mxu0 0.0
  %1074 = vmatpush.msra.mxu0 0.0
  %1075 = vmatpush.msra.mxu0 0.0
  %1076 = vmatpush.msra.mxu0 0.0
  %1077 = vmatpush.msra.mxu0 0.0
  %1078 = vmatpush.msra.mxu0 0.0
  %1079 = vmatpush.msra.mxu0 0.0
  %1080 = vmatpush.msra.mxu0 %v618
  %1081 = vmatpush.msra.mxu0 %v171
  %1082 = vmatpush.msra.mxu0 %v169
  %1083 = vmatpush.msra.mxu0 %v167
  %1084 = vmatpush.msra.mxu0 %v165
  %1085 = vmatmul.f32.gmra.mxu0 %v182
  %v1086 = vpop.f32.mrf.mxu0
  %v1087 = vadd.f32 %v177, %v1086
  %1088 = vmatmul.f32.gmra.mxu0 %v185
  %v1089 = vpop.f32.mrf.mxu0
  %v1090 = vadd.f32 %v177, %v1089
  %1091 = vmatmul.f32.gmra.mxu0 %v188
  %v1092 = vpop.f32.mrf.mxu0
  %v1093 = vadd.f32 %v177, %v1092
  %1094 = vmatmul.f32.gmra.mxu0 %v191
  %v1095 = vpop.f32.mrf.mxu0
  %v1096 = vadd.f32 %v177, %v1095
  %1097 = vmatmul.f32.gmra.mxu0 %v194
  %v1098 = vpop.f32.mrf.mxu0
  %v1099 = vadd.f32 %v177, %v1098
  %1100 = vmatmul.f32.gmra.mxu0 %v197
  %v1101 = vpop.f32.mrf.mxu0
  %v1102 = vadd.f32 %v177, %v1101
  %1103 = vmatmul.f32.gmra.mxu0 %v200
  %v1104 = vpop.f32.mrf.mxu0
  %v1105 = vadd.f32 %v177, %v1104
  %1106 = vmatmul.f32.gmra.mxu0 %v203
  %v1107 = vpop.f32.mrf.mxu0
  %v1108 = vadd.f32 %v177, %v1107
  %1109 = vmatmul.f32.gmra.mxu0 %v206
  %v1110 = vpop.f32.mrf.mxu0
  %v1111 = vadd.f32 %v177, %v1110
  %1112 = vmatmul.f32.gmra.mxu0 %v209
  %v1113 = vpop.f32.mrf.mxu0
  %v1114 = vadd.f32 %v177, %v1113
  %1115 = vmatmul.f32.gmra.mxu0 %v212
  %v1116 = vpop.f32.mrf.mxu0
  %v1117 = vadd.f32 %v177, %v1116
  %1118 = vmatmul.f32.gmra.mxu0 %v215
  %v1119 = vpop.f32.mrf.mxu0
  %v1120 = vadd.f32 %v177, %v1119
  %1121 = vmatmul.f32.gmra.mxu0 %v218
  %v1122 = vpop.f32.mrf.mxu0
  %v1123 = vadd.f32 %v177, %v1122
  %1124 = vmatmul.f32.gmra.mxu0 %v221
  %v1125 = vpop.f32.mrf.mxu0
  %v1126 = vadd.f32 %v177, %v1125
  %1127 = vmatmul.f32.gmra.mxu0 %v224
  %v1128 = vpop.f32.mrf.mxu0
  %v1129 = vadd.f32 %v177, %v1128
  %1130 = vmatmul.f32.gmra.mxu0 %v227
  %v1131 = vpop.f32.mrf.mxu0
  %v1132 = vadd.f32 %v177, %v1131
  %1133 = vmatmul.f32.gmra.mxu0 %v230
  %v1134 = vpop.f32.mrf.mxu0
  %v1135 = vadd.f32 %v177, %v1134
  %1136 = vmatmul.f32.gmra.mxu0 %v233
  %v1137 = vpop.f32.mrf.mxu0
  %v1138 = vadd.f32 %v177, %v1137
  %1139 = vmatmul.f32.gmra.mxu0 %v236
  %v1140 = vpop.f32.mrf.mxu0
  %v1141 = vadd.f32 %v177, %v1140
  %1142 = vmatmul.f32.gmra.mxu0 %v239
  %v1143 = vpop.f32.mrf.mxu0
  %v1144 = vadd.f32 %v177, %v1143
  %1145 = vmatmul.f32.gmra.mxu0 %v242
  %v1146 = vpop.f32.mrf.mxu0
  %v1147 = vadd.f32 %v177, %v1146
  %1148 = vmatmul.f32.gmra.mxu0 %v245
  %v1149 = vpop.f32.mrf.mxu0
  %v1150 = vadd.f32 %v177, %v1149
  %1151 = vmatmul.f32.gmra.mxu0 %v248
  %v1152 = vpop.f32.mrf.mxu0
  %v1153 = vadd.f32 %v177, %v1152
  %1154 = vmatmul.f32.gmra.mxu0 %v251
  %v1155 = vpop.f32.mrf.mxu0
  %v1156 = vadd.f32 %v177, %v1155
  %1157 = vmatmul.f32.gmra.mxu0 %v254
  %v1158 = vpop.f32.mrf.mxu0
  %v1159 = vadd.f32 %v177, %v1158
  %1160 = vmatmul.f32.gmra.mxu0 %v257
  %v1161 = vpop.f32.mrf.mxu0
  %v1162 = vadd.f32 %v177, %v1161
  %1163 = vmatmul.f32.gmra.mxu0 %v260
  %v1164 = vpop.f32.mrf.mxu0
  %v1165 = vadd.f32 %v177, %v1164
  %1166 = vmatmul.f32.gmra.mxu0 %v263
  %v1167 = vpop.f32.mrf.mxu0
  %v1168 = vadd.f32 %v177, %v1167
  %1169 = vmatmul.f32.gmra.mxu0 %v266
  %v1170 = vpop.f32.mrf.mxu0
  %v1171 = vadd.f32 %v177, %v1170
  %1172 = vmatmul.f32.gmra.mxu0 %v269
  %v1173 = vpop.f32.mrf.mxu0
  %v1174 = vadd.f32 %v177, %v1173
  %1175 = vmatmul.f32.gmra.mxu0 %v272
  %v1176 = vpop.f32.mrf.mxu0
  %v1177 = vadd.f32 %v177, %v1176
  %1178 = vmatmul.f32.gmra.mxu0 %v275
  %v1179 = vpop.f32.mrf.mxu0
  %v1180 = vadd.f32 %v177, %v1179
  %1181 = vmatmul.f32.gmra.mxu0 %v278
  %v1182 = vpop.f32.mrf.mxu0
  %v1183 = vadd.f32 %v177, %v1182
  %1184 = vmatmul.f32.gmra.mxu0 %v281
  %v1185 = vpop.f32.mrf.mxu0
  %v1186 = vadd.f32 %v177, %v1185
  %1187 = vmatmul.f32.gmra.mxu0 %v284
  %v1188 = vpop.f32.mrf.mxu0
  %v1189 = vadd.f32 %v177, %v1188
  %1190 = vmatmul.f32.gmra.mxu0 %v287
  %v1191 = vpop.f32.mrf.mxu0
  %v1192 = vadd.f32 %v177, %v1191
  %1193 = vmatmul.f32.gmra.mxu0 %v290
  %v1194 = vpop.f32.mrf.mxu0
  %v1195 = vadd.f32 %v177, %v1194
  %1196 = vmatmul.f32.gmra.mxu0 %v293
  %v1197 = vpop.f32.mrf.mxu0
  %v1198 = vadd.f32 %v177, %v1197
  %1199 = vmatmul.f32.gmra.mxu0 %v296
  %v1200 = vpop.f32.mrf.mxu0
  %v1201 = vadd.f32 %v177, %v1200
  %1202 = vmatmul.f32.gmra.mxu0 %v299
  %v1203 = vpop.f32.mrf.mxu0
  %v1204 = vadd.f32 %v177, %v1203
  %1205 = vmatmul.f32.gmra.mxu0 %v302
  %v1206 = vpop.f32.mrf.mxu0
  %v1207 = vadd.f32 %v177, %v1206
  %1208 = vmatmul.f32.gmra.mxu0 %v305
  %v1209 = vpop.f32.mrf.mxu0
  %v1210 = vadd.f32 %v177, %v1209
  %1211 = vmatmul.f32.gmra.mxu0 %v308
  %v1212 = vpop.f32.mrf.mxu0
  %v1213 = vadd.f32 %v177, %v1212
  %1214 = vmatmul.f32.gmra.mxu0 %v311
  %v1215 = vpop.f32.mrf.mxu0
  %v1216 = vadd.f32 %v177, %v1215
  %1217 = vmatmul.f32.gmra.mxu0 %v314
  %v1218 = vpop.f32.mrf.mxu0
  %v1219 = vadd.f32 %v177, %v1218
  %1220 = vmatmul.f32.gmra.mxu0 %v317
  %v1221 = vpop.f32.mrf.mxu0
  %v1222 = vadd.f32 %v177, %v1221
  %1223 = vmatmul.f32.gmra.mxu0 %v320
  %v1224 = vpop.f32.mrf.mxu0
  %v1225 = vadd.f32 %v177, %v1224
  %1226 = vmatmul.f32.gmra.mxu0 %v323
  %v1227 = vpop.f32.mrf.mxu0
  %v1228 = vadd.f32 %v177, %v1227
  %1229 = vmatmul.f32.gmra.mxu0 %v326
  %v1230 = vpop.f32.mrf.mxu0
  %v1231 = vadd.f32 %v177, %v1230
  %1232 = vmatmul.f32.gmra.mxu0 %v329
  %v1233 = vpop.f32.mrf.mxu0
  %v1234 = vadd.f32 %v177, %v1233
  %1235 = vmatmul.f32.gmra.mxu0 %v332
  %v1236 = vpop.f32.mrf.mxu0
  %v1237 = vadd.f32 %v177, %v1236
  %1238 = vmatmul.f32.gmra.mxu0 %v335
  %v1239 = vpop.f32.mrf.mxu0
  %v1240 = vadd.f32 %v177, %v1239
  %1241 = vmatmul.f32.gmra.mxu0 %v338
  %v1242 = vpop.f32.mrf.mxu0
  %v1243 = vadd.f32 %v177, %v1242
  %1244 = vmatmul.f32.gmra.mxu0 %v341
  %v1245 = vpop.f32.mrf.mxu0
  %v1246 = vadd.f32 %v177, %v1245
  %1247 = vmatmul.f32.gmra.mxu0 %v344
  %v1248 = vpop.f32.mrf.mxu0
  %v1249 = vadd.f32 %v177, %v1248
  %1250 = vmatmul.f32.gmra.mxu0 %v347
  %v1251 = vpop.f32.mrf.mxu0
  %v1252 = vadd.f32 %v177, %v1251
  %1253 = vmatmul.f32.gmra.mxu0 %v350
  %v1254 = vpop.f32.mrf.mxu0
  %v1255 = vadd.f32 %v177, %v1254
  %1256 = vmatmul.f32.gmra.mxu0 %v353
  %v1257 = vpop.f32.mrf.mxu0
  %v1258 = vadd.f32 %v177, %v1257
  %1259 = vmatmul.f32.gmra.mxu0 %v356
  %v1260 = vpop.f32.mrf.mxu0
  %v1261 = vadd.f32 %v177, %v1260
  %1262 = vmatmul.f32.gmra.mxu0 %v359
  %v1263 = vpop.f32.mrf.mxu0
  %v1264 = vadd.f32 %v177, %v1263
  %1265 = vmatmul.f32.gmra.mxu0 %v362
  %v1266 = vpop.f32.mrf.mxu0
  %v1267 = vadd.f32 %v177, %v1266
  %1268 = vmatmul.f32.gmra.mxu0 %v365
  %v1269 = vpop.f32.mrf.mxu0
  %v1270 = vadd.f32 %v177, %v1269
  %1271 = vmatmul.f32.gmra.mxu0 %v368
  %v1272 = vpop.f32.mrf.mxu0
  %v1273 = vadd.f32 %v177, %v1272
  %1274 = vmatmul.f32.gmra.mxu0 %v371
  %v1275 = vpop.f32.mrf.mxu0
  %v1276 = vadd.f32 %v177, %v1275
  %1277 = vmatmul.f32.gmra.mxu0 %v374
  %v1278 = vpop.f32.mrf.mxu0
  %v1279 = vadd.f32 %v177, %v1278
  %1280 = vmatmul.f32.gmra.mxu0 %v377
  %v1281 = vpop.f32.mrf.mxu0
  %v1282 = vadd.f32 %v177, %v1281
  %1283 = vmatmul.f32.gmra.mxu0 %v380
  %v1284 = vpop.f32.mrf.mxu0
  %v1285 = vadd.f32 %v177, %v1284
  %1286 = vmatmul.f32.gmra.mxu0 %v383
  %v1287 = vpop.f32.mrf.mxu0
  %v1288 = vadd.f32 %v177, %v1287
  %1289 = vmatmul.f32.gmra.mxu0 %v386
  %v1290 = vpop.f32.mrf.mxu0
  %v1291 = vadd.f32 %v177, %v1290
  %1292 = vmatmul.f32.gmra.mxu0 %v389
  %v1293 = vpop.f32.mrf.mxu0
  %v1294 = vadd.f32 %v177, %v1293
  %1295 = vmatmul.f32.gmra.mxu0 %v392
  %v1296 = vpop.f32.mrf.mxu0
  %v1297 = vadd.f32 %v177, %v1296
  %1298 = vmatmul.f32.gmra.mxu0 %v395
  %v1299 = vpop.f32.mrf.mxu0
  %v1300 = vadd.f32 %v177, %v1299
  %1301 = vmatmul.f32.gmra.mxu0 %v398
  %v1302 = vpop.f32.mrf.mxu0
  %v1303 = vadd.f32 %v177, %v1302
  %1304 = vmatmul.f32.gmra.mxu0 %v401
  %v1305 = vpop.f32.mrf.mxu0
  %v1306 = vadd.f32 %v177, %v1305
  %1307 = vmatmul.f32.gmra.mxu0 %v404
  %v1308 = vpop.f32.mrf.mxu0
  %v1309 = vadd.f32 %v177, %v1308
  %1310 = vmatmul.f32.gmra.mxu0 %v407
  %v1311 = vpop.f32.mrf.mxu0
  %v1312 = vadd.f32 %v177, %v1311
  %1313 = vmatmul.f32.gmra.mxu0 %v410
  %v1314 = vpop.f32.mrf.mxu0
  %v1315 = vadd.f32 %v177, %v1314
  %1316 = vmatmul.f32.gmra.mxu0 %v413
  %v1317 = vpop.f32.mrf.mxu0
  %v1318 = vadd.f32 %v177, %v1317
  %1319 = vmatmul.f32.gmra.mxu0 %v416
  %v1320 = vpop.f32.mrf.mxu0
  %v1321 = vadd.f32 %v177, %v1320
  %1322 = vmatmul.f32.gmra.mxu0 %v419
  %v1323 = vpop.f32.mrf.mxu0
  %v1324 = vadd.f32 %v177, %v1323
  %1325 = vmatmul.f32.gmra.mxu0 %v422
  %v1326 = vpop.f32.mrf.mxu0
  %v1327 = vadd.f32 %v177, %v1326
  %1328 = vmatmul.f32.gmra.mxu0 %v425
  %v1329 = vpop.f32.mrf.mxu0
  %v1330 = vadd.f32 %v177, %v1329
  %1331 = vmatmul.f32.gmra.mxu0 %v428
  %v1332 = vpop.f32.mrf.mxu0
  %v1333 = vadd.f32 %v177, %v1332
  %1334 = vmatmul.f32.gmra.mxu0 %v431
  %v1335 = vpop.f32.mrf.mxu0
  %v1336 = vadd.f32 %v177, %v1335
  %1337 = vmatmul.f32.gmra.mxu0 %v434
  %v1338 = vpop.f32.mrf.mxu0
  %v1339 = vadd.f32 %v177, %v1338
  %1340 = vmatmul.f32.gmra.mxu0 %v437
  %v1341 = vpop.f32.mrf.mxu0
  %v1342 = vadd.f32 %v177, %v1341
  %1343 = vmatmul.f32.gmra.mxu0 %v440
  %v1344 = vpop.f32.mrf.mxu0
  %v1345 = vadd.f32 %v177, %v1344
  %1346 = vmatmul.f32.gmra.mxu0 %v443
  %v1347 = vpop.f32.mrf.mxu0
  %v1348 = vadd.f32 %v177, %v1347
  %1349 = vmatmul.f32.gmra.mxu0 %v446
  %v1350 = vpop.f32.mrf.mxu0
  %v1351 = vadd.f32 %v177, %v1350
  %1352 = vmatmul.f32.gmra.mxu0 %v449
  %v1353 = vpop.f32.mrf.mxu0
  %v1354 = vadd.f32 %v177, %v1353
  %1355 = vmatmul.f32.gmra.mxu0 %v452
  %v1356 = vpop.f32.mrf.mxu0
  %v1357 = vadd.f32 %v177, %v1356
  %1358 = vmatmul.f32.gmra.mxu0 %v455
  %v1359 = vpop.f32.mrf.mxu0
  %v1360 = vadd.f32 %v177, %v1359
  %1361 = vmatmul.f32.gmra.mxu0 %v458
  %v1362 = vpop.f32.mrf.mxu0
  %v1363 = vadd.f32 %v177, %v1362
  %1364 = vmatmul.f32.gmra.mxu0 %v461
  %v1365 = vpop.f32.mrf.mxu0
  %v1366 = vadd.f32 %v177, %v1365
  %1367 = vmatmul.f32.gmra.mxu0 %v464
  %v1368 = vpop.f32.mrf.mxu0
  %v1369 = vadd.f32 %v177, %v1368
  %1370 = vmatmul.f32.gmra.mxu0 %v467
  %v1371 = vpop.f32.mrf.mxu0
  %v1372 = vadd.f32 %v177, %v1371
  %1373 = vmatmul.f32.gmra.mxu0 %v470
  %v1374 = vpop.f32.mrf.mxu0
  %v1375 = vadd.f32 %v177, %v1374
  %1376 = vmatmul.f32.gmra.mxu0 %v473
  %v1377 = vpop.f32.mrf.mxu0
  %v1378 = vadd.f32 %v177, %v1377
  %1379 = vmatmul.f32.gmra.mxu0 %v476
  %v1380 = vpop.f32.mrf.mxu0
  %v1381 = vadd.f32 %v177, %v1380
  %1382 = vmatmul.f32.gmra.mxu0 %v479
  %v1383 = vpop.f32.mrf.mxu0
  %v1384 = vadd.f32 %v177, %v1383
  %1385 = vmatmul.f32.gmra.mxu0 %v482
  %v1386 = vpop.f32.mrf.mxu0
  %v1387 = vadd.f32 %v177, %v1386
  %1388 = vmatmul.f32.gmra.mxu0 %v485
  %v1389 = vpop.f32.mrf.mxu0
  %v1390 = vadd.f32 %v177, %v1389
  %1391 = vmatmul.f32.gmra.mxu0 %v488
  %v1392 = vpop.f32.mrf.mxu0
  %v1393 = vadd.f32 %v177, %v1392
  %1394 = vmatmul.f32.gmra.mxu0 %v491
  %v1395 = vpop.f32.mrf.mxu0
  %v1396 = vadd.f32 %v177, %v1395
  %1397 = vmatmul.f32.gmra.mxu0 %v494
  %v1398 = vpop.f32.mrf.mxu0
  %v1399 = vadd.f32 %v177, %v1398
  %1400 = vmatmul.f32.gmra.mxu0 %v497
  %v1401 = vpop.f32.mrf.mxu0
  %v1402 = vadd.f32 %v177, %v1401
  %1403 = vmatmul.f32.gmra.mxu0 %v500
  %v1404 = vpop.f32.mrf.mxu0
  %v1405 = vadd.f32 %v177, %v1404
  %1406 = vmatmul.f32.gmra.mxu0 %v503
  %v1407 = vpop.f32.mrf.mxu0
  %v1408 = vadd.f32 %v177, %v1407
  %1409 = vmatmul.f32.gmra.mxu0 %v506
  %v1410 = vpop.f32.mrf.mxu0
  %v1411 = vadd.f32 %v177, %v1410
  %1412 = vmatmul.f32.gmra.mxu0 %v509
  %v1413 = vpop.f32.mrf.mxu0
  %v1414 = vadd.f32 %v177, %v1413
  %1415 = vmatmul.f32.gmra.mxu0 %v512
  %v1416 = vpop.f32.mrf.mxu0
  %v1417 = vadd.f32 %v177, %v1416
  %1418 = vmatmul.f32.gmra.mxu0 %v515
  %v1419 = vpop.f32.mrf.mxu0
  %v1420 = vadd.f32 %v177, %v1419
  %1421 = vmatmul.f32.gmra.mxu0 %v518
  %v1422 = vpop.f32.mrf.mxu0
  %v1423 = vadd.f32 %v177, %v1422
  %1424 = vmatmul.f32.gmra.mxu0 %v521
  %v1425 = vpop.f32.mrf.mxu0
  %v1426 = vadd.f32 %v177, %v1425
  %1427 = vmatmul.f32.gmra.mxu0 %v524
  %v1428 = vpop.f32.mrf.mxu0
  %v1429 = vadd.f32 %v177, %v1428
  %1430 = vmatmul.f32.gmra.mxu0 %v527
  %v1431 = vpop.f32.mrf.mxu0
  %v1432 = vadd.f32 %v177, %v1431
  %1433 = vmatmul.f32.gmra.mxu0 %v530
  %v1434 = vpop.f32.mrf.mxu0
  %v1435 = vadd.f32 %v177, %v1434
  %1436 = vmatmul.f32.gmra.mxu0 %v533
  %v1437 = vpop.f32.mrf.mxu0
  %v1438 = vadd.f32 %v177, %v1437
  %1439 = vmatmul.f32.gmra.mxu0 %v536
  %v1440 = vpop.f32.mrf.mxu0
  %v1441 = vadd.f32 %v177, %v1440
  %1442 = vmatmul.f32.gmra.mxu0 %v539
  %v1443 = vpop.f32.mrf.mxu0
  %v1444 = vadd.f32 %v177, %v1443
  %1445 = vmatmul.f32.gmra.mxu0 %v542
  %v1446 = vpop.f32.mrf.mxu0
  %v1447 = vadd.f32 %v177, %v1446
  %1448 = vmatmul.f32.gmra.mxu0 %v545
  %v1449 = vpop.f32.mrf.mxu0
  %v1450 = vadd.f32 %v177, %v1449
  %1451 = vmatmul.f32.gmra.mxu0 %v548
  %v1452 = vpop.f32.mrf.mxu0
  %v1453 = vadd.f32 %v177, %v1452
  %1454 = vmatmul.f32.gmra.mxu0 %v551
  %v1455 = vpop.f32.mrf.mxu0
  %v1456 = vadd.f32 %v177, %v1455
  %1457 = vmatmul.f32.gmra.mxu0 %v554
  %v1458 = vpop.f32.mrf.mxu0
  %v1459 = vadd.f32 %v177, %v1458
  %1460 = vmatmul.f32.gmra.mxu0 %v557
  %v1461 = vpop.f32.mrf.mxu0
  %v1462 = vadd.f32 %v177, %v1461
  %1463 = vmatmul.f32.gmra.mxu0 %v560
  %v1464 = vpop.f32.mrf.mxu0
  %v1465 = vadd.f32 %v177, %v1464
  %1466 = vmatmul.f32.gmra.mxu0 %v563
  %v1467 = vpop.f32.mrf.mxu0
  %v1468 = vadd.f32 %v177, %v1467
  %1469 = vmatmul.f32.gmra.mxu0 %v566
  %v1470 = vpop.f32.mrf.mxu0
  %v1471 = vadd.f32 %v177, %v1470
  %1472 = vmatmul.f32.gmra.mxu0 %v569
  %v1473 = vpop.f32.mrf.mxu0
  %v1474 = vadd.f32 %v177, %v1473
  %1475 = vmatmul.f32.gmra.mxu0 %v572
  %v1476 = vpop.f32.mrf.mxu0
  %v1477 = vadd.f32 %v177, %v1476
  %1478 = vmatmul.f32.gmra.mxu0 %v575
  %v1479 = vpop.f32.mrf.mxu0
  %v1480 = vadd.f32 %v177, %v1479
  %1481 = vmatmul.f32.gmra.mxu0 %v578
  %v1482 = vpop.f32.mrf.mxu0
  %v1483 = vadd.f32 %v177, %v1482
  %1484 = vmatmul.f32.gmra.mxu0 %v581
  %v1485 = vpop.f32.mrf.mxu0
  %v1486 = vadd.f32 %v177, %v1485
  %1487 = vmatmul.f32.gmra.mxu0 %v584
  %v1488 = vpop.f32.mrf.mxu0
  %v1489 = vadd.f32 %v177, %v1488
  %1490 = vmatmul.f32.gmra.mxu0 %v587
  %v1491 = vpop.f32.mrf.mxu0
  %v1492 = vadd.f32 %v177, %v1491
  %1493 = vmatmul.f32.gmra.mxu0 %v590
  %v1494 = vpop.f32.mrf.mxu0
  %v1495 = vadd.f32 %v177, %v1494
  %1496 = vmatmul.f32.gmra.mxu0 %v593
  %v1497 = vpop.f32.mrf.mxu0
  %v1498 = vadd.f32 %v177, %v1497
  %1499 = vmatmul.f32.gmra.mxu0 %v596
  %v1500 = vpop.f32.mrf.mxu0
  %v1501 = vadd.f32 %v177, %v1500
  %1502 = vmatmul.f32.gmra.mxu0 %v599
  %v1503 = vpop.f32.mrf.mxu0
  %v1504 = vadd.f32 %v177, %v1503
  %1505 = vmatmul.f32.gmra.mxu0 %v602
  %v1506 = vpop.f32.mrf.mxu0
  %v1507 = vadd.f32 %v177, %v1506
  %1508 = vmatmul.f32.gmra.mxu0 %v605
  %v1509 = vpop.f32.mrf.mxu0
  %v1510 = vadd.f32 %v177, %v1509
  %1511 = vmatmul.f32.gmra.mxu0 %v608
  %v1512 = vpop.f32.mrf.mxu0
  %v1513 = vadd.f32 %v177, %v1512
  %1514 = vmatmul.f32.gmra.mxu0 %v611
  %v1515 = vpop.f32.mrf.mxu0
  %v1516 = vadd.f32 %v177, %v1515
  %1517 = vdwg.mxu0
  %v1518 = vmax.f32 %v638, 0.0
  %v1519 = vmax.f32 %v1087, 0.0
  %v1520 = vmax.f32 %v641, 0.0
  %v1521 = vmax.f32 %v1090, 0.0
  %v1522 = vmax.f32 %v644, 0.0
  %v1523 = vmax.f32 %v1093, 0.0
  %v1524 = vmax.f32 %v647, 0.0
  %v1525 = vmax.f32 %v1096, 0.0
  %v1526 = vmax.f32 %v650, 0.0
  %v1527 = vmax.f32 %v1099, 0.0
  %v1528 = vmax.f32 %v653, 0.0
  %v1529 = vmax.f32 %v1102, 0.0
  %v1530 = vmax.f32 %v656, 0.0
  %v1531 = vmax.f32 %v1105, 0.0
  %v1532 = vmax.f32 %v659, 0.0
  %v1533 = vmax.f32 %v1108, 0.0
  %v1534 = vmax.f32 %v662, 0.0
  %v1535 = vmax.f32 %v1111, 0.0
  %v1536 = vmax.f32 %v665, 0.0
  %v1537 = vmax.f32 %v1114, 0.0
  %v1538 = vmax.f32 %v668, 0.0
  %v1539 = vmax.f32 %v1117, 0.0
  %v1540 = vmax.f32 %v671, 0.0
  %v1541 = vmax.f32 %v1120, 0.0
  %v1542 = vmax.f32 %v674, 0.0
  %v1543 = vmax.f32 %v1123, 0.0
  %v1544 = vmax.f32 %v677, 0.0
  %v1545 = vmax.f32 %v1126, 0.0
  %v1546 = vmax.f32 %v680, 0.0
  %v1547 = vmax.f32 %v1129, 0.0
  %v1548 = vmax.f32 %v683, 0.0
  %v1549 = vmax.f32 %v1132, 0.0
  %v1550 = vmax.f32 %v686, 0.0
  %v1551 = vmax.f32 %v1135, 0.0
  %v1552 = vmax.f32 %v689, 0.0
  %v1553 = vmax.f32 %v1138, 0.0
  %v1554 = vmax.f32 %v692, 0.0
  %v1555 = vmax.f32 %v1141, 0.0
  %v1556 = vmax.f32 %v695, 0.0
  %v1557 = vmax.f32 %v1144, 0.0
  %v1558 = vmax.f32 %v698, 0.0
  %v1559 = vmax.f32 %v1147, 0.0
  %v1560 = vmax.f32 %v701, 0.0
  %v1561 = vmax.f32 %v1150, 0.0
  %v1562 = vmax.f32 %v704, 0.0
  %v1563 = vmax.f32 %v1153, 0.0
  %v1564 = vmax.f32 %v707, 0.0
  %v1565 = vmax.f32 %v1156, 0.0
  %v1566 = vmax.f32 %v710, 0.0
  %v1567 = vmax.f32 %v1159, 0.0
  %v1568 = vmax.f32 %v713, 0.0
  %v1569 = vmax.f32 %v1162, 0.0
  %v1570 = vmax.f32 %v716, 0.0
  %v1571 = vmax.f32 %v1165, 0.0
  %v1572 = vmax.f32 %v719, 0.0
  %v1573 = vmax.f32 %v1168, 0.0
  %v1574 = vmax.f32 %v722, 0.0
  %v1575 = vmax.f32 %v1171, 0.0
  %v1576 = vmax.f32 %v725, 0.0
  %v1577 = vmax.f32 %v1174, 0.0
  %v1578 = vmax.f32 %v728, 0.0
  %v1579 = vmax.f32 %v1177, 0.0
  %v1580 = vmax.f32 %v731, 0.0
  %v1581 = vmax.f32 %v1180, 0.0
  %v1582 = vmax.f32 %v734, 0.0
  %v1583 = vmax.f32 %v1183, 0.0
  %v1584 = vmax.f32 %v737, 0.0
  %v1585 = vmax.f32 %v1186, 0.0
  %v1586 = vmax.f32 %v740, 0.0
  %v1587 = vmax.f32 %v1189, 0.0
  %v1588 = vmax.f32 %v743, 0.0
  %v1589 = vmax.f32 %v1192, 0.0
  %v1590 = vmax.f32 %v746, 0.0
  %v1591 = vmax.f32 %v1195, 0.0
  %v1592 = vmax.f32 %v749, 0.0
  %v1593 = vmax.f32 %v1198, 0.0
  %v1594 = vmax.f32 %v752, 0.0
  %v1595 = vmax.f32 %v1201, 0.0
  %v1596 = vmax.f32 %v755, 0.0
  %v1597 = vmax.f32 %v1204, 0.0
  %v1598 = vmax.f32 %v758, 0.0
  %v1599 = vmax.f32 %v1207, 0.0
  %v1600 = vmax.f32 %v761, 0.0
  %v1601 = vmax.f32 %v1210, 0.0
  %v1602 = vmax.f32 %v764, 0.0
  %v1603 = vmax.f32 %v1213, 0.0
  %v1604 = vmax.f32 %v767, 0.0
  %v1605 = vmax.f32 %v1216, 0.0
  %v1606 = vmax.f32 %v770, 0.0
  %v1607 = vmax.f32 %v1219, 0.0
  %v1608 = vmax.f32 %v773, 0.0
  %v1609 = vmax.f32 %v1222, 0.0
  %v1610 = vmax.f32 %v776, 0.0
  %v1611 = vmax.f32 %v1225, 0.0
  %v1612 = vmax.f32 %v779, 0.0
  %v1613 = vmax.f32 %v1228, 0.0
  %v1614 = vmax.f32 %v782, 0.0
  %v1615 = vmax.f32 %v1231, 0.0
  %v1616 = vmax.f32 %v785, 0.0
  %v1617 = vmax.f32 %v1234, 0.0
  %v1618 = vmax.f32 %v788, 0.0
  %v1619 = vmax.f32 %v1237, 0.0
  %v1620 = vmax.f32 %v791, 0.0
  %v1621 = vmax.f32 %v1240, 0.0
  %v1622 = vmax.f32 %v794, 0.0
  %v1623 = vmax.f32 %v1243, 0.0
  %v1624 = vmax.f32 %v797, 0.0
  %v1625 = vmax.f32 %v1246, 0.0
  %v1626 = vmax.f32 %v800, 0.0
  %v1627 = vmax.f32 %v1249, 0.0
  %v1628 = vmax.f32 %v803, 0.0
  %v1629 = vmax.f32 %v1252, 0.0
  %v1630 = vmax.f32 %v806, 0.0
  %v1631 = vmax.f32 %v1255, 0.0
  %v1632 = vmax.f32 %v809, 0.0
  %v1633 = vmax.f32 %v1258, 0.0
  %v1634 = vmax.f32 %v812, 0.0
  %v1635 = vmax.f32 %v1261, 0.0
  %v1636 = vmax.f32 %v815, 0.0
  %v1637 = vmax.f32 %v1264, 0.0
  %v1638 = vmax.f32 %v818, 0.0
  %v1639 = vmax.f32 %v1267, 0.0
  %v1640 = vmax.f32 %v821, 0.0
  %v1641 = vmax.f32 %v1270, 0.0
  %v1642 = vmax.f32 %v824, 0.0
  %v1643 = vmax.f32 %v1273, 0.0
  %v1644 = vmax.f32 %v827, 0.0
  %v1645 = vmax.f32 %v1276, 0.0
  %v1646 = vmax.f32 %v830, 0.0
  %v1647 = vmax.f32 %v1279, 0.0
  %v1648 = vmax.f32 %v833, 0.0
  %v1649 = vmax.f32 %v1282, 0.0
  %v1650 = vmax.f32 %v836, 0.0
  %v1651 = vmax.f32 %v1285, 0.0
  %v1652 = vmax.f32 %v839, 0.0
  %v1653 = vmax.f32 %v1288, 0.0
  %v1654 = vmax.f32 %v842, 0.0
  %v1655 = vmax.f32 %v1291, 0.0
  %v1656 = vmax.f32 %v845, 0.0
  %v1657 = vmax.f32 %v1294, 0.0
  %v1658 = vmax.f32 %v848, 0.0
  %v1659 = vmax.f32 %v1297, 0.0
  %v1660 = vmax.f32 %v851, 0.0
  %v1661 = vmax.f32 %v1300, 0.0
  %v1662 = vmax.f32 %v854, 0.0
  %v1663 = vmax.f32 %v1303, 0.0
  %v1664 = vmax.f32 %v857, 0.0
  %v1665 = vmax.f32 %v1306, 0.0
  %v1666 = vmax.f32 %v860, 0.0
  %v1667 = vmax.f32 %v1309, 0.0
  %v1668 = vmax.f32 %v863, 0.0
  %v1669 = vmax.f32 %v1312, 0.0
  %v1670 = vmax.f32 %v866, 0.0
  %v1671 = vmax.f32 %v1315, 0.0
  %v1672 = vmax.f32 %v869, 0.0
  %v1673 = vmax.f32 %v1318, 0.0
  %v1674 = vmax.f32 %v872, 0.0
  %v1675 = vmax.f32 %v1321, 0.0
  %v1676 = vmax.f32 %v875, 0.0
  %v1677 = vmax.f32 %v1324, 0.0
  %v1678 = vmax.f32 %v878, 0.0
  %v1679 = vmax.f32 %v1327, 0.0
  %v1680 = vmax.f32 %v881, 0.0
  %v1681 = vmax.f32 %v1330, 0.0
  %v1682 = vmax.f32 %v884, 0.0
  %v1683 = vmax.f32 %v1333, 0.0
  %v1684 = vmax.f32 %v887, 0.0
  %v1685 = vmax.f32 %v1336, 0.0
  %v1686 = vmax.f32 %v890, 0.0
  %v1687 = vmax.f32 %v1339, 0.0
  %v1688 = vmax.f32 %v893, 0.0
  %v1689 = vmax.f32 %v1342, 0.0
  %v1690 = vmax.f32 %v896, 0.0
  %v1691 = vmax.f32 %v1345, 0.0
  %v1692 = vmax.f32 %v899, 0.0
  %v1693 = vmax.f32 %v1348, 0.0
  %v1694 = vmax.f32 %v902, 0.0
  %v1695 = vmax.f32 %v1351, 0.0
  %v1696 = vmax.f32 %v905, 0.0
  %v1697 = vmax.f32 %v1354, 0.0
  %v1698 = vmax.f32 %v908, 0.0
  %v1699 = vmax.f32 %v1357, 0.0
  %v1700 = vmax.f32 %v911, 0.0
  %v1701 = vmax.f32 %v1360, 0.0
  %v1702 = vmax.f32 %v914, 0.0
  %v1703 = vmax.f32 %v1363, 0.0
  %v1704 = vmax.f32 %v917, 0.0
  %v1705 = vmax.f32 %v1366, 0.0
  %v1706 = vmax.f32 %v920, 0.0
  %v1707 = vmax.f32 %v1369, 0.0
  %v1708 = vmax.f32 %v923, 0.0
  %v1709 = vmax.f32 %v1372, 0.0
  %v1710 = vmax.f32 %v926, 0.0
  %v1711 = vmax.f32 %v1375, 0.0
  %v1712 = vmax.f32 %v929, 0.0
  %v1713 = vmax.f32 %v1378, 0.0
  %v1714 = vmax.f32 %v932, 0.0
  %v1715 = vmax.f32 %v1381, 0.0
  %v1716 = vmax.f32 %v935, 0.0
  %v1717 = vmax.f32 %v1384, 0.0
  %v1718 = vmax.f32 %v938, 0.0
  %v1719 = vmax.f32 %v1387, 0.0
  %v1720 = vmax.f32 %v941, 0.0
  %v1721 = vmax.f32 %v1390, 0.0
  %v1722 = vmax.f32 %v944, 0.0
  %v1723 = vmax.f32 %v1393, 0.0
  %v1724 = vmax.f32 %v947, 0.0
  %v1725 = vmax.f32 %v1396, 0.0
  %v1726 = vmax.f32 %v950, 0.0
  %v1727 = vmax.f32 %v1399, 0.0
  %v1728 = vmax.f32 %v953, 0.0
  %v1729 = vmax.f32 %v1402, 0.0
  %v1730 = vmax.f32 %v956, 0.0
  %v1731 = vmax.f32 %v1405, 0.0
  %v1732 = vmax.f32 %v959, 0.0
  %v1733 = vmax.f32 %v1408, 0.0
  %v1734 = vmax.f32 %v962, 0.0
  %v1735 = vmax.f32 %v1411, 0.0
  %v1736 = vmax.f32 %v965, 0.0
  %v1737 = vmax.f32 %v1414, 0.0
  %v1738 = vmax.f32 %v968, 0.0
  %v1739 = vmax.f32 %v1417, 0.0
  %v1740 = vmax.f32 %v971, 0.0
  %v1741 = vmax.f32 %v1420, 0.0
  %v1742 = vmax.f32 %v974, 0.0
  %v1743 = vmax.f32 %v1423, 0.0
  %v1744 = vmax.f32 %v977, 0.0
  %v1745 = vmax.f32 %v1426, 0.0
  %v1746 = vmax.f32 %v980, 0.0
  %v1747 = vmax.f32 %v1429, 0.0
  %v1748 = vmax.f32 %v983, 0.0
  %v1749 = vmax.f32 %v1432, 0.0
  %v1750 = vmax.f32 %v986, 0.0
  %v1751 = vmax.f32 %v1435, 0.0
  %v1752 = vmax.f32 %v989, 0.0
  %v1753 = vmax.f32 %v1438, 0.0
  %v1754 = vmax.f32 %v992, 0.0
  %v1755 = vmax.f32 %v1441, 0.0
  %v1756 = vmax.f32 %v995, 0.0
  %v1757 = vmax.f32 %v1444, 0.0
  %v1758 = vmax.f32 %v998, 0.0
  %v1759 = vmax.f32 %v1447, 0.0
  %v1760 = vmax.f32 %v1001, 0.0
  %v1761 = vmax.f32 %v1450, 0.0
  %v1762 = vmax.f32 %v1004, 0.0
  %v1763 = vmax.f32 %v1453, 0.0
  %v1764 = vmax.f32 %v1007, 0.0
  %v1765 = vmax.f32 %v1456, 0.0
  %v1766 = vmax.f32 %v1010, 0.0
  %v1767 = vmax.f32 %v1459, 0.0
  %v1768 = vmax.f32 %v1013, 0.0
  %v1769 = vmax.f32 %v1462, 0.0
  %v1770 = vmax.f32 %v1016, 0.0
  %v1771 = vmax.f32 %v1465, 0.0
  %v1772 = vmax.f32 %v1019, 0.0
  %v1773 = vmax.f32 %v1468, 0.0
  %v1774 = vmax.f32 %v1022, 0.0
  %v1775 = vmax.f32 %v1471, 0.0
  %v1776 = vmax.f32 %v1025, 0.0
  %v1777 = vmax.f32 %v1474, 0.0
  %v1778 = vmax.f32 %v1028, 0.0
  %v1779 = vmax.f32 %v1477, 0.0
  %v1780 = vmax.f32 %v1031, 0.0
  %v1781 = vmax.f32 %v1480, 0.0
  %v1782 = vmax.f32 %v1034, 0.0
  %v1783 = vmax.f32 %v1483, 0.0
  %v1784 = vmax.f32 %v1037, 0.0
  %v1785 = vmax.f32 %v1486, 0.0
  %v1786 = vmax.f32 %v1040, 0.0
  %v1787 = vmax.f32 %v1489, 0.0
  %v1788 = vmax.f32 %v1043, 0.0
  %v1789 = vmax.f32 %v1492, 0.0
  %v1790 = vmax.f32 %v1046, 0.0
  %v1791 = vmax.f32 %v1495, 0.0
  %v1792 = vmax.f32 %v1049, 0.0
  %v1793 = vmax.f32 %v1498, 0.0
  %v1794 = vmax.f32 %v1052, 0.0
  %v1795 = vmax.f32 %v1501, 0.0
  %v1796 = vmax.f32 %v1055, 0.0
  %v1797 = vmax.f32 %v1504, 0.0
  %v1798 = vmax.f32 %v1058, 0.0
  %v1799 = vmax.f32 %v1507, 0.0
  %v1800 = vmax.f32 %v1061, 0.0
  %v1801 = vmax.f32 %v1510, 0.0
  %v1802 = vmax.f32 %v1064, 0.0
  %v1803 = vmax.f32 %v1513, 0.0
  %v1804 = vmax.f32 %v1067, 0.0
  %v1805 = vmax.f32 %v1516, 0.0
  %v1806 = vld [vmem:[%s3] sm:$0xff]
  %v1807 = vld [vmem:[%s3 + $0x8] sm:$0xff]
  %v1808 = vld [vmem:[%s3 + $0x10] sm:$0xff]
  %v1809 = vld [vmem:[%s3 + $0x18] sm:$0xff]
  %v1810 = vld [vmem:[%s3 + $0x20] sm:$0xff]
  %v1811 = vld [vmem:[%s3 + $0x28] sm:$0xff]
  %v1812 = vld [vmem:[%s3 + $0x30] sm:$0xff]
  %v1813 = vld [vmem:[%s3 + $0x38] sm:$0xff]
  %v1814 = vld [vmem:[%s3 + $0x40] sm:$0xff]
  %v1815 = vld [vmem:[%s3 + $0x48] sm:$0xff]
  %v1816 = vld [vmem:[%s3 + $0x50] sm:$0xff]
  %v1817 = vld [vmem:[%s3 + $0x58] sm:$0xff]
  %v1818 = vld [vmem:[%s3 + $0x60] sm:$0xff]
  %v1819 = vld [vmem:[%s3 + $0x68] sm:$0xff]
  %v1820 = vld [vmem:[%s3 + $0x70] sm:$0xff]
  %v1821 = vld [vmem:[%s3 + $0x78] sm:$0xff]
  %v1822 = vld [vmem:[%s3 + $0x80] sm:$0xff]
  %v1823 = vld [vmem:[%s3 + $0x88] sm:$0xff]
  %v1824 = vld [vmem:[%s3 + $0x90] sm:$0xff]
  %v1825 = vld [vmem:[%s3 + $0x98] sm:$0xff]
  %v1826 = vld [vmem:[%s3 + $0xa0] sm:$0xff]
  %v1827 = vld [vmem:[%s3 + $0xa8] sm:$0xff]
  %v1828 = vld [vmem:[%s3 + $0xb0] sm:$0xff]
  %v1829 = vld [vmem:[%s3 + $0xb8] sm:$0xff]
  %v1830 = vld [vmem:[%s3 + $0xc0] sm:$0xff]
  %v1831 = vld [vmem:[%s3 + $0xc8] sm:$0xff]
  %v1832 = vld [vmem:[%s3 + $0xd0] sm:$0xff]
  %v1833 = vld [vmem:[%s3 + $0xd8] sm:$0xff]
  %v1834 = vld [vmem:[%s3 + $0xe0] sm:$0xff]
  %v1835 = vld [vmem:[%s3 + $0xe8] sm:$0xff]
  %v1836 = vld [vmem:[%s3 + $0xf0] sm:$0xff]
  %v1837 = vld [vmem:[%s3 + $0xf8] sm:$0xff]
  %1838 = vmatpush.msra.mxu0 %v1821
  %1839 = vmatpush.msra.mxu0 %v1820
  %1840 = vmatpush.msra.mxu0 %v1819
  %1841 = vmatpush.msra.mxu0 %v1818
  %1842 = vmatpush.msra.mxu0 %v1817
  %1843 = vmatpush.msra.mxu0 %v1816
  %1844 = vmatpush.msra.mxu0 %v1815
  %1845 = vmatpush.msra.mxu0 %v1814
  %1846 = vmatpush.msra.mxu0 %v1813
  %1847 = vmatpush.msra.mxu0 %v1812
  %1848 = vmatpush.msra.mxu0 %v1811
  %1849 = vmatpush.msra.mxu0 %v1810
  %1850 = vmatpush.msra.mxu0 %v1809
  %1851 = vmatpush.msra.mxu0 %v1808
  %1852 = vmatpush.msra.mxu0 %v1807
  %1853 = vmatpush.msra.mxu0 %v1806
  %1854 = vmatmul.f32.gmra.mxu0 %v1518
  %v1855 = vpop.f32.mrf.mxu0
  %v1856 = vadd.f32 0.0, %v1855
  %1857 = vmatmul.f32.gmra.mxu0 %v1520
  %v1858 = vpop.f32.mrf.mxu0
  %v1859 = vadd.f32 0.0, %v1858
  %1860 = vmatmul.f32.gmra.mxu0 %v1522
  %v1861 = vpop.f32.mrf.mxu0
  %v1862 = vadd.f32 0.0, %v1861
  %1863 = vmatmul.f32.gmra.mxu0 %v1524
  %v1864 = vpop.f32.mrf.mxu0
  %v1865 = vadd.f32 0.0, %v1864
  %1866 = vmatmul.f32.gmra.mxu0 %v1526
  %v1867 = vpop.f32.mrf.mxu0
  %v1868 = vadd.f32 0.0, %v1867
  %1869 = vmatmul.f32.gmra.mxu0 %v1528
  %v1870 = vpop.f32.mrf.mxu0
  %v1871 = vadd.f32 0.0, %v1870
  %1872 = vmatmul.f32.gmra.mxu0 %v1530
  %v1873 = vpop.f32.mrf.mxu0
  %v1874 = vadd.f32 0.0, %v1873
  %1875 = vmatmul.f32.gmra.mxu0 %v1532
  %v1876 = vpop.f32.mrf.mxu0
  %v1877 = vadd.f32 0.0, %v1876
  %1878 = vmatmul.f32.gmra.mxu0 %v1534
  %v1879 = vpop.f32.mrf.mxu0
  %v1880 = vadd.f32 0.0, %v1879
  %1881 = vmatmul.f32.gmra.mxu0 %v1536
  %v1882 = vpop.f32.mrf.mxu0
  %v1883 = vadd.f32 0.0, %v1882
  %1884 = vmatmul.f32.gmra.mxu0 %v1538
  %v1885 = vpop.f32.mrf.mxu0
  %v1886 = vadd.f32 0.0, %v1885
  %1887 = vmatmul.f32.gmra.mxu0 %v1540
  %v1888 = vpop.f32.mrf.mxu0
  %v1889 = vadd.f32 0.0, %v1888
  %1890 = vmatmul.f32.gmra.mxu0 %v1542
  %v1891 = vpop.f32.mrf.mxu0
  %v1892 = vadd.f32 0.0, %v1891
  %1893 = vmatmul.f32.gmra.mxu0 %v1544
  %v1894 = vpop.f32.mrf.mxu0
  %v1895 = vadd.f32 0.0, %v1894
  %1896 = vmatmul.f32.gmra.mxu0 %v1546
  %v1897 = vpop.f32.mrf.mxu0
  %v1898 = vadd.f32 0.0, %v1897
  %1899 = vmatmul.f32.gmra.mxu0 %v1548
  %v1900 = vpop.f32.mrf.mxu0
  %v1901 = vadd.f32 0.0, %v1900
  %1902 = vmatmul.f32.gmra.mxu0 %v1550
  %v1903 = vpop.f32.mrf.mxu0
  %v1904 = vadd.f32 0.0, %v1903
  %1905 = vmatmul.f32.gmra.mxu0 %v1552
  %v1906 = vpop.f32.mrf.mxu0
  %v1907 = vadd.f32 0.0, %v1906
  %1908 = vmatmul.f32.gmra.mxu0 %v1554
  %v1909 = vpop.f32.mrf.mxu0
  %v1910 = vadd.f32 0.0, %v1909
  %1911 = vmatmul.f32.gmra.mxu0 %v1556
  %v1912 = vpop.f32.mrf.mxu0
  %v1913 = vadd.f32 0.0, %v1912
  %1914 = vmatmul.f32.gmra.mxu0 %v1558
  %v1915 = vpop.f32.mrf.mxu0
  %v1916 = vadd.f32 0.0, %v1915
  %1917 = vmatmul.f32.gmra.mxu0 %v1560
  %v1918 = vpop.f32.mrf.mxu0
  %v1919 = vadd.f32 0.0, %v1918
  %1920 = vmatmul.f32.gmra.mxu0 %v1562
  %v1921 = vpop.f32.mrf.mxu0
  %v1922 = vadd.f32 0.0, %v1921
  %1923 = vmatmul.f32.gmra.mxu0 %v1564
  %v1924 = vpop.f32.mrf.mxu0
  %v1925 = vadd.f32 0.0, %v1924
  %1926 = vmatmul.f32.gmra.mxu0 %v1566
  %v1927 = vpop.f32.mrf.mxu0
  %v1928 = vadd.f32 0.0, %v1927
  %1929 = vmatmul.f32.gmra.mxu0 %v1568
  %v1930 = vpop.f32.mrf.mxu0
  %v1931 = vadd.f32 0.0, %v1930
  %1932 = vmatmul.f32.gmra.mxu0 %v1570
  %v1933 = vpop.f32.mrf.mxu0
  %v1934 = vadd.f32 0.0, %v1933
  %1935 = vmatmul.f32.gmra.mxu0 %v1572
  %v1936 = vpop.f32.mrf.mxu0
  %v1937 = vadd.f32 0.0, %v1936
  %1938 = vmatmul.f32.gmra.mxu0 %v1574
  %v1939 = vpop.f32.mrf.mxu0
  %v1940 = vadd.f32 0.0, %v1939
  %1941 = vmatmul.f32.gmra.mxu0 %v1576
  %v1942 = vpop.f32.mrf.mxu0
  %v1943 = vadd.f32 0.0, %v1942
  %1944 = vmatmul.f32.gmra.mxu0 %v1578
  %v1945 = vpop.f32.mrf.mxu0
  %v1946 = vadd.f32 0.0, %v1945
  %1947 = vmatmul.f32.gmra.mxu0 %v1580
  %v1948 = vpop.f32.mrf.mxu0
  %v1949 = vadd.f32 0.0, %v1948
  %1950 = vmatmul.f32.gmra.mxu0 %v1582
  %v1951 = vpop.f32.mrf.mxu0
  %v1952 = vadd.f32 0.0, %v1951
  %1953 = vmatmul.f32.gmra.mxu0 %v1584
  %v1954 = vpop.f32.mrf.mxu0
  %v1955 = vadd.f32 0.0, %v1954
  %1956 = vmatmul.f32.gmra.mxu0 %v1586
  %v1957 = vpop.f32.mrf.mxu0
  %v1958 = vadd.f32 0.0, %v1957
  %1959 = vmatmul.f32.gmra.mxu0 %v1588
  %v1960 = vpop.f32.mrf.mxu0
  %v1961 = vadd.f32 0.0, %v1960
  %1962 = vmatmul.f32.gmra.mxu0 %v1590
  %v1963 = vpop.f32.mrf.mxu0
  %v1964 = vadd.f32 0.0, %v1963
  %1965 = vmatmul.f32.gmra.mxu0 %v1592
  %v1966 = vpop.f32.mrf.mxu0
  %v1967 = vadd.f32 0.0, %v1966
  %1968 = vmatmul.f32.gmra.mxu0 %v1594
  %v1969 = vpop.f32.mrf.mxu0
  %v1970 = vadd.f32 0.0, %v1969
  %1971 = vmatmul.f32.gmra.mxu0 %v1596
  %v1972 = vpop.f32.mrf.mxu0
  %v1973 = vadd.f32 0.0, %v1972
  %1974 = vmatmul.f32.gmra.mxu0 %v1598
  %v1975 = vpop.f32.mrf.mxu0
  %v1976 = vadd.f32 0.0, %v1975
  %1977 = vmatmul.f32.gmra.mxu0 %v1600
  %v1978 = vpop.f32.mrf.mxu0
  %v1979 = vadd.f32 0.0, %v1978
  %1980 = vmatmul.f32.gmra.mxu0 %v1602
  %v1981 = vpop.f32.mrf.mxu0
  %v1982 = vadd.f32 0.0, %v1981
  %1983 = vmatmul.f32.gmra.mxu0 %v1604
  %v1984 = vpop.f32.mrf.mxu0
  %v1985 = vadd.f32 0.0, %v1984
  %1986 = vmatmul.f32.gmra.mxu0 %v1606
  %v1987 = vpop.f32.mrf.mxu0
  %v1988 = vadd.f32 0.0, %v1987
  %1989 = vmatmul.f32.gmra.mxu0 %v1608
  %v1990 = vpop.f32.mrf.mxu0
  %v1991 = vadd.f32 0.0, %v1990
  %1992 = vmatmul.f32.gmra.mxu0 %v1610
  %v1993 = vpop.f32.mrf.mxu0
  %v1994 = vadd.f32 0.0, %v1993
  %1995 = vmatmul.f32.gmra.mxu0 %v1612
  %v1996 = vpop.f32.mrf.mxu0
  %v1997 = vadd.f32 0.0, %v1996
  %1998 = vmatmul.f32.gmra.mxu0 %v1614
  %v1999 = vpop.f32.mrf.mxu0
  %v2000 = vadd.f32 0.0, %v1999
  %2001 = vmatmul.f32.gmra.mxu0 %v1616
  %v2002 = vpop.f32.mrf.mxu0
  %v2003 = vadd.f32 0.0, %v2002
  %2004 = vmatmul.f32.gmra.mxu0 %v1618
  %v2005 = vpop.f32.mrf.mxu0
  %v2006 = vadd.f32 0.0, %v2005
  %2007 = vmatmul.f32.gmra.mxu0 %v1620
  %v2008 = vpop.f32.mrf.mxu0
  %v2009 = vadd.f32 0.0, %v2008
  %2010 = vmatmul.f32.gmra.mxu0 %v1622
  %v2011 = vpop.f32.mrf.mxu0
  %v2012 = vadd.f32 0.0, %v2011
  %2013 = vmatmul.f32.gmra.mxu0 %v1624
  %v2014 = vpop.f32.mrf.mxu0
  %v2015 = vadd.f32 0.0, %v2014
  %2016 = vmatmul.f32.gmra.mxu0 %v1626
  %v2017 = vpop.f32.mrf.mxu0
  %v2018 = vadd.f32 0.0, %v2017
  %2019 = vmatmul.f32.gmra.mxu0 %v1628
  %v2020 = vpop.f32.mrf.mxu0
  %v2021 = vadd.f32 0.0, %v2020
  %2022 = vmatmul.f32.gmra.mxu0 %v1630
  %v2023 = vpop.f32.mrf.mxu0
  %v2024 = vadd.f32 0.0, %v2023
  %2025 = vmatmul.f32.gmra.mxu0 %v1632
  %v2026 = vpop.f32.mrf.mxu0
  %v2027 = vadd.f32 0.0, %v2026
  %2028 = vmatmul.f32.gmra.mxu0 %v1634
  %v2029 = vpop.f32.mrf.mxu0
  %v2030 = vadd.f32 0.0, %v2029
  %2031 = vmatmul.f32.gmra.mxu0 %v1636
  %v2032 = vpop.f32.mrf.mxu0
  %v2033 = vadd.f32 0.0, %v2032
  %2034 = vmatmul.f32.gmra.mxu0 %v1638
  %v2035 = vpop.f32.mrf.mxu0
  %v2036 = vadd.f32 0.0, %v2035
  %2037 = vmatmul.f32.gmra.mxu0 %v1640
  %v2038 = vpop.f32.mrf.mxu0
  %v2039 = vadd.f32 0.0, %v2038
  %2040 = vmatmul.f32.gmra.mxu0 %v1642
  %v2041 = vpop.f32.mrf.mxu0
  %v2042 = vadd.f32 0.0, %v2041
  %2043 = vmatmul.f32.gmra.mxu0 %v1644
  %v2044 = vpop.f32.mrf.mxu0
  %v2045 = vadd.f32 0.0, %v2044
  %2046 = vmatmul.f32.gmra.mxu0 %v1646
  %v2047 = vpop.f32.mrf.mxu0
  %v2048 = vadd.f32 0.0, %v2047
  %2049 = vmatmul.f32.gmra.mxu0 %v1648
  %v2050 = vpop.f32.mrf.mxu0
  %v2051 = vadd.f32 0.0, %v2050
  %2052 = vmatmul.f32.gmra.mxu0 %v1650
  %v2053 = vpop.f32.mrf.mxu0
  %v2054 = vadd.f32 0.0, %v2053
  %2055 = vmatmul.f32.gmra.mxu0 %v1652
  %v2056 = vpop.f32.mrf.mxu0
  %v2057 = vadd.f32 0.0, %v2056
  %2058 = vmatmul.f32.gmra.mxu0 %v1654
  %v2059 = vpop.f32.mrf.mxu0
  %v2060 = vadd.f32 0.0, %v2059
  %2061 = vmatmul.f32.gmra.mxu0 %v1656
  %v2062 = vpop.f32.mrf.mxu0
  %v2063 = vadd.f32 0.0, %v2062
  %2064 = vmatmul.f32.gmra.mxu0 %v1658
  %v2065 = vpop.f32.mrf.mxu0
  %v2066 = vadd.f32 0.0, %v2065
  %2067 = vmatmul.f32.gmra.mxu0 %v1660
  %v2068 = vpop.f32.mrf.mxu0
  %v2069 = vadd.f32 0.0, %v2068
  %2070 = vmatmul.f32.gmra.mxu0 %v1662
  %v2071 = vpop.f32.mrf.mxu0
  %v2072 = vadd.f32 0.0, %v2071
  %2073 = vmatmul.f32.gmra.mxu0 %v1664
  %v2074 = vpop.f32.mrf.mxu0
  %v2075 = vadd.f32 0.0, %v2074
  %2076 = vmatmul.f32.gmra.mxu0 %v1666
  %v2077 = vpop.f32.mrf.mxu0
  %v2078 = vadd.f32 0.0, %v2077
  %2079 = vmatmul.f32.gmra.mxu0 %v1668
  %v2080 = vpop.f32.mrf.mxu0
  %v2081 = vadd.f32 0.0, %v2080
  %2082 = vmatmul.f32.gmra.mxu0 %v1670
  %v2083 = vpop.f32.mrf.mxu0
  %v2084 = vadd.f32 0.0, %v2083
  %2085 = vmatmul.f32.gmra.mxu0 %v1672
  %v2086 = vpop.f32.mrf.mxu0
  %v2087 = vadd.f32 0.0, %v2086
  %2088 = vmatmul.f32.gmra.mxu0 %v1674
  %v2089 = vpop.f32.mrf.mxu0
  %v2090 = vadd.f32 0.0, %v2089
  %2091 = vmatmul.f32.gmra.mxu0 %v1676
  %v2092 = vpop.f32.mrf.mxu0
  %v2093 = vadd.f32 0.0, %v2092
  %2094 = vmatmul.f32.gmra.mxu0 %v1678
  %v2095 = vpop.f32.mrf.mxu0
  %v2096 = vadd.f32 0.0, %v2095
  %2097 = vmatmul.f32.gmra.mxu0 %v1680
  %v2098 = vpop.f32.mrf.mxu0
  %v2099 = vadd.f32 0.0, %v2098
  %2100 = vmatmul.f32.gmra.mxu0 %v1682
  %v2101 = vpop.f32.mrf.mxu0
  %v2102 = vadd.f32 0.0, %v2101
  %2103 = vmatmul.f32.gmra.mxu0 %v1684
  %v2104 = vpop.f32.mrf.mxu0
  %v2105 = vadd.f32 0.0, %v2104
  %2106 = vmatmul.f32.gmra.mxu0 %v1686
  %v2107 = vpop.f32.mrf.mxu0
  %v2108 = vadd.f32 0.0, %v2107
  %2109 = vmatmul.f32.gmra.mxu0 %v1688
  %v2110 = vpop.f32.mrf.mxu0
  %v2111 = vadd.f32 0.0, %v2110
  %2112 = vmatmul.f32.gmra.mxu0 %v1690
  %v2113 = vpop.f32.mrf.mxu0
  %v2114 = vadd.f32 0.0, %v2113
  %2115 = vmatmul.f32.gmra.mxu0 %v1692
  %v2116 = vpop.f32.mrf.mxu0
  %v2117 = vadd.f32 0.0, %v2116
  %2118 = vmatmul.f32.gmra.mxu0 %v1694
  %v2119 = vpop.f32.mrf.mxu0
  %v2120 = vadd.f32 0.0, %v2119
  %2121 = vmatmul.f32.gmra.mxu0 %v1696
  %v2122 = vpop.f32.mrf.mxu0
  %v2123 = vadd.f32 0.0, %v2122
  %2124 = vmatmul.f32.gmra.mxu0 %v1698
  %v2125 = vpop.f32.mrf.mxu0
  %v2126 = vadd.f32 0.0, %v2125
  %2127 = vmatmul.f32.gmra.mxu0 %v1700
  %v2128 = vpop.f32.mrf.mxu0
  %v2129 = vadd.f32 0.0, %v2128
  %2130 = vmatmul.f32.gmra.mxu0 %v1702
  %v2131 = vpop.f32.mrf.mxu0
  %v2132 = vadd.f32 0.0, %v2131
  %2133 = vmatmul.f32.gmra.mxu0 %v1704
  %v2134 = vpop.f32.mrf.mxu0
  %v2135 = vadd.f32 0.0, %v2134
  %2136 = vmatmul.f32.gmra.mxu0 %v1706
  %v2137 = vpop.f32.mrf.mxu0
  %v2138 = vadd.f32 0.0, %v2137
  %2139 = vmatmul.f32.gmra.mxu0 %v1708
  %v2140 = vpop.f32.mrf.mxu0
  %v2141 = vadd.f32 0.0, %v2140
  %2142 = vmatmul.f32.gmra.mxu0 %v1710
  %v2143 = vpop.f32.mrf.mxu0
  %v2144 = vadd.f32 0.0, %v2143
  %2145 = vmatmul.f32.gmra.mxu0 %v1712
  %v2146 = vpop.f32.mrf.mxu0
  %v2147 = vadd.f32 0.0, %v2146
  %2148 = vmatmul.f32.gmra.mxu0 %v1714
  %v2149 = vpop.f32.mrf.mxu0
  %v2150 = vadd.f32 0.0, %v2149
  %2151 = vmatmul.f32.gmra.mxu0 %v1716
  %v2152 = vpop.f32.mrf.mxu0
  %v2153 = vadd.f32 0.0, %v2152
  %2154 = vmatmul.f32.gmra.mxu0 %v1718
  %v2155 = vpop.f32.mrf.mxu0
  %v2156 = vadd.f32 0.0, %v2155
  %2157 = vmatmul.f32.gmra.mxu0 %v1720
  %v2158 = vpop.f32.mrf.mxu0
  %v2159 = vadd.f32 0.0, %v2158
  %2160 = vmatmul.f32.gmra.mxu0 %v1722
  %v2161 = vpop.f32.mrf.mxu0
  %v2162 = vadd.f32 0.0, %v2161
  %2163 = vmatmul.f32.gmra.mxu0 %v1724
  %v2164 = vpop.f32.mrf.mxu0
  %v2165 = vadd.f32 0.0, %v2164
  %2166 = vmatmul.f32.gmra.mxu0 %v1726
  %v2167 = vpop.f32.mrf.mxu0
  %v2168 = vadd.f32 0.0, %v2167
  %2169 = vmatmul.f32.gmra.mxu0 %v1728
  %v2170 = vpop.f32.mrf.mxu0
  %v2171 = vadd.f32 0.0, %v2170
  %2172 = vmatmul.f32.gmra.mxu0 %v1730
  %v2173 = vpop.f32.mrf.mxu0
  %v2174 = vadd.f32 0.0, %v2173
  %2175 = vmatmul.f32.gmra.mxu0 %v1732
  %v2176 = vpop.f32.mrf.mxu0
  %v2177 = vadd.f32 0.0, %v2176
  %2178 = vmatmul.f32.gmra.mxu0 %v1734
  %v2179 = vpop.f32.mrf.mxu0
  %v2180 = vadd.f32 0.0, %v2179
  %2181 = vmatmul.f32.gmra.mxu0 %v1736
  %v2182 = vpop.f32.mrf.mxu0
  %v2183 = vadd.f32 0.0, %v2182
  %2184 = vmatmul.f32.gmra.mxu0 %v1738
  %v2185 = vpop.f32.mrf.mxu0
  %v2186 = vadd.f32 0.0, %v2185
  %2187 = vmatmul.f32.gmra.mxu0 %v1740
  %v2188 = vpop.f32.mrf.mxu0
  %v2189 = vadd.f32 0.0, %v2188
  %2190 = vmatmul.f32.gmra.mxu0 %v1742
  %v2191 = vpop.f32.mrf.mxu0
  %v2192 = vadd.f32 0.0, %v2191
  %2193 = vmatmul.f32.gmra.mxu0 %v1744
  %v2194 = vpop.f32.mrf.mxu0
  %v2195 = vadd.f32 0.0, %v2194
  %2196 = vmatmul.f32.gmra.mxu0 %v1746
  %v2197 = vpop.f32.mrf.mxu0
  %v2198 = vadd.f32 0.0, %v2197
  %2199 = vmatmul.f32.gmra.mxu0 %v1748
  %v2200 = vpop.f32.mrf.mxu0
  %v2201 = vadd.f32 0.0, %v2200
  %2202 = vmatmul.f32.gmra.mxu0 %v1750
  %v2203 = vpop.f32.mrf.mxu0
  %v2204 = vadd.f32 0.0, %v2203
  %2205 = vmatmul.f32.gmra.mxu0 %v1752
  %v2206 = vpop.f32.mrf.mxu0
  %v2207 = vadd.f32 0.0, %v2206
  %2208 = vmatmul.f32.gmra.mxu0 %v1754
  %v2209 = vpop.f32.mrf.mxu0
  %v2210 = vadd.f32 0.0, %v2209
  %2211 = vmatmul.f32.gmra.mxu0 %v1756
  %v2212 = vpop.f32.mrf.mxu0
  %v2213 = vadd.f32 0.0, %v2212
  %2214 = vmatmul.f32.gmra.mxu0 %v1758
  %v2215 = vpop.f32.mrf.mxu0
  %v2216 = vadd.f32 0.0, %v2215
  %2217 = vmatmul.f32.gmra.mxu0 %v1760
  %v2218 = vpop.f32.mrf.mxu0
  %v2219 = vadd.f32 0.0, %v2218
  %2220 = vmatmul.f32.gmra.mxu0 %v1762
  %v2221 = vpop.f32.mrf.mxu0
  %v2222 = vadd.f32 0.0, %v2221
  %2223 = vmatmul.f32.gmra.mxu0 %v1764
  %v2224 = vpop.f32.mrf.mxu0
  %v2225 = vadd.f32 0.0, %v2224
  %2226 = vmatmul.f32.gmra.mxu0 %v1766
  %v2227 = vpop.f32.mrf.mxu0
  %v2228 = vadd.f32 0.0, %v2227
  %2229 = vmatmul.f32.gmra.mxu0 %v1768
  %v2230 = vpop.f32.mrf.mxu0
  %v2231 = vadd.f32 0.0, %v2230
  %2232 = vmatmul.f32.gmra.mxu0 %v1770
  %v2233 = vpop.f32.mrf.mxu0
  %v2234 = vadd.f32 0.0, %v2233
  %2235 = vmatmul.f32.gmra.mxu0 %v1772
  %v2236 = vpop.f32.mrf.mxu0
  %v2237 = vadd.f32 0.0, %v2236
  %2238 = vmatmul.f32.gmra.mxu0 %v1774
  %v2239 = vpop.f32.mrf.mxu0
  %v2240 = vadd.f32 0.0, %v2239
  %2241 = vmatmul.f32.gmra.mxu0 %v1776
  %v2242 = vpop.f32.mrf.mxu0
  %v2243 = vadd.f32 0.0, %v2242
  %2244 = vmatmul.f32.gmra.mxu0 %v1778
  %v2245 = vpop.f32.mrf.mxu0
  %v2246 = vadd.f32 0.0, %v2245
  %2247 = vmatmul.f32.gmra.mxu0 %v1780
  %v2248 = vpop.f32.mrf.mxu0
  %v2249 = vadd.f32 0.0, %v2248
  %2250 = vmatmul.f32.gmra.mxu0 %v1782
  %v2251 = vpop.f32.mrf.mxu0
  %v2252 = vadd.f32 0.0, %v2251
  %2253 = vmatmul.f32.gmra.mxu0 %v1784
  %v2254 = vpop.f32.mrf.mxu0
  %v2255 = vadd.f32 0.0, %v2254
  %2256 = vmatmul.f32.gmra.mxu0 %v1786
  %v2257 = vpop.f32.mrf.mxu0
  %v2258 = vadd.f32 0.0, %v2257
  %2259 = vmatmul.f32.gmra.mxu0 %v1788
  %v2260 = vpop.f32.mrf.mxu0
  %v2261 = vadd.f32 0.0, %v2260
  %2262 = vmatmul.f32.gmra.mxu0 %v1790
  %v2263 = vpop.f32.mrf.mxu0
  %v2264 = vadd.f32 0.0, %v2263
  %2265 = vmatmul.f32.gmra.mxu0 %v1792
  %v2266 = vpop.f32.mrf.mxu0
  %v2267 = vadd.f32 0.0, %v2266
  %2268 = vmatmul.f32.gmra.mxu0 %v1794
  %v2269 = vpop.f32.mrf.mxu0
  %v2270 = vadd.f32 0.0, %v2269
  %2271 = vmatmul.f32.gmra.mxu0 %v1796
  %v2272 = vpop.f32.mrf.mxu0
  %v2273 = vadd.f32 0.0, %v2272
  %2274 = vmatmul.f32.gmra.mxu0 %v1798
  %v2275 = vpop.f32.mrf.mxu0
  %v2276 = vadd.f32 0.0, %v2275
  %2277 = vmatmul.f32.gmra.mxu0 %v1800
  %v2278 = vpop.f32.mrf.mxu0
  %v2279 = vadd.f32 0.0, %v2278
  %2280 = vmatmul.f32.gmra.mxu0 %v1802
  %v2281 = vpop.f32.mrf.mxu0
  %v2282 = vadd.f32 0.0, %v2281
  %2283 = vmatmul.f32.gmra.mxu0 %v1804
  %v2284 = vpop.f32.mrf.mxu0
  %v2285 = vadd.f32 0.0, %v2284
  %2286 = vdwg.mxu0
  %2287 = vmatpush.msra.mxu0 %v1837
  %2288 = vmatpush.msra.mxu0 %v1836
  %2289 = vmatpush.msra.mxu0 %v1835
  %2290 = vmatpush.msra.mxu0 %v1834
  %2291 = vmatpush.msra.mxu0 %v1833
  %2292 = vmatpush.msra.mxu0 %v1832
  %2293 = vmatpush.msra.mxu0 %v1831
  %2294 = vmatpush.msra.mxu0 %v1830
  %2295 = vmatpush.msra.mxu0 %v1829
  %2296 = vmatpush.msra.mxu0 %v1828
  %2297 = vmatpush.msra.mxu0 %v1827
  %2298 = vmatpush.msra.mxu0 %v1826
  %2299 = vmatpush.msra.mxu0 %v1825
  %2300 = vmatpush.msra.mxu0 %v1824
  %2301 = vmatpush.msra.mxu0 %v1823
  %2302 = vmatpush.msra.mxu0 %v1822
  %2303 = vmatmul.f32.gmra.mxu0 %v1519
  %v2304 = vpop.f32.mrf.mxu0
  %v2305 = vadd.f32 %v1856, %v2304
  %2306 = vmatmul.f32.gmra.mxu0 %v1521
  %v2307 = vpop.f32.mrf.mxu0
  %v2308 = vadd.f32 %v1859, %v2307
  %2309 = vmatmul.f32.gmra.mxu0 %v1523
  %v2310 = vpop.f32.mrf.mxu0
  %v2311 = vadd.f32 %v1862, %v2310
  %2312 = vmatmul.f32.gmra.mxu0 %v1525
  %v2313 = vpop.f32.mrf.mxu0
  %v2314 = vadd.f32 %v1865, %v2313
  %2315 = vmatmul.f32.gmra.mxu0 %v1527
  %v2316 = vpop.f32.mrf.mxu0
  %v2317 = vadd.f32 %v1868, %v2316
  %2318 = vmatmul.f32.gmra.mxu0 %v1529
  %v2319 = vpop.f32.mrf.mxu0
  %v2320 = vadd.f32 %v1871, %v2319
  %2321 = vmatmul.f32.gmra.mxu0 %v1531
  %v2322 = vpop.f32.mrf.mxu0
  %v2323 = vadd.f32 %v1874, %v2322
  %2324 = vmatmul.f32.gmra.mxu0 %v1533
  %v2325 = vpop.f32.mrf.mxu0
  %v2326 = vadd.f32 %v1877, %v2325
  %2327 = vmatmul.f32.gmra.mxu0 %v1535
  %v2328 = vpop.f32.mrf.mxu0
  %v2329 = vadd.f32 %v1880, %v2328
  %2330 = vmatmul.f32.gmra.mxu0 %v1537
  %v2331 = vpop.f32.mrf.mxu0
  %v2332 = vadd.f32 %v1883, %v2331
  %2333 = vmatmul.f32.gmra.mxu0 %v1539
  %v2334 = vpop.f32.mrf.mxu0
  %v2335 = vadd.f32 %v1886, %v2334
  %2336 = vmatmul.f32.gmra.mxu0 %v1541
  %v2337 = vpop.f32.mrf.mxu0
  %v2338 = vadd.f32 %v1889, %v2337
  %2339 = vmatmul.f32.gmra.mxu0 %v1543
  %v2340 = vpop.f32.mrf.mxu0
  %v2341 = vadd.f32 %v1892, %v2340
  %2342 = vmatmul.f32.gmra.mxu0 %v1545
  %v2343 = vpop.f32.mrf.mxu0
  %v2344 = vadd.f32 %v1895, %v2343
  %2345 = vmatmul.f32.gmra.mxu0 %v1547
  %v2346 = vpop.f32.mrf.mxu0
  %v2347 = vadd.f32 %v1898, %v2346
  %2348 = vmatmul.f32.gmra.mxu0 %v1549
  %v2349 = vpop.f32.mrf.mxu0
  %v2350 = vadd.f32 %v1901, %v2349
  %2351 = vmatmul.f32.gmra.mxu0 %v1551
  %v2352 = vpop.f32.mrf.mxu0
  %v2353 = vadd.f32 %v1904, %v2352
  %2354 = vmatmul.f32.gmra.mxu0 %v1553
  %v2355 = vpop.f32.mrf.mxu0
  %v2356 = vadd.f32 %v1907, %v2355
  %2357 = vmatmul.f32.gmra.mxu0 %v1555
  %v2358 = vpop.f32.mrf.mxu0
  %v2359 = vadd.f32 %v1910, %v2358
  %2360 = vmatmul.f32.gmra.mxu0 %v1557
  %v2361 = vpop.f32.mrf.mxu0
  %v2362 = vadd.f32 %v1913, %v2361
  %2363 = vmatmul.f32.gmra.mxu0 %v1559
  %v2364 = vpop.f32.mrf.mxu0
  %v2365 = vadd.f32 %v1916, %v2364
  %2366 = vmatmul.f32.gmra.mxu0 %v1561
  %v2367 = vpop.f32.mrf.mxu0
  %v2368 = vadd.f32 %v1919, %v2367
  %2369 = vmatmul.f32.gmra.mxu0 %v1563
  %v2370 = vpop.f32.mrf.mxu0
  %v2371 = vadd.f32 %v1922, %v2370
  %2372 = vmatmul.f32.gmra.mxu0 %v1565
  %v2373 = vpop.f32.mrf.mxu0
  %v2374 = vadd.f32 %v1925, %v2373
  %2375 = vmatmul.f32.gmra.mxu0 %v1567
  %v2376 = vpop.f32.mrf.mxu0
  %v2377 = vadd.f32 %v1928, %v2376
  %2378 = vmatmul.f32.gmra.mxu0 %v1569
  %v2379 = vpop.f32.mrf.mxu0
  %v2380 = vadd.f32 %v1931, %v2379
  %2381 = vmatmul.f32.gmra.mxu0 %v1571
  %v2382 = vpop.f32.mrf.mxu0
  %v2383 = vadd.f32 %v1934, %v2382
  %2384 = vmatmul.f32.gmra.mxu0 %v1573
  %v2385 = vpop.f32.mrf.mxu0
  %v2386 = vadd.f32 %v1937, %v2385
  %2387 = vmatmul.f32.gmra.mxu0 %v1575
  %v2388 = vpop.f32.mrf.mxu0
  %v2389 = vadd.f32 %v1940, %v2388
  %2390 = vmatmul.f32.gmra.mxu0 %v1577
  %v2391 = vpop.f32.mrf.mxu0
  %v2392 = vadd.f32 %v1943, %v2391
  %2393 = vmatmul.f32.gmra.mxu0 %v1579
  %v2394 = vpop.f32.mrf.mxu0
  %v2395 = vadd.f32 %v1946, %v2394
  %2396 = vmatmul.f32.gmra.mxu0 %v1581
  %v2397 = vpop.f32.mrf.mxu0
  %v2398 = vadd.f32 %v1949, %v2397
  %2399 = vmatmul.f32.gmra.mxu0 %v1583
  %v2400 = vpop.f32.mrf.mxu0
  %v2401 = vadd.f32 %v1952, %v2400
  %2402 = vmatmul.f32.gmra.mxu0 %v1585
  %v2403 = vpop.f32.mrf.mxu0
  %v2404 = vadd.f32 %v1955, %v2403
  %2405 = vmatmul.f32.gmra.mxu0 %v1587
  %v2406 = vpop.f32.mrf.mxu0
  %v2407 = vadd.f32 %v1958, %v2406
  %2408 = vmatmul.f32.gmra.mxu0 %v1589
  %v2409 = vpop.f32.mrf.mxu0
  %v2410 = vadd.f32 %v1961, %v2409
  %2411 = vmatmul.f32.gmra.mxu0 %v1591
  %v2412 = vpop.f32.mrf.mxu0
  %v2413 = vadd.f32 %v1964, %v2412
  %2414 = vmatmul.f32.gmra.mxu0 %v1593
  %v2415 = vpop.f32.mrf.mxu0
  %v2416 = vadd.f32 %v1967, %v2415
  %2417 = vmatmul.f32.gmra.mxu0 %v1595
  %v2418 = vpop.f32.mrf.mxu0
  %v2419 = vadd.f32 %v1970, %v2418
  %2420 = vmatmul.f32.gmra.mxu0 %v1597
  %v2421 = vpop.f32.mrf.mxu0
  %v2422 = vadd.f32 %v1973, %v2421
  %2423 = vmatmul.f32.gmra.mxu0 %v1599
  %v2424 = vpop.f32.mrf.mxu0
  %v2425 = vadd.f32 %v1976, %v2424
  %2426 = vmatmul.f32.gmra.mxu0 %v1601
  %v2427 = vpop.f32.mrf.mxu0
  %v2428 = vadd.f32 %v1979, %v2427
  %2429 = vmatmul.f32.gmra.mxu0 %v1603
  %v2430 = vpop.f32.mrf.mxu0
  %v2431 = vadd.f32 %v1982, %v2430
  %2432 = vmatmul.f32.gmra.mxu0 %v1605
  %v2433 = vpop.f32.mrf.mxu0
  %v2434 = vadd.f32 %v1985, %v2433
  %2435 = vmatmul.f32.gmra.mxu0 %v1607
  %v2436 = vpop.f32.mrf.mxu0
  %v2437 = vadd.f32 %v1988, %v2436
  %2438 = vmatmul.f32.gmra.mxu0 %v1609
  %v2439 = vpop.f32.mrf.mxu0
  %v2440 = vadd.f32 %v1991, %v2439
  %2441 = vmatmul.f32.gmra.mxu0 %v1611
  %v2442 = vpop.f32.mrf.mxu0
  %v2443 = vadd.f32 %v1994, %v2442
  %2444 = vmatmul.f32.gmra.mxu0 %v1613
  %v2445 = vpop.f32.mrf.mxu0
  %v2446 = vadd.f32 %v1997, %v2445
  %2447 = vmatmul.f32.gmra.mxu0 %v1615
  %v2448 = vpop.f32.mrf.mxu0
  %v2449 = vadd.f32 %v2000, %v2448
  %2450 = vmatmul.f32.gmra.mxu0 %v1617
  %v2451 = vpop.f32.mrf.mxu0
  %v2452 = vadd.f32 %v2003, %v2451
  %2453 = vmatmul.f32.gmra.mxu0 %v1619
  %v2454 = vpop.f32.mrf.mxu0
  %v2455 = vadd.f32 %v2006, %v2454
  %2456 = vmatmul.f32.gmra.mxu0 %v1621
  %v2457 = vpop.f32.mrf.mxu0
  %v2458 = vadd.f32 %v2009, %v2457
  %2459 = vmatmul.f32.gmra.mxu0 %v1623
  %v2460 = vpop.f32.mrf.mxu0
  %v2461 = vadd.f32 %v2012, %v2460
  %2462 = vmatmul.f32.gmra.mxu0 %v1625
  %v2463 = vpop.f32.mrf.mxu0
  %v2464 = vadd.f32 %v2015, %v2463
  %2465 = vmatmul.f32.gmra.mxu0 %v1627
  %v2466 = vpop.f32.mrf.mxu0
  %v2467 = vadd.f32 %v2018, %v2466
  %2468 = vmatmul.f32.gmra.mxu0 %v1629
  %v2469 = vpop.f32.mrf.mxu0
  %v2470 = vadd.f32 %v2021, %v2469
  %2471 = vmatmul.f32.gmra.mxu0 %v1631
  %v2472 = vpop.f32.mrf.mxu0
  %v2473 = vadd.f32 %v2024, %v2472
  %2474 = vmatmul.f32.gmra.mxu0 %v1633
  %v2475 = vpop.f32.mrf.mxu0
  %v2476 = vadd.f32 %v2027, %v2475
  %2477 = vmatmul.f32.gmra.mxu0 %v1635
  %v2478 = vpop.f32.mrf.mxu0
  %v2479 = vadd.f32 %v2030, %v2478
  %2480 = vmatmul.f32.gmra.mxu0 %v1637
  %v2481 = vpop.f32.mrf.mxu0
  %v2482 = vadd.f32 %v2033, %v2481
  %2483 = vmatmul.f32.gmra.mxu0 %v1639
  %v2484 = vpop.f32.mrf.mxu0
  %v2485 = vadd.f32 %v2036, %v2484
  %2486 = vmatmul.f32.gmra.mxu0 %v1641
  %v2487 = vpop.f32.mrf.mxu0
  %v2488 = vadd.f32 %v2039, %v2487
  %2489 = vmatmul.f32.gmra.mxu0 %v1643
  %v2490 = vpop.f32.mrf.mxu0
  %v2491 = vadd.f32 %v2042, %v2490
  %2492 = vmatmul.f32.gmra.mxu0 %v1645
  %v2493 = vpop.f32.mrf.mxu0
  %v2494 = vadd.f32 %v2045, %v2493
  %2495 = vmatmul.f32.gmra.mxu0 %v1647
  %v2496 = vpop.f32.mrf.mxu0
  %v2497 = vadd.f32 %v2048, %v2496
  %2498 = vmatmul.f32.gmra.mxu0 %v1649
  %v2499 = vpop.f32.mrf.mxu0
  %v2500 = vadd.f32 %v2051, %v2499
  %2501 = vmatmul.f32.gmra.mxu0 %v1651
  %v2502 = vpop.f32.mrf.mxu0
  %v2503 = vadd.f32 %v2054, %v2502
  %2504 = vmatmul.f32.gmra.mxu0 %v1653
  %v2505 = vpop.f32.mrf.mxu0
  %v2506 = vadd.f32 %v2057, %v2505
  %2507 = vmatmul.f32.gmra.mxu0 %v1655
  %v2508 = vpop.f32.mrf.mxu0
  %v2509 = vadd.f32 %v2060, %v2508
  %2510 = vmatmul.f32.gmra.mxu0 %v1657
  %v2511 = vpop.f32.mrf.mxu0
  %v2512 = vadd.f32 %v2063, %v2511
  %2513 = vmatmul.f32.gmra.mxu0 %v1659
  %v2514 = vpop.f32.mrf.mxu0
  %v2515 = vadd.f32 %v2066, %v2514
  %2516 = vmatmul.f32.gmra.mxu0 %v1661
  %v2517 = vpop.f32.mrf.mxu0
  %v2518 = vadd.f32 %v2069, %v2517
  %2519 = vmatmul.f32.gmra.mxu0 %v1663
  %v2520 = vpop.f32.mrf.mxu0
  %v2521 = vadd.f32 %v2072, %v2520
  %2522 = vmatmul.f32.gmra.mxu0 %v1665
  %v2523 = vpop.f32.mrf.mxu0
  %v2524 = vadd.f32 %v2075, %v2523
  %2525 = vmatmul.f32.gmra.mxu0 %v1667
  %v2526 = vpop.f32.mrf.mxu0
  %v2527 = vadd.f32 %v2078, %v2526
  %2528 = vmatmul.f32.gmra.mxu0 %v1669
  %v2529 = vpop.f32.mrf.mxu0
  %v2530 = vadd.f32 %v2081, %v2529
  %2531 = vmatmul.f32.gmra.mxu0 %v1671
  %v2532 = vpop.f32.mrf.mxu0
  %v2533 = vadd.f32 %v2084, %v2532
  %2534 = vmatmul.f32.gmra.mxu0 %v1673
  %v2535 = vpop.f32.mrf.mxu0
  %v2536 = vadd.f32 %v2087, %v2535
  %2537 = vmatmul.f32.gmra.mxu0 %v1675
  %v2538 = vpop.f32.mrf.mxu0
  %v2539 = vadd.f32 %v2090, %v2538
  %2540 = vmatmul.f32.gmra.mxu0 %v1677
  %v2541 = vpop.f32.mrf.mxu0
  %v2542 = vadd.f32 %v2093, %v2541
  %2543 = vmatmul.f32.gmra.mxu0 %v1679
  %v2544 = vpop.f32.mrf.mxu0
  %v2545 = vadd.f32 %v2096, %v2544
  %2546 = vmatmul.f32.gmra.mxu0 %v1681
  %v2547 = vpop.f32.mrf.mxu0
  %v2548 = vadd.f32 %v2099, %v2547
  %2549 = vmatmul.f32.gmra.mxu0 %v1683
  %v2550 = vpop.f32.mrf.mxu0
  %v2551 = vadd.f32 %v2102, %v2550
  %2552 = vmatmul.f32.gmra.mxu0 %v1685
  %v2553 = vpop.f32.mrf.mxu0
  %v2554 = vadd.f32 %v2105, %v2553
  %2555 = vmatmul.f32.gmra.mxu0 %v1687
  %v2556 = vpop.f32.mrf.mxu0
  %v2557 = vadd.f32 %v2108, %v2556
  %2558 = vmatmul.f32.gmra.mxu0 %v1689
  %v2559 = vpop.f32.mrf.mxu0
  %v2560 = vadd.f32 %v2111, %v2559
  %2561 = vmatmul.f32.gmra.mxu0 %v1691
  %v2562 = vpop.f32.mrf.mxu0
  %v2563 = vadd.f32 %v2114, %v2562
  %2564 = vmatmul.f32.gmra.mxu0 %v1693
  %v2565 = vpop.f32.mrf.mxu0
  %v2566 = vadd.f32 %v2117, %v2565
  %2567 = vmatmul.f32.gmra.mxu0 %v1695
  %v2568 = vpop.f32.mrf.mxu0
  %v2569 = vadd.f32 %v2120, %v2568
  %2570 = vmatmul.f32.gmra.mxu0 %v1697
  %v2571 = vpop.f32.mrf.mxu0
  %v2572 = vadd.f32 %v2123, %v2571
  %2573 = vmatmul.f32.gmra.mxu0 %v1699
  %v2574 = vpop.f32.mrf.mxu0
  %v2575 = vadd.f32 %v2126, %v2574
  %2576 = vmatmul.f32.gmra.mxu0 %v1701
  %v2577 = vpop.f32.mrf.mxu0
  %v2578 = vadd.f32 %v2129, %v2577
  %2579 = vmatmul.f32.gmra.mxu0 %v1703
  %v2580 = vpop.f32.mrf.mxu0
  %v2581 = vadd.f32 %v2132, %v2580
  %2582 = vmatmul.f32.gmra.mxu0 %v1705
  %v2583 = vpop.f32.mrf.mxu0
  %v2584 = vadd.f32 %v2135, %v2583
  %2585 = vmatmul.f32.gmra.mxu0 %v1707
  %v2586 = vpop.f32.mrf.mxu0
  %v2587 = vadd.f32 %v2138, %v2586
  %2588 = vmatmul.f32.gmra.mxu0 %v1709
  %v2589 = vpop.f32.mrf.mxu0
  %v2590 = vadd.f32 %v2141, %v2589
  %2591 = vmatmul.f32.gmra.mxu0 %v1711
  %v2592 = vpop.f32.mrf.mxu0
  %v2593 = vadd.f32 %v2144, %v2592
  %2594 = vmatmul.f32.gmra.mxu0 %v1713
  %v2595 = vpop.f32.mrf.mxu0
  %v2596 = vadd.f32 %v2147, %v2595
  %2597 = vmatmul.f32.gmra.mxu0 %v1715
  %v2598 = vpop.f32.mrf.mxu0
  %v2599 = vadd.f32 %v2150, %v2598
  %2600 = vmatmul.f32.gmra.mxu0 %v1717
  %v2601 = vpop.f32.mrf.mxu0
  %v2602 = vadd.f32 %v2153, %v2601
  %2603 = vmatmul.f32.gmra.mxu0 %v1719
  %v2604 = vpop.f32.mrf.mxu0
  %v2605 = vadd.f32 %v2156, %v2604
  %2606 = vmatmul.f32.gmra.mxu0 %v1721
  %v2607 = vpop.f32.mrf.mxu0
  %v2608 = vadd.f32 %v2159, %v2607
  %2609 = vmatmul.f32.gmra.mxu0 %v1723
  %v2610 = vpop.f32.mrf.mxu0
  %v2611 = vadd.f32 %v2162, %v2610
  %2612 = vmatmul.f32.gmra.mxu0 %v1725
  %v2613 = vpop.f32.mrf.mxu0
  %v2614 = vadd.f32 %v2165, %v2613
  %2615 = vmatmul.f32.gmra.mxu0 %v1727
  %v2616 = vpop.f32.mrf.mxu0
  %v2617 = vadd.f32 %v2168, %v2616
  %2618 = vmatmul.f32.gmra.mxu0 %v1729
  %v2619 = vpop.f32.mrf.mxu0
  %v2620 = vadd.f32 %v2171, %v2619
  %2621 = vmatmul.f32.gmra.mxu0 %v1731
  %v2622 = vpop.f32.mrf.mxu0
  %v2623 = vadd.f32 %v2174, %v2622
  %2624 = vmatmul.f32.gmra.mxu0 %v1733
  %v2625 = vpop.f32.mrf.mxu0
  %v2626 = vadd.f32 %v2177, %v2625
  %2627 = vmatmul.f32.gmra.mxu0 %v1735
  %v2628 = vpop.f32.mrf.mxu0
  %v2629 = vadd.f32 %v2180, %v2628
  %2630 = vmatmul.f32.gmra.mxu0 %v1737
  %v2631 = vpop.f32.mrf.mxu0
  %v2632 = vadd.f32 %v2183, %v2631
  %2633 = vmatmul.f32.gmra.mxu0 %v1739
  %v2634 = vpop.f32.mrf.mxu0
  %v2635 = vadd.f32 %v2186, %v2634
  %2636 = vmatmul.f32.gmra.mxu0 %v1741
  %v2637 = vpop.f32.mrf.mxu0
  %v2638 = vadd.f32 %v2189, %v2637
  %2639 = vmatmul.f32.gmra.mxu0 %v1743
  %v2640 = vpop.f32.mrf.mxu0
  %v2641 = vadd.f32 %v2192, %v2640
  %2642 = vmatmul.f32.gmra.mxu0 %v1745
  %v2643 = vpop.f32.mrf.mxu0
  %v2644 = vadd.f32 %v2195, %v2643
  %2645 = vmatmul.f32.gmra.mxu0 %v1747
  %v2646 = vpop.f32.mrf.mxu0
  %v2647 = vadd.f32 %v2198, %v2646
  %2648 = vmatmul.f32.gmra.mxu0 %v1749
  %v2649 = vpop.f32.mrf.mxu0
  %v2650 = vadd.f32 %v2201, %v2649
  %2651 = vmatmul.f32.gmra.mxu0 %v1751
  %v2652 = vpop.f32.mrf.mxu0
  %v2653 = vadd.f32 %v2204, %v2652
  %2654 = vmatmul.f32.gmra.mxu0 %v1753
  %v2655 = vpop.f32.mrf.mxu0
  %v2656 = vadd.f32 %v2207, %v2655
  %2657 = vmatmul.f32.gmra.mxu0 %v1755
  %v2658 = vpop.f32.mrf.mxu0
  %v2659 = vadd.f32 %v2210, %v2658
  %2660 = vmatmul.f32.gmra.mxu0 %v1757
  %v2661 = vpop.f32.mrf.mxu0
  %v2662 = vadd.f32 %v2213, %v2661
  %2663 = vmatmul.f32.gmra.mxu0 %v1759
  %v2664 = vpop.f32.mrf.mxu0
  %v2665 = vadd.f32 %v2216, %v2664
  %2666 = vmatmul.f32.gmra.mxu0 %v1761
  %v2667 = vpop.f32.mrf.mxu0
  %v2668 = vadd.f32 %v2219, %v2667
  %2669 = vmatmul.f32.gmra.mxu0 %v1763
  %v2670 = vpop.f32.mrf.mxu0
  %v2671 = vadd.f32 %v2222, %v2670
  %2672 = vmatmul.f32.gmra.mxu0 %v1765
  %v2673 = vpop.f32.mrf.mxu0
  %v2674 = vadd.f32 %v2225, %v2673
  %2675 = vmatmul.f32.gmra.mxu0 %v1767
  %v2676 = vpop.f32.mrf.mxu0
  %v2677 = vadd.f32 %v2228, %v2676
  %2678 = vmatmul.f32.gmra.mxu0 %v1769
  %v2679 = vpop.f32.mrf.mxu0
  %v2680 = vadd.f32 %v2231, %v2679
  %2681 = vmatmul.f32.gmra.mxu0 %v1771
  %v2682 = vpop.f32.mrf.mxu0
  %v2683 = vadd.f32 %v2234, %v2682
  %2684 = vmatmul.f32.gmra.mxu0 %v1773
  %v2685 = vpop.f32.mrf.mxu0
  %v2686 = vadd.f32 %v2237, %v2685
  %2687 = vmatmul.f32.gmra.mxu0 %v1775
  %v2688 = vpop.f32.mrf.mxu0
  %v2689 = vadd.f32 %v2240, %v2688
  %2690 = vmatmul.f32.gmra.mxu0 %v1777
  %v2691 = vpop.f32.mrf.mxu0
  %v2692 = vadd.f32 %v2243, %v2691
  %2693 = vmatmul.f32.gmra.mxu0 %v1779
  %v2694 = vpop.f32.mrf.mxu0
  %v2695 = vadd.f32 %v2246, %v2694
  %2696 = vmatmul.f32.gmra.mxu0 %v1781
  %v2697 = vpop.f32.mrf.mxu0
  %v2698 = vadd.f32 %v2249, %v2697
  %2699 = vmatmul.f32.gmra.mxu0 %v1783
  %v2700 = vpop.f32.mrf.mxu0
  %v2701 = vadd.f32 %v2252, %v2700
  %2702 = vmatmul.f32.gmra.mxu0 %v1785
  %v2703 = vpop.f32.mrf.mxu0
  %v2704 = vadd.f32 %v2255, %v2703
  %2705 = vmatmul.f32.gmra.mxu0 %v1787
  %v2706 = vpop.f32.mrf.mxu0
  %v2707 = vadd.f32 %v2258, %v2706
  %2708 = vmatmul.f32.gmra.mxu0 %v1789
  %v2709 = vpop.f32.mrf.mxu0
  %v2710 = vadd.f32 %v2261, %v2709
  %2711 = vmatmul.f32.gmra.mxu0 %v1791
  %v2712 = vpop.f32.mrf.mxu0
  %v2713 = vadd.f32 %v2264, %v2712
  %2714 = vmatmul.f32.gmra.mxu0 %v1793
  %v2715 = vpop.f32.mrf.mxu0
  %v2716 = vadd.f32 %v2267, %v2715
  %2717 = vmatmul.f32.gmra.mxu0 %v1795
  %v2718 = vpop.f32.mrf.mxu0
  %v2719 = vadd.f32 %v2270, %v2718
  %2720 = vmatmul.f32.gmra.mxu0 %v1797
  %v2721 = vpop.f32.mrf.mxu0
  %v2722 = vadd.f32 %v2273, %v2721
  %2723 = vmatmul.f32.gmra.mxu0 %v1799
  %v2724 = vpop.f32.mrf.mxu0
  %v2725 = vadd.f32 %v2276, %v2724
  %2726 = vmatmul.f32.gmra.mxu0 %v1801
  %v2727 = vpop.f32.mrf.mxu0
  %v2728 = vadd.f32 %v2279, %v2727
  %2729 = vmatmul.f32.gmra.mxu0 %v1803
  %v2730 = vpop.f32.mrf.mxu0
  %v2731 = vadd.f32 %v2282, %v2730
  %2732 = vmatmul.f32.gmra.mxu0 %v1805
  %v2733 = vpop.f32.mrf.mxu0
  %v2734 = vadd.f32 %v2285, %v2733
  %2735 = vdwg.mxu0
  %2880 = vrot.lane.b32.xlu0 %v2305, 96
  %v2881 = vpop.permute.xlu0 %2880
  %2882 = vrot.lane.b32.xlu0 %v2308, 96
  %v2883 = vpop.permute.xlu0 %2882
  %2884 = vrot.lane.b32.xlu0 %v2311, 96
  %v2885 = vpop.permute.xlu0 %2884
  %2886 = vrot.lane.b32.xlu0 %v2314, 96
  %v2887 = vpop.permute.xlu0 %2886
  %2888 = vrot.lane.b32.xlu0 %v2317, 96
  %v2889 = vpop.permute.xlu0 %2888
  %2890 = vrot.lane.b32.xlu0 %v2320, 96
  %v2891 = vpop.permute.xlu0 %2890
  %2892 = vrot.lane.b32.xlu0 %v2323, 96
  %v2893 = vpop.permute.xlu0 %2892
  %2894 = vrot.lane.b32.xlu0 %v2326, 96
  %v2895 = vpop.permute.xlu0 %2894
  %2896 = vrot.lane.b32.xlu0 %v2329, 96
  %v2897 = vpop.permute.xlu0 %2896
  %2898 = vrot.lane.b32.xlu0 %v2332, 96
  %v2899 = vpop.permute.xlu0 %2898
  %2900 = vrot.lane.b32.xlu0 %v2335, 96
  %v2901 = vpop.permute.xlu0 %2900
  %2902 = vrot.lane.b32.xlu0 %v2338, 96
  %v2903 = vpop.permute.xlu0 %2902
  %2904 = vrot.lane.b32.xlu0 %v2341, 96
  %v2905 = vpop.permute.xlu0 %2904
  %2906 = vrot.lane.b32.xlu0 %v2344, 96
  %v2907 = vpop.permute.xlu0 %2906
  %2908 = vrot.lane.b32.xlu0 %v2347, 96
  %v2909 = vpop.permute.xlu0 %2908
  %2910 = vrot.lane.b32.xlu0 %v2350, 96
  %v2911 = vpop.permute.xlu0 %2910
  %2912 = vrot.lane.b32.xlu0 %v2353, 96
  %v2913 = vpop.permute.xlu0 %2912
  %2914 = vrot.lane.b32.xlu0 %v2356, 96
  %v2915 = vpop.permute.xlu0 %2914
  %2916 = vrot.lane.b32.xlu0 %v2359, 96
  %v2917 = vpop.permute.xlu0 %2916
  %2918 = vrot.lane.b32.xlu0 %v2362, 96
  %v2919 = vpop.permute.xlu0 %2918
  %2920 = vrot.lane.b32.xlu0 %v2365, 96
  %v2921 = vpop.permute.xlu0 %2920
  %2922 = vrot.lane.b32.xlu0 %v2368, 96
  %v2923 = vpop.permute.xlu0 %2922
  %2924 = vrot.lane.b32.xlu0 %v2371, 96
  %v2925 = vpop.permute.xlu0 %2924
  %2926 = vrot.lane.b32.xlu0 %v2374, 96
  %v2927 = vpop.permute.xlu0 %2926
  %2928 = vrot.lane.b32.xlu0 %v2377, 96
  %v2929 = vpop.permute.xlu0 %2928
  %2930 = vrot.lane.b32.xlu0 %v2380, 96
  %v2931 = vpop.permute.xlu0 %2930
  %2932 = vrot.lane.b32.xlu0 %v2383, 96
  %v2933 = vpop.permute.xlu0 %2932
  %2934 = vrot.lane.b32.xlu0 %v2386, 96
  %v2935 = vpop.permute.xlu0 %2934
  %2936 = vrot.lane.b32.xlu0 %v2389, 96
  %v2937 = vpop.permute.xlu0 %2936
  %2938 = vrot.lane.b32.xlu0 %v2392, 96
  %v2939 = vpop.permute.xlu0 %2938
  %2940 = vrot.lane.b32.xlu0 %v2395, 96
  %v2941 = vpop.permute.xlu0 %2940
  %2942 = vrot.lane.b32.xlu0 %v2398, 96
  %v2943 = vpop.permute.xlu0 %2942
  %2944 = vrot.lane.b32.xlu0 %v2401, 96
  %v2945 = vpop.permute.xlu0 %2944
  %2946 = vrot.lane.b32.xlu0 %v2404, 96
  %v2947 = vpop.permute.xlu0 %2946
  %2948 = vrot.lane.b32.xlu0 %v2407, 96
  %v2949 = vpop.permute.xlu0 %2948
  %2950 = vrot.lane.b32.xlu0 %v2410, 96
  %v2951 = vpop.permute.xlu0 %2950
  %2952 = vrot.lane.b32.xlu0 %v2413, 96
  %v2953 = vpop.permute.xlu0 %2952
  %2954 = vrot.lane.b32.xlu0 %v2416, 96
  %v2955 = vpop.permute.xlu0 %2954
  %2956 = vrot.lane.b32.xlu0 %v2419, 96
  %v2957 = vpop.permute.xlu0 %2956
  %2958 = vrot.lane.b32.xlu0 %v2422, 96
  %v2959 = vpop.permute.xlu0 %2958
  %2960 = vrot.lane.b32.xlu0 %v2425, 96
  %v2961 = vpop.permute.xlu0 %2960
  %2962 = vrot.lane.b32.xlu0 %v2428, 96
  %v2963 = vpop.permute.xlu0 %2962
  %2964 = vrot.lane.b32.xlu0 %v2431, 96
  %v2965 = vpop.permute.xlu0 %2964
  %2966 = vrot.lane.b32.xlu0 %v2434, 96
  %v2967 = vpop.permute.xlu0 %2966
  %2968 = vrot.lane.b32.xlu0 %v2437, 96
  %v2969 = vpop.permute.xlu0 %2968
  %2970 = vrot.lane.b32.xlu0 %v2440, 96
  %v2971 = vpop.permute.xlu0 %2970
  %2972 = vrot.lane.b32.xlu0 %v2443, 96
  %v2973 = vpop.permute.xlu0 %2972
  %2974 = vrot.lane.b32.xlu0 %v2446, 96
  %v2975 = vpop.permute.xlu0 %2974
  %2976 = vrot.lane.b32.xlu0 %v2449, 96
  %v2977 = vpop.permute.xlu0 %2976
  %2978 = vrot.lane.b32.xlu0 %v2452, 96
  %v2979 = vpop.permute.xlu0 %2978
  %2980 = vrot.lane.b32.xlu0 %v2455, 96
  %v2981 = vpop.permute.xlu0 %2980
  %2982 = vrot.lane.b32.xlu0 %v2458, 96
  %v2983 = vpop.permute.xlu0 %2982
  %2984 = vrot.lane.b32.xlu0 %v2461, 96
  %v2985 = vpop.permute.xlu0 %2984
  %2986 = vrot.lane.b32.xlu0 %v2464, 96
  %v2987 = vpop.permute.xlu0 %2986
  %2988 = vrot.lane.b32.xlu0 %v2467, 96
  %v2989 = vpop.permute.xlu0 %2988
  %2990 = vrot.lane.b32.xlu0 %v2470, 96
  %v2991 = vpop.permute.xlu0 %2990
  %2992 = vrot.lane.b32.xlu0 %v2473, 96
  %v2993 = vpop.permute.xlu0 %2992
  %2994 = vrot.lane.b32.xlu0 %v2476, 96
  %v2995 = vpop.permute.xlu0 %2994
  %2996 = vrot.lane.b32.xlu0 %v2479, 96
  %v2997 = vpop.permute.xlu0 %2996
  %2998 = vrot.lane.b32.xlu0 %v2482, 96
  %v2999 = vpop.permute.xlu0 %2998
  %3000 = vrot.lane.b32.xlu0 %v2485, 96
  %v3001 = vpop.permute.xlu0 %3000
  %3002 = vrot.lane.b32.xlu0 %v2488, 96
  %v3003 = vpop.permute.xlu0 %3002
  %3004 = vrot.lane.b32.xlu0 %v2491, 96
  %v3005 = vpop.permute.xlu0 %3004
  %3006 = vrot.lane.b32.xlu0 %v2494, 96
  %v3007 = vpop.permute.xlu0 %3006
  %3008 = vrot.lane.b32.xlu0 %v2497, 96
  %v3009 = vpop.permute.xlu0 %3008
  %3010 = vrot.lane.b32.xlu0 %v2500, 96
  %v3011 = vpop.permute.xlu0 %3010
  %3012 = vrot.lane.b32.xlu0 %v2503, 96
  %v3013 = vpop.permute.xlu0 %3012
  %3014 = vrot.lane.b32.xlu0 %v2506, 96
  %v3015 = vpop.permute.xlu0 %3014
  %3016 = vrot.lane.b32.xlu0 %v2509, 96
  %v3017 = vpop.permute.xlu0 %3016
  %3018 = vrot.lane.b32.xlu0 %v2512, 96
  %v3019 = vpop.permute.xlu0 %3018
  %3020 = vrot.lane.b32.xlu0 %v2515, 96
  %v3021 = vpop.permute.xlu0 %3020
  %3022 = vrot.lane.b32.xlu0 %v2518, 96
  %v3023 = vpop.permute.xlu0 %3022
  %3024 = vrot.lane.b32.xlu0 %v2521, 96
  %v3025 = vpop.permute.xlu0 %3024
  %3026 = vrot.lane.b32.xlu0 %v2524, 96
  %v3027 = vpop.permute.xlu0 %3026
  %3028 = vrot.lane.b32.xlu0 %v2527, 96
  %v3029 = vpop.permute.xlu0 %3028
  %3030 = vrot.lane.b32.xlu0 %v2530, 96
  %v3031 = vpop.permute.xlu0 %3030
  %3032 = vrot.lane.b32.xlu0 %v2533, 96
  %v3033 = vpop.permute.xlu0 %3032
  %3034 = vrot.lane.b32.xlu0 %v2536, 96
  %v3035 = vpop.permute.xlu0 %3034
  %3036 = vrot.lane.b32.xlu0 %v2539, 96
  %v3037 = vpop.permute.xlu0 %3036
  %3038 = vrot.lane.b32.xlu0 %v2542, 96
  %v3039 = vpop.permute.xlu0 %3038
  %3040 = vrot.lane.b32.xlu0 %v2545, 96
  %v3041 = vpop.permute.xlu0 %3040
  %3042 = vrot.lane.b32.xlu0 %v2548, 96
  %v3043 = vpop.permute.xlu0 %3042
  %3044 = vrot.lane.b32.xlu0 %v2551, 96
  %v3045 = vpop.permute.xlu0 %3044
  %3046 = vrot.lane.b32.xlu0 %v2554, 96
  %v3047 = vpop.permute.xlu0 %3046
  %3048 = vrot.lane.b32.xlu0 %v2557, 96
  %v3049 = vpop.permute.xlu0 %3048
  %3050 = vrot.lane.b32.xlu0 %v2560, 96
  %v3051 = vpop.permute.xlu0 %3050
  %3052 = vrot.lane.b32.xlu0 %v2563, 96
  %v3053 = vpop.permute.xlu0 %3052
  %3054 = vrot.lane.b32.xlu0 %v2566, 96
  %v3055 = vpop.permute.xlu0 %3054
  %3056 = vrot.lane.b32.xlu0 %v2569, 96
  %v3057 = vpop.permute.xlu0 %3056
  %3058 = vrot.lane.b32.xlu0 %v2572, 96
  %v3059 = vpop.permute.xlu0 %3058
  %3060 = vrot.lane.b32.xlu0 %v2575, 96
  %v3061 = vpop.permute.xlu0 %3060
  %3062 = vrot.lane.b32.xlu0 %v2578, 96
  %v3063 = vpop.permute.xlu0 %3062
  %3064 = vrot.lane.b32.xlu0 %v2581, 96
  %v3065 = vpop.permute.xlu0 %3064
  %3066 = vrot.lane.b32.xlu0 %v2584, 96
  %v3067 = vpop.permute.xlu0 %3066
  %3068 = vrot.lane.b32.xlu0 %v2587, 96
  %v3069 = vpop.permute.xlu0 %3068
  %3070 = vrot.lane.b32.xlu0 %v2590, 96
  %v3071 = vpop.permute.xlu0 %3070
  %3072 = vrot.lane.b32.xlu0 %v2593, 96
  %v3073 = vpop.permute.xlu0 %3072
  %3074 = vrot.lane.b32.xlu0 %v2596, 96
  %v3075 = vpop.permute.xlu0 %3074
  %3076 = vrot.lane.b32.xlu0 %v2599, 96
  %v3077 = vpop.permute.xlu0 %3076
  %3078 = vrot.lane.b32.xlu0 %v2602, 96
  %v3079 = vpop.permute.xlu0 %3078
  %3080 = vrot.lane.b32.xlu0 %v2605, 96
  %v3081 = vpop.permute.xlu0 %3080
  %3082 = vrot.lane.b32.xlu0 %v2608, 96
  %v3083 = vpop.permute.xlu0 %3082
  %3084 = vrot.lane.b32.xlu0 %v2611, 96
  %v3085 = vpop.permute.xlu0 %3084
  %3086 = vrot.lane.b32.xlu0 %v2614, 96
  %v3087 = vpop.permute.xlu0 %3086
  %3088 = vrot.lane.b32.xlu0 %v2617, 96
  %v3089 = vpop.permute.xlu0 %3088
  %3090 = vrot.lane.b32.xlu0 %v2620, 96
  %v3091 = vpop.permute.xlu0 %3090
  %3092 = vrot.lane.b32.xlu0 %v2623, 96
  %v3093 = vpop.permute.xlu0 %3092
  %3094 = vrot.lane.b32.xlu0 %v2626, 96
  %v3095 = vpop.permute.xlu0 %3094
  %3096 = vrot.lane.b32.xlu0 %v2629, 96
  %v3097 = vpop.permute.xlu0 %3096
  %3098 = vrot.lane.b32.xlu0 %v2632, 96
  %v3099 = vpop.permute.xlu0 %3098
  %3100 = vrot.lane.b32.xlu0 %v2635, 96
  %v3101 = vpop.permute.xlu0 %3100
  %3102 = vrot.lane.b32.xlu0 %v2638, 96
  %v3103 = vpop.permute.xlu0 %3102
  %3104 = vrot.lane.b32.xlu0 %v2641, 96
  %v3105 = vpop.permute.xlu0 %3104
  %3106 = vrot.lane.b32.xlu0 %v2644, 96
  %v3107 = vpop.permute.xlu0 %3106
  %3108 = vrot.lane.b32.xlu0 %v2647, 96
  %v3109 = vpop.permute.xlu0 %3108
  %3110 = vrot.lane.b32.xlu0 %v2650, 96
  %v3111 = vpop.permute.xlu0 %3110
  %3112 = vrot.lane.b32.xlu0 %v2653, 96
  %v3113 = vpop.permute.xlu0 %3112
  %3114 = vrot.lane.b32.xlu0 %v2656, 96
  %v3115 = vpop.permute.xlu0 %3114
  %3116 = vrot.lane.b32.xlu0 %v2659, 96
  %v3117 = vpop.permute.xlu0 %3116
  %3118 = vrot.lane.b32.xlu0 %v2662, 96
  %v3119 = vpop.permute.xlu0 %3118
  %3120 = vrot.lane.b32.xlu0 %v2665, 96
  %v3121 = vpop.permute.xlu0 %3120
  %3122 = vrot.lane.b32.xlu0 %v2668, 96
  %v3123 = vpop.permute.xlu0 %3122
  %3124 = vrot.lane.b32.xlu0 %v2671, 96
  %v3125 = vpop.permute.xlu0 %3124
  %3126 = vrot.lane.b32.xlu0 %v2674, 96
  %v3127 = vpop.permute.xlu0 %3126
  %3128 = vrot.lane.b32.xlu0 %v2677, 96
  %v3129 = vpop.permute.xlu0 %3128
  %3130 = vrot.lane.b32.xlu0 %v2680, 96
  %v3131 = vpop.permute.xlu0 %3130
  %3132 = vrot.lane.b32.xlu0 %v2683, 96
  %v3133 = vpop.permute.xlu0 %3132
  %3134 = vrot.lane.b32.xlu0 %v2686, 96
  %v3135 = vpop.permute.xlu0 %3134
  %3136 = vrot.lane.b32.xlu0 %v2689, 96
  %v3137 = vpop.permute.xlu0 %3136
  %3138 = vrot.lane.b32.xlu0 %v2692, 96
  %v3139 = vpop.permute.xlu0 %3138
  %3140 = vrot.lane.b32.xlu0 %v2695, 96
  %v3141 = vpop.permute.xlu0 %3140
  %3142 = vrot.lane.b32.xlu0 %v2698, 96
  %v3143 = vpop.permute.xlu0 %3142
  %3144 = vrot.lane.b32.xlu0 %v2701, 96
  %v3145 = vpop.permute.xlu0 %3144
  %3146 = vrot.lane.b32.xlu0 %v2704, 96
  %v3147 = vpop.permute.xlu0 %3146
  %3148 = vrot.lane.b32.xlu0 %v2707, 96
  %v3149 = vpop.permute.xlu0 %3148
  %3150 = vrot.lane.b32.xlu0 %v2710, 96
  %v3151 = vpop.permute.xlu0 %3150
  %3152 = vrot.lane.b32.xlu0 %v2713, 96
  %v3153 = vpop.permute.xlu0 %3152
  %3154 = vrot.lane.b32.xlu0 %v2716, 96
  %v3155 = vpop.permute.xlu0 %3154
  %3156 = vrot.lane.b32.xlu0 %v2719, 96
  %v3157 = vpop.permute.xlu0 %3156
  %3158 = vrot.lane.b32.xlu0 %v2722, 96
  %v3159 = vpop.permute.xlu0 %3158
  %3160 = vrot.lane.b32.xlu0 %v2725, 96
  %v3161 = vpop.permute.xlu0 %3160
  %3162 = vrot.lane.b32.xlu0 %v2728, 96
  %v3163 = vpop.permute.xlu0 %3162
  %3164 = vrot.lane.b32.xlu0 %v2731, 96
  %v3165 = vpop.permute.xlu0 %3164
  %3166 = vrot.lane.b32.xlu0 %v2734, 96
  %v3167 = vpop.permute.xlu0 %3166
  %v3312 = vmax.f32 %v2305, %v2881
  %v3313 = vmax.f32 %v2308, %v2883
  %v3314 = vmax.f32 %v2311, %v2885
  %v3315 = vmax.f32 %v2314, %v2887
  %v3316 = vmax.f32 %v2317, %v2889
  %v3317 = vmax.f32 %v2320, %v2891
  %v3318 = vmax.f32 %v2323, %v2893
  %v3319 = vmax.f32 %v2326, %v2895
  %v3320 = vmax.f32 %v2329, %v2897
  %v3321 = vmax.f32 %v2332, %v2899
  %v3322 = vmax.f32 %v2335, %v2901
  %v3323 = vmax.f32 %v2338, %v2903
  %v3324 = vmax.f32 %v2341, %v2905
  %v3325 = vmax.f32 %v2344, %v2907
  %v3326 = vmax.f32 %v2347, %v2909
  %v3327 = vmax.f32 %v2350, %v2911
  %v3328 = vmax.f32 %v2353, %v2913
  %v3329 = vmax.f32 %v2356, %v2915
  %v3330 = vmax.f32 %v2359, %v2917
  %v3331 = vmax.f32 %v2362, %v2919
  %v3332 = vmax.f32 %v2365, %v2921
  %v3333 = vmax.f32 %v2368, %v2923
  %v3334 = vmax.f32 %v2371, %v2925
  %v3335 = vmax.f32 %v2374, %v2927
  %v3336 = vmax.f32 %v2377, %v2929
  %v3337 = vmax.f32 %v2380, %v2931
  %v3338 = vmax.f32 %v2383, %v2933
  %v3339 = vmax.f32 %v2386, %v2935
  %v3340 = vmax.f32 %v2389, %v2937
  %v3341 = vmax.f32 %v2392, %v2939
  %v3342 = vmax.f32 %v2395, %v2941
  %v3343 = vmax.f32 %v2398, %v2943
  %v3344 = vmax.f32 %v2401, %v2945
  %v3345 = vmax.f32 %v2404, %v2947
  %v3346 = vmax.f32 %v2407, %v2949
  %v3347 = vmax.f32 %v2410, %v2951
  %v3348 = vmax.f32 %v2413, %v2953
  %v3349 = vmax.f32 %v2416, %v2955
  %v3350 = vmax.f32 %v2419, %v2957
  %v3351 = vmax.f32 %v2422, %v2959
  %v3352 = vmax.f32 %v2425, %v2961
  %v3353 = vmax.f32 %v2428, %v2963
  %v3354 = vmax.f32 %v2431, %v2965
  %v3355 = vmax.f32 %v2434, %v2967
  %v3356 = vmax.f32 %v2437, %v2969
  %v3357 = vmax.f32 %v2440, %v2971
  %v3358 = vmax.f32 %v2443, %v2973
  %v3359 = vmax.f32 %v2446, %v2975
  %v3360 = vmax.f32 %v2449, %v2977
  %v3361 = vmax.f32 %v2452, %v2979
  %v3362 = vmax.f32 %v2455, %v2981
  %v3363 = vmax.f32 %v2458, %v2983
  %v3364 = vmax.f32 %v2461, %v2985
  %v3365 = vmax.f32 %v2464, %v2987
  %v3366 = vmax.f32 %v2467, %v2989
  %v3367 = vmax.f32 %v2470, %v2991
  %v3368 = vmax.f32 %v2473, %v2993
  %v3369 = vmax.f32 %v2476, %v2995
  %v3370 = vmax.f32 %v2479, %v2997
  %v3371 = vmax.f32 %v2482, %v2999
  %v3372 = vmax.f32 %v2485, %v3001
  %v3373 = vmax.f32 %v2488, %v3003
  %v3374 = vmax.f32 %v2491, %v3005
  %v3375 = vmax.f32 %v2494, %v3007
  %v3376 = vmax.f32 %v2497, %v3009
  %v3377 = vmax.f32 %v2500, %v3011
  %v3378 = vmax.f32 %v2503, %v3013
  %v3379 = vmax.f32 %v2506, %v3015
  %v3380 = vmax.f32 %v2509, %v3017
  %v3381 = vmax.f32 %v2512, %v3019
  %v3382 = vmax.f32 %v2515, %v3021
  %v3383 = vmax.f32 %v2518, %v3023
  %v3384 = vmax.f32 %v2521, %v3025
  %v3385 = vmax.f32 %v2524, %v3027
  %v3386 = vmax.f32 %v2527, %v3029
  %v3387 = vmax.f32 %v2530, %v3031
  %v3388 = vmax.f32 %v2533, %v3033
  %v3389 = vmax.f32 %v2536, %v3035
  %v3390 = vmax.f32 %v2539, %v3037
  %v3391 = vmax.f32 %v2542, %v3039
  %v3392 = vmax.f32 %v2545, %v3041
  %v3393 = vmax.f32 %v2548, %v3043
  %v3394 = vmax.f32 %v2551, %v3045
  %v3395 = vmax.f32 %v2554, %v3047
  %v3396 = vmax.f32 %v2557, %v3049
  %v3397 = vmax.f32 %v2560, %v3051
  %v3398 = vmax.f32 %v2563, %v3053
  %v3399 = vmax.f32 %v2566, %v3055
  %v3400 = vmax.f32 %v2569, %v3057
  %v3401 = vmax.f32 %v2572, %v3059
  %v3402 = vmax.f32 %v2575, %v3061
  %v3403 = vmax.f32 %v2578, %v3063
  %v3404 = vmax.f32 %v2581, %v3065
  %v3405 = vmax.f32 %v2584, %v3067
  %v3406 = vmax.f32 %v2587, %v3069
  %v3407 = vmax.f32 %v2590, %v3071
  %v3408 = vmax.f32 %v2593, %v3073
  %v3409 = vmax.f32 %v2596, %v3075
  %v3410 = vmax.f32 %v2599, %v3077
  %v3411 = vmax.f32 %v2602, %v3079
  %v3412 = vmax.f32 %v2605, %v3081
  %v3413 = vmax.f32 %v2608, %v3083
  %v3414 = vmax.f32 %v2611, %v3085
  %v3415 = vmax.f32 %v2614, %v3087
  %v3416 = vmax.f32 %v2617, %v3089
  %v3417 = vmax.f32 %v2620, %v3091
  %v3418 = vmax.f32 %v2623, %v3093
  %v3419 = vmax.f32 %v2626, %v3095
  %v3420 = vmax.f32 %v2629, %v3097
  %v3421 = vmax.f32 %v2632, %v3099
  %v3422 = vmax.f32 %v2635, %v3101
  %v3423 = vmax.f32 %v2638, %v3103
  %v3424 = vmax.f32 %v2641, %v3105
  %v3425 = vmax.f32 %v2644, %v3107
  %v3426 = vmax.f32 %v2647, %v3109
  %v3427 = vmax.f32 %v2650, %v3111
  %v3428 = vmax.f32 %v2653, %v3113
  %v3429 = vmax.f32 %v2656, %v3115
  %v3430 = vmax.f32 %v2659, %v3117
  %v3431 = vmax.f32 %v2662, %v3119
  %v3432 = vmax.f32 %v2665, %v3121
  %v3433 = vmax.f32 %v2668, %v3123
  %v3434 = vmax.f32 %v2671, %v3125
  %v3435 = vmax.f32 %v2674, %v3127
  %v3436 = vmax.f32 %v2677, %v3129
  %v3437 = vmax.f32 %v2680, %v3131
  %v3438 = vmax.f32 %v2683, %v3133
  %v3439 = vmax.f32 %v2686, %v3135
  %v3440 = vmax.f32 %v2689, %v3137
  %v3441 = vmax.f32 %v2692, %v3139
  %v3442 = vmax.f32 %v2695, %v3141
  %v3443 = vmax.f32 %v2698, %v3143
  %v3444 = vmax.f32 %v2701, %v3145
  %v3445 = vmax.f32 %v2704, %v3147
  %v3446 = vmax.f32 %v2707, %v3149
  %v3447 = vmax.f32 %v2710, %v3151
  %v3448 = vmax.f32 %v2713, %v3153
  %v3449 = vmax.f32 %v2716, %v3155
  %v3450 = vmax.f32 %v2719, %v3157
  %v3451 = vmax.f32 %v2722, %v3159
  %v3452 = vmax.f32 %v2725, %v3161
  %v3453 = vmax.f32 %v2728, %v3163
  %v3454 = vmax.f32 %v2731, %v3165
  %v3455 = vmax.f32 %v2734, %v3167
  %3600 = vrot.lane.b32.xlu0 %v3312, 64
  %v3601 = vpop.permute.xlu0 %3600
  %3602 = vrot.lane.b32.xlu0 %v3313, 64
  %v3603 = vpop.permute.xlu0 %3602
  %3604 = vrot.lane.b32.xlu0 %v3314, 64
  %v3605 = vpop.permute.xlu0 %3604
  %3606 = vrot.lane.b32.xlu0 %v3315, 64
  %v3607 = vpop.permute.xlu0 %3606
  %3608 = vrot.lane.b32.xlu0 %v3316, 64
  %v3609 = vpop.permute.xlu0 %3608
  %3610 = vrot.lane.b32.xlu0 %v3317, 64
  %v3611 = vpop.permute.xlu0 %3610
  %3612 = vrot.lane.b32.xlu0 %v3318, 64
  %v3613 = vpop.permute.xlu0 %3612
  %3614 = vrot.lane.b32.xlu0 %v3319, 64
  %v3615 = vpop.permute.xlu0 %3614
  %3616 = vrot.lane.b32.xlu0 %v3320, 64
  %v3617 = vpop.permute.xlu0 %3616
  %3618 = vrot.lane.b32.xlu0 %v3321, 64
  %v3619 = vpop.permute.xlu0 %3618
  %3620 = vrot.lane.b32.xlu0 %v3322, 64
  %v3621 = vpop.permute.xlu0 %3620
  %3622 = vrot.lane.b32.xlu0 %v3323, 64
  %v3623 = vpop.permute.xlu0 %3622
  %3624 = vrot.lane.b32.xlu0 %v3324, 64
  %v3625 = vpop.permute.xlu0 %3624
  %3626 = vrot.lane.b32.xlu0 %v3325, 64
  %v3627 = vpop.permute.xlu0 %3626
  %3628 = vrot.lane.b32.xlu0 %v3326, 64
  %v3629 = vpop.permute.xlu0 %3628
  %3630 = vrot.lane.b32.xlu0 %v3327, 64
  %v3631 = vpop.permute.xlu0 %3630
  %3632 = vrot.lane.b32.xlu0 %v3328, 64
  %v3633 = vpop.permute.xlu0 %3632
  %3634 = vrot.lane.b32.xlu0 %v3329, 64
  %v3635 = vpop.permute.xlu0 %3634
  %3636 = vrot.lane.b32.xlu0 %v3330, 64
  %v3637 = vpop.permute.xlu0 %3636
  %3638 = vrot.lane.b32.xlu0 %v3331, 64
  %v3639 = vpop.permute.xlu0 %3638
  %3640 = vrot.lane.b32.xlu0 %v3332, 64
  %v3641 = vpop.permute.xlu0 %3640
  %3642 = vrot.lane.b32.xlu0 %v3333, 64
  %v3643 = vpop.permute.xlu0 %3642
  %3644 = vrot.lane.b32.xlu0 %v3334, 64
  %v3645 = vpop.permute.xlu0 %3644
  %3646 = vrot.lane.b32.xlu0 %v3335, 64
  %v3647 = vpop.permute.xlu0 %3646
  %3648 = vrot.lane.b32.xlu0 %v3336, 64
  %v3649 = vpop.permute.xlu0 %3648
  %3650 = vrot.lane.b32.xlu0 %v3337, 64
  %v3651 = vpop.permute.xlu0 %3650
  %3652 = vrot.lane.b32.xlu0 %v3338, 64
  %v3653 = vpop.permute.xlu0 %3652
  %3654 = vrot.lane.b32.xlu0 %v3339, 64
  %v3655 = vpop.permute.xlu0 %3654
  %3656 = vrot.lane.b32.xlu0 %v3340, 64
  %v3657 = vpop.permute.xlu0 %3656
  %3658 = vrot.lane.b32.xlu0 %v3341, 64
  %v3659 = vpop.permute.xlu0 %3658
  %3660 = vrot.lane.b32.xlu0 %v3342, 64
  %v3661 = vpop.permute.xlu0 %3660
  %3662 = vrot.lane.b32.xlu0 %v3343, 64
  %v3663 = vpop.permute.xlu0 %3662
  %3664 = vrot.lane.b32.xlu0 %v3344, 64
  %v3665 = vpop.permute.xlu0 %3664
  %3666 = vrot.lane.b32.xlu0 %v3345, 64
  %v3667 = vpop.permute.xlu0 %3666
  %3668 = vrot.lane.b32.xlu0 %v3346, 64
  %v3669 = vpop.permute.xlu0 %3668
  %3670 = vrot.lane.b32.xlu0 %v3347, 64
  %v3671 = vpop.permute.xlu0 %3670
  %3672 = vrot.lane.b32.xlu0 %v3348, 64
  %v3673 = vpop.permute.xlu0 %3672
  %3674 = vrot.lane.b32.xlu0 %v3349, 64
  %v3675 = vpop.permute.xlu0 %3674
  %3676 = vrot.lane.b32.xlu0 %v3350, 64
  %v3677 = vpop.permute.xlu0 %3676
  %3678 = vrot.lane.b32.xlu0 %v3351, 64
  %v3679 = vpop.permute.xlu0 %3678
  %3680 = vrot.lane.b32.xlu0 %v3352, 64
  %v3681 = vpop.permute.xlu0 %3680
  %3682 = vrot.lane.b32.xlu0 %v3353, 64
  %v3683 = vpop.permute.xlu0 %3682
  %3684 = vrot.lane.b32.xlu0 %v3354, 64
  %v3685 = vpop.permute.xlu0 %3684
  %3686 = vrot.lane.b32.xlu0 %v3355, 64
  %v3687 = vpop.permute.xlu0 %3686
  %3688 = vrot.lane.b32.xlu0 %v3356, 64
  %v3689 = vpop.permute.xlu0 %3688
  %3690 = vrot.lane.b32.xlu0 %v3357, 64
  %v3691 = vpop.permute.xlu0 %3690
  %3692 = vrot.lane.b32.xlu0 %v3358, 64
  %v3693 = vpop.permute.xlu0 %3692
  %3694 = vrot.lane.b32.xlu0 %v3359, 64
  %v3695 = vpop.permute.xlu0 %3694
  %3696 = vrot.lane.b32.xlu0 %v3360, 64
  %v3697 = vpop.permute.xlu0 %3696
  %3698 = vrot.lane.b32.xlu0 %v3361, 64
  %v3699 = vpop.permute.xlu0 %3698
  %3700 = vrot.lane.b32.xlu0 %v3362, 64
  %v3701 = vpop.permute.xlu0 %3700
  %3702 = vrot.lane.b32.xlu0 %v3363, 64
  %v3703 = vpop.permute.xlu0 %3702
  %3704 = vrot.lane.b32.xlu0 %v3364, 64
  %v3705 = vpop.permute.xlu0 %3704
  %3706 = vrot.lane.b32.xlu0 %v3365, 64
  %v3707 = vpop.permute.xlu0 %3706
  %3708 = vrot.lane.b32.xlu0 %v3366, 64
  %v3709 = vpop.permute.xlu0 %3708
  %3710 = vrot.lane.b32.xlu0 %v3367, 64
  %v3711 = vpop.permute.xlu0 %3710
  %3712 = vrot.lane.b32.xlu0 %v3368, 64
  %v3713 = vpop.permute.xlu0 %3712
  %3714 = vrot.lane.b32.xlu0 %v3369, 64
  %v3715 = vpop.permute.xlu0 %3714
  %3716 = vrot.lane.b32.xlu0 %v3370, 64
  %v3717 = vpop.permute.xlu0 %3716
  %3718 = vrot.lane.b32.xlu0 %v3371, 64
  %v3719 = vpop.permute.xlu0 %3718
  %3720 = vrot.lane.b32.xlu0 %v3372, 64
  %v3721 = vpop.permute.xlu0 %3720
  %3722 = vrot.lane.b32.xlu0 %v3373, 64
  %v3723 = vpop.permute.xlu0 %3722
  %3724 = vrot.lane.b32.xlu0 %v3374, 64
  %v3725 = vpop.permute.xlu0 %3724
  %3726 = vrot.lane.b32.xlu0 %v3375, 64
  %v3727 = vpop.permute.xlu0 %3726
  %3728 = vrot.lane.b32.xlu0 %v3376, 64
  %v3729 = vpop.permute.xlu0 %3728
  %3730 = vrot.lane.b32.xlu0 %v3377, 64
  %v3731 = vpop.permute.xlu0 %3730
  %3732 = vrot.lane.b32.xlu0 %v3378, 64
  %v3733 = vpop.permute.xlu0 %3732
  %3734 = vrot.lane.b32.xlu0 %v3379, 64
  %v3735 = vpop.permute.xlu0 %3734
  %3736 = vrot.lane.b32.xlu0 %v3380, 64
  %v3737 = vpop.permute.xlu0 %3736
  %3738 = vrot.lane.b32.xlu0 %v3381, 64
  %v3739 = vpop.permute.xlu0 %3738
  %3740 = vrot.lane.b32.xlu0 %v3382, 64
  %v3741 = vpop.permute.xlu0 %3740
  %3742 = vrot.lane.b32.xlu0 %v3383, 64
  %v3743 = vpop.permute.xlu0 %3742
  %3744 = vrot.lane.b32.xlu0 %v3384, 64
  %v3745 = vpop.permute.xlu0 %3744
  %3746 = vrot.lane.b32.xlu0 %v3385, 64
  %v3747 = vpop.permute.xlu0 %3746
  %3748 = vrot.lane.b32.xlu0 %v3386, 64
  %v3749 = vpop.permute.xlu0 %3748
  %3750 = vrot.lane.b32.xlu0 %v3387, 64
  %v3751 = vpop.permute.xlu0 %3750
  %3752 = vrot.lane.b32.xlu0 %v3388, 64
  %v3753 = vpop.permute.xlu0 %3752
  %3754 = vrot.lane.b32.xlu0 %v3389, 64
  %v3755 = vpop.permute.xlu0 %3754
  %3756 = vrot.lane.b32.xlu0 %v3390, 64
  %v3757 = vpop.permute.xlu0 %3756
  %3758 = vrot.lane.b32.xlu0 %v3391, 64
  %v3759 = vpop.permute.xlu0 %3758
  %3760 = vrot.lane.b32.xlu0 %v3392, 64
  %v3761 = vpop.permute.xlu0 %3760
  %3762 = vrot.lane.b32.xlu0 %v3393, 64
  %v3763 = vpop.permute.xlu0 %3762
  %3764 = vrot.lane.b32.xlu0 %v3394, 64
  %v3765 = vpop.permute.xlu0 %3764
  %3766 = vrot.lane.b32.xlu0 %v3395, 64
  %v3767 = vpop.permute.xlu0 %3766
  %3768 = vrot.lane.b32.xlu0 %v3396, 64
  %v3769 = vpop.permute.xlu0 %3768
  %3770 = vrot.lane.b32.xlu0 %v3397, 64
  %v3771 = vpop.permute.xlu0 %3770
  %3772 = vrot.lane.b32.xlu0 %v3398, 64
  %v3773 = vpop.permute.xlu0 %3772
  %3774 = vrot.lane.b32.xlu0 %v3399, 64
  %v3775 = vpop.permute.xlu0 %3774
  %3776 = vrot.lane.b32.xlu0 %v3400, 64
  %v3777 = vpop.permute.xlu0 %3776
  %3778 = vrot.lane.b32.xlu0 %v3401, 64
  %v3779 = vpop.permute.xlu0 %3778
  %3780 = vrot.lane.b32.xlu0 %v3402, 64
  %v3781 = vpop.permute.xlu0 %3780
  %3782 = vrot.lane.b32.xlu0 %v3403, 64
  %v3783 = vpop.permute.xlu0 %3782
  %3784 = vrot.lane.b32.xlu0 %v3404, 64
  %v3785 = vpop.permute.xlu0 %3784
  %3786 = vrot.lane.b32.xlu0 %v3405, 64
  %v3787 = vpop.permute.xlu0 %3786
  %3788 = vrot.lane.b32.xlu0 %v3406, 64
  %v3789 = vpop.permute.xlu0 %3788
  %3790 = vrot.lane.b32.xlu0 %v3407, 64
  %v3791 = vpop.permute.xlu0 %3790
  %3792 = vrot.lane.b32.xlu0 %v3408, 64
  %v3793 = vpop.permute.xlu0 %3792
  %3794 = vrot.lane.b32.xlu0 %v3409, 64
  %v3795 = vpop.permute.xlu0 %3794
  %3796 = vrot.lane.b32.xlu0 %v3410, 64
  %v3797 = vpop.permute.xlu0 %3796
  %3798 = vrot.lane.b32.xlu0 %v3411, 64
  %v3799 = vpop.permute.xlu0 %3798
  %3800 = vrot.lane.b32.xlu0 %v3412, 64
  %v3801 = vpop.permute.xlu0 %3800
  %3802 = vrot.lane.b32.xlu0 %v3413, 64
  %v3803 = vpop.permute.xlu0 %3802
  %3804 = vrot.lane.b32.xlu0 %v3414, 64
  %v3805 = vpop.permute.xlu0 %3804
  %3806 = vrot.lane.b32.xlu0 %v3415, 64
  %v3807 = vpop.permute.xlu0 %3806
  %3808 = vrot.lane.b32.xlu0 %v3416, 64
  %v3809 = vpop.permute.xlu0 %3808
  %3810 = vrot.lane.b32.xlu0 %v3417, 64
  %v3811 = vpop.permute.xlu0 %3810
  %3812 = vrot.lane.b32.xlu0 %v3418, 64
  %v3813 = vpop.permute.xlu0 %3812
  %3814 = vrot.lane.b32.xlu0 %v3419, 64
  %v3815 = vpop.permute.xlu0 %3814
  %3816 = vrot.lane.b32.xlu0 %v3420, 64
  %v3817 = vpop.permute.xlu0 %3816
  %3818 = vrot.lane.b32.xlu0 %v3421, 64
  %v3819 = vpop.permute.xlu0 %3818
  %3820 = vrot.lane.b32.xlu0 %v3422, 64
  %v3821 = vpop.permute.xlu0 %3820
  %3822 = vrot.lane.b32.xlu0 %v3423, 64
  %v3823 = vpop.permute.xlu0 %3822
  %3824 = vrot.lane.b32.xlu0 %v3424, 64
  %v3825 = vpop.permute.xlu0 %3824
  %3826 = vrot.lane.b32.xlu0 %v3425, 64
  %v3827 = vpop.permute.xlu0 %3826
  %3828 = vrot.lane.b32.xlu0 %v3426, 64
  %v3829 = vpop.permute.xlu0 %3828
  %3830 = vrot.lane.b32.xlu0 %v3427, 64
  %v3831 = vpop.permute.xlu0 %3830
  %3832 = vrot.lane.b32.xlu0 %v3428, 64
  %v3833 = vpop.permute.xlu0 %3832
  %3834 = vrot.lane.b32.xlu0 %v3429, 64
  %v3835 = vpop.permute.xlu0 %3834
  %3836 = vrot.lane.b32.xlu0 %v3430, 64
  %v3837 = vpop.permute.xlu0 %3836
  %3838 = vrot.lane.b32.xlu0 %v3431, 64
  %v3839 = vpop.permute.xlu0 %3838
  %3840 = vrot.lane.b32.xlu0 %v3432, 64
  %v3841 = vpop.permute.xlu0 %3840
  %3842 = vrot.lane.b32.xlu0 %v3433, 64
  %v3843 = vpop.permute.xlu0 %3842
  %3844 = vrot.lane.b32.xlu0 %v3434, 64
  %v3845 = vpop.permute.xlu0 %3844
  %3846 = vrot.lane.b32.xlu0 %v3435, 64
  %v3847 = vpop.permute.xlu0 %3846
  %3848 = vrot.lane.b32.xlu0 %v3436, 64
  %v3849 = vpop.permute.xlu0 %3848
  %3850 = vrot.lane.b32.xlu0 %v3437, 64
  %v3851 = vpop.permute.xlu0 %3850
  %3852 = vrot.lane.b32.xlu0 %v3438, 64
  %v3853 = vpop.permute.xlu0 %3852
  %3854 = vrot.lane.b32.xlu0 %v3439, 64
  %v3855 = vpop.permute.xlu0 %3854
  %3856 = vrot.lane.b32.xlu0 %v3440, 64
  %v3857 = vpop.permute.xlu0 %3856
  %3858 = vrot.lane.b32.xlu0 %v3441, 64
  %v3859 = vpop.permute.xlu0 %3858
  %3860 = vrot.lane.b32.xlu0 %v3442, 64
  %v3861 = vpop.permute.xlu0 %3860
  %3862 = vrot.lane.b32.xlu0 %v3443, 64
  %v3863 = vpop.permute.xlu0 %3862
  %3864 = vrot.lane.b32.xlu0 %v3444, 64
  %v3865 = vpop.permute.xlu0 %3864
  %3866 = vrot.lane.b32.xlu0 %v3445, 64
  %v3867 = vpop.permute.xlu0 %3866
  %3868 = vrot.lane.b32.xlu0 %v3446, 64
  %v3869 = vpop.permute.xlu0 %3868
  %3870 = vrot.lane.b32.xlu0 %v3447, 64
  %v3871 = vpop.permute.xlu0 %3870
  %3872 = vrot.lane.b32.xlu0 %v3448, 64
  %v3873 = vpop.permute.xlu0 %3872
  %3874 = vrot.lane.b32.xlu0 %v3449, 64
  %v3875 = vpop.permute.xlu0 %3874
  %3876 = vrot.lane.b32.xlu0 %v3450, 64
  %v3877 = vpop.permute.xlu0 %3876
  %3878 = vrot.lane.b32.xlu0 %v3451, 64
  %v3879 = vpop.permute.xlu0 %3878
  %3880 = vrot.lane.b32.xlu0 %v3452, 64
  %v3881 = vpop.permute.xlu0 %3880
  %3882 = vrot.lane.b32.xlu0 %v3453, 64
  %v3883 = vpop.permute.xlu0 %3882
  %3884 = vrot.lane.b32.xlu0 %v3454, 64
  %v3885 = vpop.permute.xlu0 %3884
  %3886 = vrot.lane.b32.xlu0 %v3455, 64
  %v3887 = vpop.permute.xlu0 %3886
  %v4032 = vmax.f32 %v3312, %v3601
  %v4033 = vmax.f32 %v3313, %v3603
  %v4034 = vmax.f32 %v3314, %v3605
  %v4035 = vmax.f32 %v3315, %v3607
  %v4036 = vmax.f32 %v3316, %v3609
  %v4037 = vmax.f32 %v3317, %v3611
  %v4038 = vmax.f32 %v3318, %v3613
  %v4039 = vmax.f32 %v3319, %v3615
  %v4040 = vmax.f32 %v3320, %v3617
  %v4041 = vmax.f32 %v3321, %v3619
  %v4042 = vmax.f32 %v3322, %v3621
  %v4043 = vmax.f32 %v3323, %v3623
  %v4044 = vmax.f32 %v3324, %v3625
  %v4045 = vmax.f32 %v3325, %v3627
  %v4046 = vmax.f32 %v3326, %v3629
  %v4047 = vmax.f32 %v3327, %v3631
  %v4048 = vmax.f32 %v3328, %v3633
  %v4049 = vmax.f32 %v3329, %v3635
  %v4050 = vmax.f32 %v3330, %v3637
  %v4051 = vmax.f32 %v3331, %v3639
  %v4052 = vmax.f32 %v3332, %v3641
  %v4053 = vmax.f32 %v3333, %v3643
  %v4054 = vmax.f32 %v3334, %v3645
  %v4055 = vmax.f32 %v3335, %v3647
  %v4056 = vmax.f32 %v3336, %v3649
  %v4057 = vmax.f32 %v3337, %v3651
  %v4058 = vmax.f32 %v3338, %v3653
  %v4059 = vmax.f32 %v3339, %v3655
  %v4060 = vmax.f32 %v3340, %v3657
  %v4061 = vmax.f32 %v3341, %v3659
  %v4062 = vmax.f32 %v3342, %v3661
  %v4063 = vmax.f32 %v3343, %v3663
  %v4064 = vmax.f32 %v3344, %v3665
  %v4065 = vmax.f32 %v3345, %v3667
  %v4066 = vmax.f32 %v3346, %v3669
  %v4067 = vmax.f32 %v3347, %v3671
  %v4068 = vmax.f32 %v3348, %v3673
  %v4069 = vmax.f32 %v3349, %v3675
  %v4070 = vmax.f32 %v3350, %v3677
  %v4071 = vmax.f32 %v3351, %v3679
  %v4072 = vmax.f32 %v3352, %v3681
  %v4073 = vmax.f32 %v3353, %v3683
  %v4074 = vmax.f32 %v3354, %v3685
  %v4075 = vmax.f32 %v3355, %v3687
  %v4076 = vmax.f32 %v3356, %v3689
  %v4077 = vmax.f32 %v3357, %v3691
  %v4078 = vmax.f32 %v3358, %v3693
  %v4079 = vmax.f32 %v3359, %v3695
  %v4080 = vmax.f32 %v3360, %v3697
  %v4081 = vmax.f32 %v3361, %v3699
  %v4082 = vmax.f32 %v3362, %v3701
  %v4083 = vmax.f32 %v3363, %v3703
  %v4084 = vmax.f32 %v3364, %v3705
  %v4085 = vmax.f32 %v3365, %v3707
  %v4086 = vmax.f32 %v3366, %v3709
  %v4087 = vmax.f32 %v3367, %v3711
  %v4088 = vmax.f32 %v3368, %v3713
  %v4089 = vmax.f32 %v3369, %v3715
  %v4090 = vmax.f32 %v3370, %v3717
  %v4091 = vmax.f32 %v3371, %v3719
  %v4092 = vmax.f32 %v3372, %v3721
  %v4093 = vmax.f32 %v3373, %v3723
  %v4094 = vmax.f32 %v3374, %v3725
  %v4095 = vmax.f32 %v3375, %v3727
  %v4096 = vmax.f32 %v3376, %v3729
  %v4097 = vmax.f32 %v3377, %v3731
  %v4098 = vmax.f32 %v3378, %v3733
  %v4099 = vmax.f32 %v3379, %v3735
  %v4100 = vmax.f32 %v3380, %v3737
  %v4101 = vmax.f32 %v3381, %v3739
  %v4102 = vmax.f32 %v3382, %v3741
  %v4103 = vmax.f32 %v3383, %v3743
  %v4104 = vmax.f32 %v3384, %v3745
  %v4105 = vmax.f32 %v3385, %v3747
  %v4106 = vmax.f32 %v3386, %v3749
  %v4107 = vmax.f32 %v3387, %v3751
  %v4108 = vmax.f32 %v3388, %v3753
  %v4109 = vmax.f32 %v3389, %v3755
  %v4110 = vmax.f32 %v3390, %v3757
  %v4111 = vmax.f32 %v3391, %v3759
  %v4112 = vmax.f32 %v3392, %v3761
  %v4113 = vmax.f32 %v3393, %v3763
  %v4114 = vmax.f32 %v3394, %v3765
  %v4115 = vmax.f32 %v3395, %v3767
  %v4116 = vmax.f32 %v3396, %v3769
  %v4117 = vmax.f32 %v3397, %v3771
  %v4118 = vmax.f32 %v3398, %v3773
  %v4119 = vmax.f32 %v3399, %v3775
  %v4120 = vmax.f32 %v3400, %v3777
  %v4121 = vmax.f32 %v3401, %v3779
  %v4122 = vmax.f32 %v3402, %v3781
  %v4123 = vmax.f32 %v3403, %v3783
  %v4124 = vmax.f32 %v3404, %v3785
  %v4125 = vmax.f32 %v3405, %v3787
  %v4126 = vmax.f32 %v3406, %v3789
  %v4127 = vmax.f32 %v3407, %v3791
  %v4128 = vmax.f32 %v3408, %v3793
  %v4129 = vmax.f32 %v3409, %v3795
  %v4130 = vmax.f32 %v3410, %v3797
  %v4131 = vmax.f32 %v3411, %v3799
  %v4132 = vmax.f32 %v3412, %v3801
  %v4133 = vmax.f32 %v3413, %v3803
  %v4134 = vmax.f32 %v3414, %v3805
  %v4135 = vmax.f32 %v3415, %v3807
  %v4136 = vmax.f32 %v3416, %v3809
  %v4137 = vmax.f32 %v3417, %v3811
  %v4138 = vmax.f32 %v3418, %v3813
  %v4139 = vmax.f32 %v3419, %v3815
  %v4140 = vmax.f32 %v3420, %v3817
  %v4141 = vmax.f32 %v3421, %v3819
  %v4142 = vmax.f32 %v3422, %v3821
  %v4143 = vmax.f32 %v3423, %v3823
  %v4144 = vmax.f32 %v3424, %v3825
  %v4145 = vmax.f32 %v3425, %v3827
  %v4146 = vmax.f32 %v3426, %v3829
  %v4147 = vmax.f32 %v3427, %v3831
  %v4148 = vmax.f32 %v3428, %v3833
  %v4149 = vmax.f32 %v3429, %v3835
  %v4150 = vmax.f32 %v3430, %v3837
  %v4151 = vmax.f32 %v3431, %v3839
  %v4152 = vmax.f32 %v3432, %v3841
  %v4153 = vmax.f32 %v3433, %v3843
  %v4154 = vmax.f32 %v3434, %v3845
  %v4155 = vmax.f32 %v3435, %v3847
  %v4156 = vmax.f32 %v3436, %v3849
  %v4157 = vmax.f32 %v3437, %v3851
  %v4158 = vmax.f32 %v3438, %v3853
  %v4159 = vmax.f32 %v3439, %v3855
  %v4160 = vmax.f32 %v3440, %v3857
  %v4161 = vmax.f32 %v3441, %v3859
  %v4162 = vmax.f32 %v3442, %v3861
  %v4163 = vmax.f32 %v3443, %v3863
  %v4164 = vmax.f32 %v3444, %v3865
  %v4165 = vmax.f32 %v3445, %v3867
  %v4166 = vmax.f32 %v3446, %v3869
  %v4167 = vmax.f32 %v3447, %v3871
  %v4168 = vmax.f32 %v3448, %v3873
  %v4169 = vmax.f32 %v3449, %v3875
  %v4170 = vmax.f32 %v3450, %v3877
  %v4171 = vmax.f32 %v3451, %v3879
  %v4172 = vmax.f32 %v3452, %v3881
  %v4173 = vmax.f32 %v3453, %v3883
  %v4174 = vmax.f32 %v3454, %v3885
  %v4175 = vmax.f32 %v3455, %v3887
  %v4176 = vld [vmem:[%s4] sm:$0x1]
  %v4178 = vperm.slane %v4176, 0
  %v4180 = vadd.f32 %v4032, %v4178
  %v4181 = vadd.f32 %v4033, %v4178
  %v4182 = vadd.f32 %v4034, %v4178
  %v4183 = vadd.f32 %v4035, %v4178
  %v4184 = vadd.f32 %v4036, %v4178
  %v4185 = vadd.f32 %v4037, %v4178
  %v4186 = vadd.f32 %v4038, %v4178
  %v4187 = vadd.f32 %v4039, %v4178
  %v4188 = vadd.f32 %v4040, %v4178
  %v4189 = vadd.f32 %v4041, %v4178
  %v4190 = vadd.f32 %v4042, %v4178
  %v4191 = vadd.f32 %v4043, %v4178
  %v4192 = vadd.f32 %v4044, %v4178
  %v4193 = vadd.f32 %v4045, %v4178
  %v4194 = vadd.f32 %v4046, %v4178
  %v4195 = vadd.f32 %v4047, %v4178
  %v4196 = vadd.f32 %v4048, %v4178
  %v4197 = vadd.f32 %v4049, %v4178
  %v4198 = vadd.f32 %v4050, %v4178
  %v4199 = vadd.f32 %v4051, %v4178
  %v4200 = vadd.f32 %v4052, %v4178
  %v4201 = vadd.f32 %v4053, %v4178
  %v4202 = vadd.f32 %v4054, %v4178
  %v4203 = vadd.f32 %v4055, %v4178
  %v4204 = vadd.f32 %v4056, %v4178
  %v4205 = vadd.f32 %v4057, %v4178
  %v4206 = vadd.f32 %v4058, %v4178
  %v4207 = vadd.f32 %v4059, %v4178
  %v4208 = vadd.f32 %v4060, %v4178
  %v4209 = vadd.f32 %v4061, %v4178
  %v4210 = vadd.f32 %v4062, %v4178
  %v4211 = vadd.f32 %v4063, %v4178
  %v4212 = vadd.f32 %v4064, %v4178
  %v4213 = vadd.f32 %v4065, %v4178
  %v4214 = vadd.f32 %v4066, %v4178
  %v4215 = vadd.f32 %v4067, %v4178
  %v4216 = vadd.f32 %v4068, %v4178
  %v4217 = vadd.f32 %v4069, %v4178
  %v4218 = vadd.f32 %v4070, %v4178
  %v4219 = vadd.f32 %v4071, %v4178
  %v4220 = vadd.f32 %v4072, %v4178
  %v4221 = vadd.f32 %v4073, %v4178
  %v4222 = vadd.f32 %v4074, %v4178
  %v4223 = vadd.f32 %v4075, %v4178
  %v4224 = vadd.f32 %v4076, %v4178
  %v4225 = vadd.f32 %v4077, %v4178
  %v4226 = vadd.f32 %v4078, %v4178
  %v4227 = vadd.f32 %v4079, %v4178
  %v4228 = vadd.f32 %v4080, %v4178
  %v4229 = vadd.f32 %v4081, %v4178
  %v4230 = vadd.f32 %v4082, %v4178
  %v4231 = vadd.f32 %v4083, %v4178
  %v4232 = vadd.f32 %v4084, %v4178
  %v4233 = vadd.f32 %v4085, %v4178
  %v4234 = vadd.f32 %v4086, %v4178
  %v4235 = vadd.f32 %v4087, %v4178
  %v4236 = vadd.f32 %v4088, %v4178
  %v4237 = vadd.f32 %v4089, %v4178
  %v4238 = vadd.f32 %v4090, %v4178
  %v4239 = vadd.f32 %v4091, %v4178
  %v4240 = vadd.f32 %v4092, %v4178
  %v4241 = vadd.f32 %v4093, %v4178
  %v4242 = vadd.f32 %v4094, %v4178
  %v4243 = vadd.f32 %v4095, %v4178
  %v4244 = vadd.f32 %v4096, %v4178
  %v4245 = vadd.f32 %v4097, %v4178
  %v4246 = vadd.f32 %v4098, %v4178
  %v4247 = vadd.f32 %v4099, %v4178
  %v4248 = vadd.f32 %v4100, %v4178
  %v4249 = vadd.f32 %v4101, %v4178
  %v4250 = vadd.f32 %v4102, %v4178
  %v4251 = vadd.f32 %v4103, %v4178
  %v4252 = vadd.f32 %v4104, %v4178
  %v4253 = vadd.f32 %v4105, %v4178
  %v4254 = vadd.f32 %v4106, %v4178
  %v4255 = vadd.f32 %v4107, %v4178
  %v4256 = vadd.f32 %v4108, %v4178
  %v4257 = vadd.f32 %v4109, %v4178
  %v4258 = vadd.f32 %v4110, %v4178
  %v4259 = vadd.f32 %v4111, %v4178
  %v4260 = vadd.f32 %v4112, %v4178
  %v4261 = vadd.f32 %v4113, %v4178
  %v4262 = vadd.f32 %v4114, %v4178
  %v4263 = vadd.f32 %v4115, %v4178
  %v4264 = vadd.f32 %v4116, %v4178
  %v4265 = vadd.f32 %v4117, %v4178
  %v4266 = vadd.f32 %v4118, %v4178
  %v4267 = vadd.f32 %v4119, %v4178
  %v4268 = vadd.f32 %v4120, %v4178
  %v4269 = vadd.f32 %v4121, %v4178
  %v4270 = vadd.f32 %v4122, %v4178
  %v4271 = vadd.f32 %v4123, %v4178
  %v4272 = vadd.f32 %v4124, %v4178
  %v4273 = vadd.f32 %v4125, %v4178
  %v4274 = vadd.f32 %v4126, %v4178
  %v4275 = vadd.f32 %v4127, %v4178
  %v4276 = vadd.f32 %v4128, %v4178
  %v4277 = vadd.f32 %v4129, %v4178
  %v4278 = vadd.f32 %v4130, %v4178
  %v4279 = vadd.f32 %v4131, %v4178
  %v4280 = vadd.f32 %v4132, %v4178
  %v4281 = vadd.f32 %v4133, %v4178
  %v4282 = vadd.f32 %v4134, %v4178
  %v4283 = vadd.f32 %v4135, %v4178
  %v4284 = vadd.f32 %v4136, %v4178
  %v4285 = vadd.f32 %v4137, %v4178
  %v4286 = vadd.f32 %v4138, %v4178
  %v4287 = vadd.f32 %v4139, %v4178
  %v4288 = vadd.f32 %v4140, %v4178
  %v4289 = vadd.f32 %v4141, %v4178
  %v4290 = vadd.f32 %v4142, %v4178
  %v4291 = vadd.f32 %v4143, %v4178
  %v4292 = vadd.f32 %v4144, %v4178
  %v4293 = vadd.f32 %v4145, %v4178
  %v4294 = vadd.f32 %v4146, %v4178
  %v4295 = vadd.f32 %v4147, %v4178
  %v4296 = vadd.f32 %v4148, %v4178
  %v4297 = vadd.f32 %v4149, %v4178
  %v4298 = vadd.f32 %v4150, %v4178
  %v4299 = vadd.f32 %v4151, %v4178
  %v4300 = vadd.f32 %v4152, %v4178
  %v4301 = vadd.f32 %v4153, %v4178
  %v4302 = vadd.f32 %v4154, %v4178
  %v4303 = vadd.f32 %v4155, %v4178
  %v4304 = vadd.f32 %v4156, %v4178
  %v4305 = vadd.f32 %v4157, %v4178
  %v4306 = vadd.f32 %v4158, %v4178
  %v4307 = vadd.f32 %v4159, %v4178
  %v4308 = vadd.f32 %v4160, %v4178
  %v4309 = vadd.f32 %v4161, %v4178
  %v4310 = vadd.f32 %v4162, %v4178
  %v4311 = vadd.f32 %v4163, %v4178
  %v4312 = vadd.f32 %v4164, %v4178
  %v4313 = vadd.f32 %v4165, %v4178
  %v4314 = vadd.f32 %v4166, %v4178
  %v4315 = vadd.f32 %v4167, %v4178
  %v4316 = vadd.f32 %v4168, %v4178
  %v4317 = vadd.f32 %v4169, %v4178
  %v4318 = vadd.f32 %v4170, %v4178
  %v4319 = vadd.f32 %v4171, %v4178
  %v4320 = vadd.f32 %v4172, %v4178
  %v4321 = vadd.f32 %v4173, %v4178
  %v4322 = vadd.f32 %v4174, %v4178
  %v4323 = vadd.f32 %v4175, %v4178
  %v4324 = vmax.f32 %v4180, 0.0
  %v4325 = vmax.f32 %v4181, 0.0
  %v4326 = vmax.f32 %v4182, 0.0
  %v4327 = vmax.f32 %v4183, 0.0
  %v4328 = vmax.f32 %v4184, 0.0
  %v4329 = vmax.f32 %v4185, 0.0
  %v4330 = vmax.f32 %v4186, 0.0
  %v4331 = vmax.f32 %v4187, 0.0
  %v4332 = vmax.f32 %v4188, 0.0
  %v4333 = vmax.f32 %v4189, 0.0
  %v4334 = vmax.f32 %v4190, 0.0
  %v4335 = vmax.f32 %v4191, 0.0
  %v4336 = vmax.f32 %v4192, 0.0
  %v4337 = vmax.f32 %v4193, 0.0
  %v4338 = vmax.f32 %v4194, 0.0
  %v4339 = vmax.f32 %v4195, 0.0
  %v4340 = vmax.f32 %v4196, 0.0
  %v4341 = vmax.f32 %v4197, 0.0
  %v4342 = vmax.f32 %v4198, 0.0
  %v4343 = vmax.f32 %v4199, 0.0
  %v4344 = vmax.f32 %v4200, 0.0
  %v4345 = vmax.f32 %v4201, 0.0
  %v4346 = vmax.f32 %v4202, 0.0
  %v4347 = vmax.f32 %v4203, 0.0
  %v4348 = vmax.f32 %v4204, 0.0
  %v4349 = vmax.f32 %v4205, 0.0
  %v4350 = vmax.f32 %v4206, 0.0
  %v4351 = vmax.f32 %v4207, 0.0
  %v4352 = vmax.f32 %v4208, 0.0
  %v4353 = vmax.f32 %v4209, 0.0
  %v4354 = vmax.f32 %v4210, 0.0
  %v4355 = vmax.f32 %v4211, 0.0
  %v4356 = vmax.f32 %v4212, 0.0
  %v4357 = vmax.f32 %v4213, 0.0
  %v4358 = vmax.f32 %v4214, 0.0
  %v4359 = vmax.f32 %v4215, 0.0
  %v4360 = vmax.f32 %v4216, 0.0
  %v4361 = vmax.f32 %v4217, 0.0
  %v4362 = vmax.f32 %v4218, 0.0
  %v4363 = vmax.f32 %v4219, 0.0
  %v4364 = vmax.f32 %v4220, 0.0
  %v4365 = vmax.f32 %v4221, 0.0
  %v4366 = vmax.f32 %v4222, 0.0
  %v4367 = vmax.f32 %v4223, 0.0
  %v4368 = vmax.f32 %v4224, 0.0
  %v4369 = vmax.f32 %v4225, 0.0
  %v4370 = vmax.f32 %v4226, 0.0
  %v4371 = vmax.f32 %v4227, 0.0
  %v4372 = vmax.f32 %v4228, 0.0
  %v4373 = vmax.f32 %v4229, 0.0
  %v4374 = vmax.f32 %v4230, 0.0
  %v4375 = vmax.f32 %v4231, 0.0
  %v4376 = vmax.f32 %v4232, 0.0
  %v4377 = vmax.f32 %v4233, 0.0
  %v4378 = vmax.f32 %v4234, 0.0
  %v4379 = vmax.f32 %v4235, 0.0
  %v4380 = vmax.f32 %v4236, 0.0
  %v4381 = vmax.f32 %v4237, 0.0
  %v4382 = vmax.f32 %v4238, 0.0
  %v4383 = vmax.f32 %v4239, 0.0
  %v4384 = vmax.f32 %v4240, 0.0
  %v4385 = vmax.f32 %v4241, 0.0
  %v4386 = vmax.f32 %v4242, 0.0
  %v4387 = vmax.f32 %v4243, 0.0
  %v4388 = vmax.f32 %v4244, 0.0
  %v4389 = vmax.f32 %v4245, 0.0
  %v4390 = vmax.f32 %v4246, 0.0
  %v4391 = vmax.f32 %v4247, 0.0
  %v4392 = vmax.f32 %v4248, 0.0
  %v4393 = vmax.f32 %v4249, 0.0
  %v4394 = vmax.f32 %v4250, 0.0
  %v4395 = vmax.f32 %v4251, 0.0
  %v4396 = vmax.f32 %v4252, 0.0
  %v4397 = vmax.f32 %v4253, 0.0
  %v4398 = vmax.f32 %v4254, 0.0
  %v4399 = vmax.f32 %v4255, 0.0
  %v4400 = vmax.f32 %v4256, 0.0
  %v4401 = vmax.f32 %v4257, 0.0
  %v4402 = vmax.f32 %v4258, 0.0
  %v4403 = vmax.f32 %v4259, 0.0
  %v4404 = vmax.f32 %v4260, 0.0
  %v4405 = vmax.f32 %v4261, 0.0
  %v4406 = vmax.f32 %v4262, 0.0
  %v4407 = vmax.f32 %v4263, 0.0
  %v4408 = vmax.f32 %v4264, 0.0
  %v4409 = vmax.f32 %v4265, 0.0
  %v4410 = vmax.f32 %v4266, 0.0
  %v4411 = vmax.f32 %v4267, 0.0
  %v4412 = vmax.f32 %v4268, 0.0
  %v4413 = vmax.f32 %v4269, 0.0
  %v4414 = vmax.f32 %v4270, 0.0
  %v4415 = vmax.f32 %v4271, 0.0
  %v4416 = vmax.f32 %v4272, 0.0
  %v4417 = vmax.f32 %v4273, 0.0
  %v4418 = vmax.f32 %v4274, 0.0
  %v4419 = vmax.f32 %v4275, 0.0
  %v4420 = vmax.f32 %v4276, 0.0
  %v4421 = vmax.f32 %v4277, 0.0
  %v4422 = vmax.f32 %v4278, 0.0
  %v4423 = vmax.f32 %v4279, 0.0
  %v4424 = vmax.f32 %v4280, 0.0
  %v4425 = vmax.f32 %v4281, 0.0
  %v4426 = vmax.f32 %v4282, 0.0
  %v4427 = vmax.f32 %v4283, 0.0
  %v4428 = vmax.f32 %v4284, 0.0
  %v4429 = vmax.f32 %v4285, 0.0
  %v4430 = vmax.f32 %v4286, 0.0
  %v4431 = vmax.f32 %v4287, 0.0
  %v4432 = vmax.f32 %v4288, 0.0
  %v4433 = vmax.f32 %v4289, 0.0
  %v4434 = vmax.f32 %v4290, 0.0
  %v4435 = vmax.f32 %v4291, 0.0
  %v4436 = vmax.f32 %v4292, 0.0
  %v4437 = vmax.f32 %v4293, 0.0
  %v4438 = vmax.f32 %v4294, 0.0
  %v4439 = vmax.f32 %v4295, 0.0
  %v4440 = vmax.f32 %v4296, 0.0
  %v4441 = vmax.f32 %v4297, 0.0
  %v4442 = vmax.f32 %v4298, 0.0
  %v4443 = vmax.f32 %v4299, 0.0
  %v4444 = vmax.f32 %v4300, 0.0
  %v4445 = vmax.f32 %v4301, 0.0
  %v4446 = vmax.f32 %v4302, 0.0
  %v4447 = vmax.f32 %v4303, 0.0
  %v4448 = vmax.f32 %v4304, 0.0
  %v4449 = vmax.f32 %v4305, 0.0
  %v4450 = vmax.f32 %v4306, 0.0
  %v4451 = vmax.f32 %v4307, 0.0
  %v4452 = vmax.f32 %v4308, 0.0
  %v4453 = vmax.f32 %v4309, 0.0
  %v4454 = vmax.f32 %v4310, 0.0
  %v4455 = vmax.f32 %v4311, 0.0
  %v4456 = vmax.f32 %v4312, 0.0
  %v4457 = vmax.f32 %v4313, 0.0
  %v4458 = vmax.f32 %v4314, 0.0
  %v4459 = vmax.f32 %v4315, 0.0
  %v4460 = vmax.f32 %v4316, 0.0
  %v4461 = vmax.f32 %v4317, 0.0
  %v4462 = vmax.f32 %v4318, 0.0
  %v4463 = vmax.f32 %v4319, 0.0
  %v4464 = vmax.f32 %v4320, 0.0
  %v4465 = vmax.f32 %v4321, 0.0
  %v4466 = vmax.f32 %v4322, 0.0
  %v4467 = vmax.f32 %v4323, 0.0
  %vm4468 = vcmask 261120
  %4469 = vst.msk [vmem:[%s5] sm:$0xff] %vm4468, %v4324
  %4470 = vst.msk [vmem:[%s5 + $0x8] sm:$0xff] %vm4468, %v4325
  %4471 = vst.msk [vmem:[%s5 + $0x10] sm:$0xff] %vm4468, %v4326
  %4472 = vst.msk [vmem:[%s5 + $0x18] sm:$0xff] %vm4468, %v4327
  %4473 = vst.msk [vmem:[%s5 + $0x20] sm:$0xff] %vm4468, %v4328
  %4474 = vst.msk [vmem:[%s5 + $0x28] sm:$0xff] %vm4468, %v4329
  %4475 = vst.msk [vmem:[%s5 + $0x30] sm:$0xff] %vm4468, %v4330
  %4476 = vst.msk [vmem:[%s5 + $0x38] sm:$0xff] %vm4468, %v4331
  %4477 = vst.msk [vmem:[%s5 + $0x40] sm:$0xff] %vm4468, %v4332
  %4478 = vst.msk [vmem:[%s5 + $0x48] sm:$0xff] %vm4468, %v4333
  %4479 = vst.msk [vmem:[%s5 + $0x50] sm:$0xff] %vm4468, %v4334
  %4480 = vst.msk [vmem:[%s5 + $0x58] sm:$0xff] %vm4468, %v4335
  %4481 = vst.msk [vmem:[%s5 + $0x60] sm:$0xff] %vm4468, %v4336
  %4482 = vst.msk [vmem:[%s5 + $0x68] sm:$0xff] %vm4468, %v4337
  %4483 = vst.msk [vmem:[%s5 + $0x70] sm:$0xff] %vm4468, %v4338
  %4484 = vst.msk [vmem:[%s5 + $0x78] sm:$0xff] %vm4468, %v4339
  %4485 = vst.msk [vmem:[%s5 + $0x80] sm:$0xff] %vm4468, %v4340
  %4486 = vst.msk [vmem:[%s5 + $0x88] sm:$0xff] %vm4468, %v4341
  %4487 = vst.msk [vmem:[%s5 + $0x90] sm:$0xff] %vm4468, %v4342
  %4488 = vst.msk [vmem:[%s5 + $0x98] sm:$0xff] %vm4468, %v4343
  %4489 = vst.msk [vmem:[%s5 + $0xa0] sm:$0xff] %vm4468, %v4344
  %4490 = vst.msk [vmem:[%s5 + $0xa8] sm:$0xff] %vm4468, %v4345
  %4491 = vst.msk [vmem:[%s5 + $0xb0] sm:$0xff] %vm4468, %v4346
  %4492 = vst.msk [vmem:[%s5 + $0xb8] sm:$0xff] %vm4468, %v4347
  %4493 = vst.msk [vmem:[%s5 + $0xc0] sm:$0xff] %vm4468, %v4348
  %4494 = vst.msk [vmem:[%s5 + $0xc8] sm:$0xff] %vm4468, %v4349
  %4495 = vst.msk [vmem:[%s5 + $0xd0] sm:$0xff] %vm4468, %v4350
  %4496 = vst.msk [vmem:[%s5 + $0xd8] sm:$0xff] %vm4468, %v4351
  %4497 = vst.msk [vmem:[%s5 + $0xe0] sm:$0xff] %vm4468, %v4352
  %4498 = vst.msk [vmem:[%s5 + $0xe8] sm:$0xff] %vm4468, %v4353
  %4499 = vst.msk [vmem:[%s5 + $0xf0] sm:$0xff] %vm4468, %v4354
  %4500 = vst.msk [vmem:[%s5 + $0xf8] sm:$0xff] %vm4468, %v4355
  %4501 = vst.msk [vmem:[%s5 + $0x100] sm:$0xff] %vm4468, %v4356
  %4502 = vst.msk [vmem:[%s5 + $0x108] sm:$0xff] %vm4468, %v4357
  %4503 = vst.msk [vmem:[%s5 + $0x110] sm:$0xff] %vm4468, %v4358
  %4504 = vst.msk [vmem:[%s5 + $0x118] sm:$0xff] %vm4468, %v4359
  %4505 = vst.msk [vmem:[%s5 + $0x120] sm:$0xff] %vm4468, %v4360
  %4506 = vst.msk [vmem:[%s5 + $0x128] sm:$0xff] %vm4468, %v4361
  %4507 = vst.msk [vmem:[%s5 + $0x130] sm:$0xff] %vm4468, %v4362
  %4508 = vst.msk [vmem:[%s5 + $0x138] sm:$0xff] %vm4468, %v4363
  %4509 = vst.msk [vmem:[%s5 + $0x140] sm:$0xff] %vm4468, %v4364
  %4510 = vst.msk [vmem:[%s5 + $0x148] sm:$0xff] %vm4468, %v4365
  %4511 = vst.msk [vmem:[%s5 + $0x150] sm:$0xff] %vm4468, %v4366
  %4512 = vst.msk [vmem:[%s5 + $0x158] sm:$0xff] %vm4468, %v4367
  %4513 = vst.msk [vmem:[%s5 + $0x160] sm:$0xff] %vm4468, %v4368
  %4514 = vst.msk [vmem:[%s5 + $0x168] sm:$0xff] %vm4468, %v4369
  %4515 = vst.msk [vmem:[%s5 + $0x170] sm:$0xff] %vm4468, %v4370
  %4516 = vst.msk [vmem:[%s5 + $0x178] sm:$0xff] %vm4468, %v4371
  %4517 = vst.msk [vmem:[%s5 + $0x180] sm:$0xff] %vm4468, %v4372
  %4518 = vst.msk [vmem:[%s5 + $0x188] sm:$0xff] %vm4468, %v4373
  %4519 = vst.msk [vmem:[%s5 + $0x190] sm:$0xff] %vm4468, %v4374
  %4520 = vst.msk [vmem:[%s5 + $0x198] sm:$0xff] %vm4468, %v4375
  %4521 = vst.msk [vmem:[%s5 + $0x1a0] sm:$0xff] %vm4468, %v4376
  %4522 = vst.msk [vmem:[%s5 + $0x1a8] sm:$0xff] %vm4468, %v4377
  %4523 = vst.msk [vmem:[%s5 + $0x1b0] sm:$0xff] %vm4468, %v4378
  %4524 = vst.msk [vmem:[%s5 + $0x1b8] sm:$0xff] %vm4468, %v4379
  %4525 = vst.msk [vmem:[%s5 + $0x1c0] sm:$0xff] %vm4468, %v4380
  %4526 = vst.msk [vmem:[%s5 + $0x1c8] sm:$0xff] %vm4468, %v4381
  %4527 = vst.msk [vmem:[%s5 + $0x1d0] sm:$0xff] %vm4468, %v4382
  %4528 = vst.msk [vmem:[%s5 + $0x1d8] sm:$0xff] %vm4468, %v4383
  %4529 = vst.msk [vmem:[%s5 + $0x1e0] sm:$0xff] %vm4468, %v4384
  %4530 = vst.msk [vmem:[%s5 + $0x1e8] sm:$0xff] %vm4468, %v4385
  %4531 = vst.msk [vmem:[%s5 + $0x1f0] sm:$0xff] %vm4468, %v4386
  %4532 = vst.msk [vmem:[%s5 + $0x1f8] sm:$0xff] %vm4468, %v4387
  %4533 = vst.msk [vmem:[%s5 + $0x200] sm:$0xff] %vm4468, %v4388
  %4534 = vst.msk [vmem:[%s5 + $0x208] sm:$0xff] %vm4468, %v4389
  %4535 = vst.msk [vmem:[%s5 + $0x210] sm:$0xff] %vm4468, %v4390
  %4536 = vst.msk [vmem:[%s5 + $0x218] sm:$0xff] %vm4468, %v4391
  %4537 = vst.msk [vmem:[%s5 + $0x220] sm:$0xff] %vm4468, %v4392
  %4538 = vst.msk [vmem:[%s5 + $0x228] sm:$0xff] %vm4468, %v4393
  %4539 = vst.msk [vmem:[%s5 + $0x230] sm:$0xff] %vm4468, %v4394
  %4540 = vst.msk [vmem:[%s5 + $0x238] sm:$0xff] %vm4468, %v4395
  %4541 = vst.msk [vmem:[%s5 + $0x240] sm:$0xff] %vm4468, %v4396
  %4542 = vst.msk [vmem:[%s5 + $0x248] sm:$0xff] %vm4468, %v4397
  %4543 = vst.msk [vmem:[%s5 + $0x250] sm:$0xff] %vm4468, %v4398
  %4544 = vst.msk [vmem:[%s5 + $0x258] sm:$0xff] %vm4468, %v4399
  %4545 = vst.msk [vmem:[%s5 + $0x260] sm:$0xff] %vm4468, %v4400
  %4546 = vst.msk [vmem:[%s5 + $0x268] sm:$0xff] %vm4468, %v4401
  %4547 = vst.msk [vmem:[%s5 + $0x270] sm:$0xff] %vm4468, %v4402
  %4548 = vst.msk [vmem:[%s5 + $0x278] sm:$0xff] %vm4468, %v4403
  %4549 = vst.msk [vmem:[%s5 + $0x280] sm:$0xff] %vm4468, %v4404
  %4550 = vst.msk [vmem:[%s5 + $0x288] sm:$0xff] %vm4468, %v4405
  %4551 = vst.msk [vmem:[%s5 + $0x290] sm:$0xff] %vm4468, %v4406
  %4552 = vst.msk [vmem:[%s5 + $0x298] sm:$0xff] %vm4468, %v4407
  %4553 = vst.msk [vmem:[%s5 + $0x2a0] sm:$0xff] %vm4468, %v4408
  %4554 = vst.msk [vmem:[%s5 + $0x2a8] sm:$0xff] %vm4468, %v4409
  %4555 = vst.msk [vmem:[%s5 + $0x2b0] sm:$0xff] %vm4468, %v4410
  %4556 = vst.msk [vmem:[%s5 + $0x2b8] sm:$0xff] %vm4468, %v4411
  %4557 = vst.msk [vmem:[%s5 + $0x2c0] sm:$0xff] %vm4468, %v4412
  %4558 = vst.msk [vmem:[%s5 + $0x2c8] sm:$0xff] %vm4468, %v4413
  %4559 = vst.msk [vmem:[%s5 + $0x2d0] sm:$0xff] %vm4468, %v4414
  %4560 = vst.msk [vmem:[%s5 + $0x2d8] sm:$0xff] %vm4468, %v4415
  %4561 = vst.msk [vmem:[%s5 + $0x2e0] sm:$0xff] %vm4468, %v4416
  %4562 = vst.msk [vmem:[%s5 + $0x2e8] sm:$0xff] %vm4468, %v4417
  %4563 = vst.msk [vmem:[%s5 + $0x2f0] sm:$0xff] %vm4468, %v4418
  %4564 = vst.msk [vmem:[%s5 + $0x2f8] sm:$0xff] %vm4468, %v4419
  %4565 = vst.msk [vmem:[%s5 + $0x300] sm:$0xff] %vm4468, %v4420
  %4566 = vst.msk [vmem:[%s5 + $0x308] sm:$0xff] %vm4468, %v4421
  %4567 = vst.msk [vmem:[%s5 + $0x310] sm:$0xff] %vm4468, %v4422
  %4568 = vst.msk [vmem:[%s5 + $0x318] sm:$0xff] %vm4468, %v4423
  %4569 = vst.msk [vmem:[%s5 + $0x320] sm:$0xff] %vm4468, %v4424
  %4570 = vst.msk [vmem:[%s5 + $0x328] sm:$0xff] %vm4468, %v4425
  %4571 = vst.msk [vmem:[%s5 + $0x330] sm:$0xff] %vm4468, %v4426
  %4572 = vst.msk [vmem:[%s5 + $0x338] sm:$0xff] %vm4468, %v4427
  %4573 = vst.msk [vmem:[%s5 + $0x340] sm:$0xff] %vm4468, %v4428
  %4574 = vst.msk [vmem:[%s5 + $0x348] sm:$0xff] %vm4468, %v4429
  %4575 = vst.msk [vmem:[%s5 + $0x350] sm:$0xff] %vm4468, %v4430
  %4576 = vst.msk [vmem:[%s5 + $0x358] sm:$0xff] %vm4468, %v4431
  %4577 = vst.msk [vmem:[%s5 + $0x360] sm:$0xff] %vm4468, %v4432
  %4578 = vst.msk [vmem:[%s5 + $0x368] sm:$0xff] %vm4468, %v4433
  %4579 = vst.msk [vmem:[%s5 + $0x370] sm:$0xff] %vm4468, %v4434
  %4580 = vst.msk [vmem:[%s5 + $0x378] sm:$0xff] %vm4468, %v4435
  %4581 = vst.msk [vmem:[%s5 + $0x380] sm:$0xff] %vm4468, %v4436
  %4582 = vst.msk [vmem:[%s5 + $0x388] sm:$0xff] %vm4468, %v4437
  %4583 = vst.msk [vmem:[%s5 + $0x390] sm:$0xff] %vm4468, %v4438
  %4584 = vst.msk [vmem:[%s5 + $0x398] sm:$0xff] %vm4468, %v4439
  %4585 = vst.msk [vmem:[%s5 + $0x3a0] sm:$0xff] %vm4468, %v4440
  %4586 = vst.msk [vmem:[%s5 + $0x3a8] sm:$0xff] %vm4468, %v4441
  %4587 = vst.msk [vmem:[%s5 + $0x3b0] sm:$0xff] %vm4468, %v4442
  %4588 = vst.msk [vmem:[%s5 + $0x3b8] sm:$0xff] %vm4468, %v4443
  %4589 = vst.msk [vmem:[%s5 + $0x3c0] sm:$0xff] %vm4468, %v4444
  %4590 = vst.msk [vmem:[%s5 + $0x3c8] sm:$0xff] %vm4468, %v4445
  %4591 = vst.msk [vmem:[%s5 + $0x3d0] sm:$0xff] %vm4468, %v4446
  %4592 = vst.msk [vmem:[%s5 + $0x3d8] sm:$0xff] %vm4468, %v4447
  %4593 = vst.msk [vmem:[%s5 + $0x3e0] sm:$0xff] %vm4468, %v4448
  %4594 = vst.msk [vmem:[%s5 + $0x3e8] sm:$0xff] %vm4468, %v4449
  %4595 = vst.msk [vmem:[%s5 + $0x3f0] sm:$0xff] %vm4468, %v4450
  %4596 = vst.msk [vmem:[%s5 + $0x3f8] sm:$0xff] %vm4468, %v4451
  %4597 = vst.msk [vmem:[%s5 + $0x400] sm:$0xff] %vm4468, %v4452
  %4598 = vst.msk [vmem:[%s5 + $0x408] sm:$0xff] %vm4468, %v4453
  %4599 = vst.msk [vmem:[%s5 + $0x410] sm:$0xff] %vm4468, %v4454
  %4600 = vst.msk [vmem:[%s5 + $0x418] sm:$0xff] %vm4468, %v4455
  %4601 = vst.msk [vmem:[%s5 + $0x420] sm:$0xff] %vm4468, %v4456
  %4602 = vst.msk [vmem:[%s5 + $0x428] sm:$0xff] %vm4468, %v4457
  %4603 = vst.msk [vmem:[%s5 + $0x430] sm:$0xff] %vm4468, %v4458
  %4604 = vst.msk [vmem:[%s5 + $0x438] sm:$0xff] %vm4468, %v4459
  %4605 = vst.msk [vmem:[%s5 + $0x440] sm:$0xff] %vm4468, %v4460
  %4606 = vst.msk [vmem:[%s5 + $0x448] sm:$0xff] %vm4468, %v4461
  %4607 = vst.msk [vmem:[%s5 + $0x450] sm:$0xff] %vm4468, %v4462
  %4608 = vst.msk [vmem:[%s5 + $0x458] sm:$0xff] %vm4468, %v4463
  %4609 = vst.msk [vmem:[%s5 + $0x460] sm:$0xff] %vm4468, %v4464
  %4610 = vst.msk [vmem:[%s5 + $0x468] sm:$0xff] %vm4468, %v4465
  %4611 = vst.msk [vmem:[%s5 + $0x470] sm:$0xff] %vm4468, %v4466
  %4612 = vst.msk [vmem:[%s5 + $0x478] sm:$0xff] %vm4468, %v4467
  // Predicated region
  $region22: #{convnet_forward.2} parent=0 // pred_check
    _
  $region23: #{convnet_forward.2} parent=0 // pred_check_branch
    %4614 = sbr.rel (0) target = $region25
  $region24: #{convnet_forward.2} parent=0 // pred_region
    _
  $region25: #{convnet_forward.2} parent=0 // pred_fallthru
    _
  // Predicated region
  $region26: #{convnet_forward.2} parent=0 // pred_check
    _
  $region27: #{convnet_forward.2} parent=0 // pred_check_branch
    %4616 = sbr.rel (0) target = $region29
  $region28: #{convnet_forward.2} parent=0 // pred_region
    _
  $region29: #{convnet_forward.2} parent=0 // pred_fallthru
    _

</llo_original>
